<compile_context>
chip_gen: v5e
topology: v5e:2x2
jax: 0.10.0
libtpu: 0.0.40
codegen_flags: <defaults>
</compile_context>

<pallas_src>
import functools

import jax
import jax.numpy as jnp
from jax import lax
from jax.experimental import pallas as pl
from jax.experimental.pallas import tpu as pltpu

IGST = 10


def _pick_batch_tile(M: int, N: int) -> int:
    """Smallest batch tile tm dividing M with tm*N sublane-aligned (mult. of 8)."""
    for tm in range(1, M + 1):
        if M % tm == 0 and (tm * N) % 8 == 0:
            return tm
    return M  # block then equals the full array dims -> still a legal BlockSpec


def _make_kernel(n_steps: int, h: float, igst: int, R: int, L: int, unroll):
    """Whole RK3 time loop runs inside one kernel invocation per batch block."""

    def kernel(w_ref, sm_ref, sp_ref, z_ref, o_ref):
        # Resident in VMEM for all n_steps (zero HBM traffic inside the loop).
        W = w_ref[...]      # (R, 3R)  block-diagonal channel-mix weights
        Sm = sm_ref[...]    # (L, L)   left-neighbour shift (zero pad at lane 0)
        Sp = sp_ref[...]    # (L, L)   right-neighbour shift (zero pad at lane L-1)
        z0 = z_ref[...]     # (R, L)   flattened (batch*channel, spatial) state

        # Loop-invariant ghost-cell masks, hoisted out of the time loop.
        lane = lax.broadcasted_iota(jnp.int32, (R, L), 1)
        left_ghost = lane < igst
        right_ghost = lane >= L - igst

        def f(z):
            # 3-tap stencil with Conv1d(padding=1) semantics.  Lane shifts and
            # the channel mixing both run on the MXU; VPU only does the RK axpys.
            zm = jnp.dot(z, Sm, preferred_element_type=jnp.float32)   # z[:, l-1]
            zp = jnp.dot(z, Sp, preferred_element_type=jnp.float32)   # z[:, l+1]
            zsh = jnp.concatenate([zm, z, zp], axis=0)                # (3R, L)
            return jnp.dot(W, zsh, preferred_element_type=jnp.float32)

        def cal_boundry(u):
            # Replace the first/last `igst` lanes with the nearest interior
            # value (matches torch.cat(... .expand ...) exactly).
            left = u[:, igst:igst + 1]                  # (R, 1)
            right = u[:, L - igst - 1:L - igst]         # (R, 1)
            u = jnp.where(left_ghost, left, u)
            u = jnp.where(right_ghost, right, u)
            return u

        def step(_, z):
            k1 = cal_boundry(z + h * f(z))
            k2 = cal_boundry(0.75 * z + 0.25 * k1 + 0.25 * h * f(k1))
            return cal_boundry(z / 3.0 + 2.0 * k2 / 3.0 + 2.0 * h * f(k2) / 3.0)

        o_ref[...] = lax.fori_loop(0, n_steps, step, z0, unroll=unroll)

    return kernel


@functools.partial(jax.jit, static_argnames=("t1_t0", "tol"))
def neural_ode_forward(z0, w, *, t1_t0: float, tol: float = 1e-3):
    """Pallas equivalent of NeuralODE(func, tol).forward(z0, t1_t0).

    z0: (M, N, L) float32 state.  w: (N_out, N_in, 3) stencil weights of the
    concrete linear `func` (Conv1d(N, N, 3, padding=1, bias=False)).
    """
    M, N, L = z0.shape
    assert L > 2 * IGST, "spatial extent must exceed the ghost region"
    n_steps = max(1, int(round(t1_t0 / tol)))   # clamp -> no divide-by-zero
    h = float(t1_t0) / n_steps

    # Batch tiling: each grid step integrates `tm` batches; tm*N is a multiple
    # of 8 so the (R, L) working slab fills whole (8, 128) vregs.
    tm = _pick_batch_tile(M, N)
    R = tm * N
    n_blocks = M // tm

    # Block-diagonal channel-mix matrix:
    #   out[b*N+o, l] = sum_{t,c} W[o,c,t] * tap_t[b*N+c, l]
    eye_tm = jnp.eye(tm, dtype=jnp.float32)
    w_big = jnp.concatenate(
        [jnp.kron(eye_tm, w[:, :, t].astype(jnp.float32)) for t in range(3)],
        axis=1)                                              # (R, 3R)
    # Lane-shift operators with the conv zero padding built into column 0 / L-1.
    shift_m = jnp.eye(L, k=1, dtype=jnp.float32)             # (z@Sm)[:,l] = z[:,l-1]
    shift_p = jnp.eye(L, k=-1, dtype=jnp.float32)            # (z@Sp)[:,l] = z[:,l+1]

    z_flat = z0.astype(jnp.float32).reshape(M * N, L)
    unroll = True if n_steps <= 32 else 8
    kernel = _make_kernel(n_steps, h, IGST, R, L, unroll)

    out_flat = pl.pallas_call(
        kernel,
        out_shape=jax.ShapeDtypeStruct((M * N, L), jnp.float32),
        grid=(n_blocks,),
        in_specs=[
            pl.BlockSpec((R, 3 * R), lambda i: (0, 0)),      # shared weights
            pl.BlockSpec((L, L), lambda i: (0, 0)),          # shift_m
            pl.BlockSpec((L, L), lambda i: (0, 0)),          # shift_p
            pl.BlockSpec((R, L), lambda i: (i, 0)),          # per-block state
        ],
        out_specs=pl.BlockSpec((R, L), lambda i: (i, 0)),
        compiler_params=pltpu.CompilerParams(
            dimension_semantics=("parallel",),               # megacore / v7x 2-TC
            vmem_limit_bytes=32 * 1024 * 1024,               # tiny working set; safe on v7x's 64 MiB
        ),
    )(w_big, shift_m, shift_p, z_flat)
    return out_flat.reshape(M, N, L)


def _reference_forward(z0, w, t1_t0, tol=1e-3):
    """Pure-JAX reference, written to mirror the PyTorch code verbatim."""
    M, N, L = z0.shape
    n_steps = max(1, int(round(t1_t0 / tol)))
    h = t1_t0 / n_steps

    def f(z):
        zero = jnp.zeros((M, N, 1), z.dtype)
        zm = jnp.concatenate([zero, z[:, :, :-1]], axis=2)
        zp = jnp.concatenate([z[:, :, 1:], zero], axis=2)
        return (jnp.einsum("oc,mcl->mol", w[:, :, 0], zm)
                + jnp.einsum("oc,mcl->mol", w[:, :, 1], z)
                + jnp.einsum("oc,mcl->mol", w[:, :, 2], zp))

    def cal_boundry(u):
        m, n, l = u.shape
        left = jnp.broadcast_to(u[:, :, IGST:IGST + 1], (m, n, IGST))
        right = jnp.broadcast_to(u[:, :, l - IGST - 1:l - IGST], (m, n, IGST))
        return jnp.concatenate([left, u[:, :, IGST:l - IGST], right], axis=2)

    z = z0
    for _ in range(n_steps):
        k1 = cal_boundry(z + h * f(z))
        k2 = cal_boundry(0.75 * z + 0.25 * k1 + 0.25 * h * f(k1))
        z = cal_boundry(z / 3.0 + 2.0 * k2 / 3.0 + 2.0 * h * f(k2) / 3.0)
    return z


if __name__ == "__main__":
    # Small shapes: batch=4, channels=4, spatial=128 (lane-aligned, > 2*IGST).
    M, N, L = 4, 4, 128
    key = jax.random.PRNGKey(0)
    kz, kw = jax.random.split(key)

    z0 = jax.random.normal(kz, (M, N, L), dtype=jnp.float32)
    w = 0.05 * jax.random.normal(kw, (N, N, 3), dtype=jnp.float32)

    t1_t0 = 0.01   # with tol=1e-3 -> 10 RK3 steps inside the kernel
    out = neural_ode_forward(z0, w, t1_t0=t1_t0, tol=1e-3)
    out = jax.block_until_ready(out)

    assert out.shape == (M, N, L) and out.dtype == jnp.float32
    assert bool(jnp.all(jnp.isfinite(out)))
    ref = _reference_forward(z0, w, t1_t0, tol=1e-3)
    assert bool(jnp.allclose(out, ref, rtol=1e-3, atol=1e-5)), (
        float(jnp.max(jnp.abs(out - ref))))
    print("KERNEL_OK")
</pallas_src>

<mosaic_0001>
module attributes {stable_mosaic.version = 11 : i64} {
  func.func @kernel(%arg0: i32, %arg1: memref<8x24xf32, #tpu.memory_space<vmem>>, %arg2: memref<128x128xf32, #tpu.memory_space<vmem>>, %arg3: memref<128x128xf32, #tpu.memory_space<vmem>>, %arg4: memref<8x128xf32, #tpu.memory_space<vmem>>, %arg5: memref<8x128xf32, #tpu.memory_space<vmem>>) attributes {dimension_semantics = [#tpu.dimension_semantics<parallel>], iteration_bounds = array<i64: 2>, scalar_prefetch = 0 : i64, scratch_operands = 0 : i64, tpu.core_type = #tpu.core_type<tc>, window_params = [{pipeline_mode = #tpu.pipeline_mode<synchronous>, transform_indices = @transform_0, window_bounds = array<i64: 8, 24>}, {pipeline_mode = #tpu.pipeline_mode<synchronous>, transform_indices = @transform_1, window_bounds = array<i64: 128, 128>}, {pipeline_mode = #tpu.pipeline_mode<synchronous>, transform_indices = @transform_2, window_bounds = array<i64: 128, 128>}, {transform_indices = @transform_3, window_bounds = array<i64: 8, 128>}, {transform_indices = @transform_4, window_bounds = array<i64: 8, 128>}]} {
    %c0 = arith.constant 0 : index
    %c0_0 = arith.constant 0 : index
    %0 = vector.load %arg1[%c0, %c0_0] : memref<8x24xf32, #tpu.memory_space<vmem>>, vector<8x24xf32>
    %c0_1 = arith.constant 0 : index
    %c0_2 = arith.constant 0 : index
    %1 = vector.load %arg2[%c0_1, %c0_2] : memref<128x128xf32, #tpu.memory_space<vmem>>, vector<128x128xf32>
    %c0_3 = arith.constant 0 : index
    %c0_4 = arith.constant 0 : index
    %2 = vector.load %arg3[%c0_3, %c0_4] : memref<128x128xf32, #tpu.memory_space<vmem>>, vector<128x128xf32>
    %c0_5 = arith.constant 0 : index
    %c0_6 = arith.constant 0 : index
    %3 = vector.load %arg4[%c0_5, %c0_6] : memref<8x128xf32, #tpu.memory_space<vmem>>, vector<8x128xf32>
    %4 = tpu.iota {dimensions = array<i32: 1>} : vector<8x128xi32>
    %c10_i32 = arith.constant 10 : i32
    %5 = vector.broadcast %c10_i32 : i32 to vector<8x128xi32>
    %6 = arith.cmpi slt, %4, %5 : vector<8x128xi32>
    %c118_i32 = arith.constant 118 : i32
    %7 = vector.broadcast %c118_i32 : i32 to vector<8x128xi32>
    %8 = arith.cmpi sge, %4, %7 : vector<8x128xi32>
    %c0_i32 = arith.constant 0 : i32
    %cst = arith.constant dense<0.000000e+00> : vector<8x128xf32>
    %9 = tpu.matmul %3, %1, %cst {dimension_numbers = #tpu.dot_dimension_numbers<[1], [0], [0], [1], [0, 0, 1, 1], [], []>} : vector<8x128xf32>, vector<128x128xf32>, vector<8x128xf32> -> vector<8x128xf32>
    %cst_7 = arith.constant dense<0.000000e+00> : vector<8x128xf32>
    %10 = tpu.matmul %3, %2, %cst_7 {dimension_numbers = #tpu.dot_dimension_numbers<[1], [0], [0], [1], [0, 0, 1, 1], [], []>} : vector<8x128xf32>, vector<128x128xf32>, vector<8x128xf32> -> vector<8x128xf32>
    %11 = tpu.concatenate %9, %3, %10 in 0 : vector<8x128xf32>, vector<8x128xf32>, vector<8x128xf32> -> vector<24x128xf32>
    %cst_8 = arith.constant dense<0.000000e+00> : vector<8x128xf32>
    %12 = tpu.matmul %0, %11, %cst_8 {dimension_numbers = #tpu.dot_dimension_numbers<[1], [0], [0], [1], [0, 0, 1, 1], [], []>} : vector<8x24xf32>, vector<24x128xf32>, vector<8x128xf32> -> vector<8x128xf32>
    %cst_9 = arith.constant 1.000000e-03 : f32
    %13 = vector.broadcast %cst_9 : f32 to vector<8x128xf32>
    %14 = arith.mulf %13, %12 : vector<8x128xf32>
    %15 = arith.addf %3, %14 : vector<8x128xf32>
    %16 = vector.extract_strided_slice %15 {offsets = [0, 10], sizes = [8, 1], strides = [1, 1]} : vector<8x128xf32> to vector<8x1xf32>
    %17 = vector.extract_strided_slice %15 {offsets = [0, 117], sizes = [8, 1], strides = [1, 1]} : vector<8x128xf32> to vector<8x1xf32>
    %18 = vector.shape_cast %16 : vector<8x1xf32> to vector<8x1xf32>
    %19 = vector.broadcast %18 : vector<8x1xf32> to vector<8x128xf32>
    %20 = arith.select %6, %19, %15 : vector<8x128xi1>, vector<8x128xf32>
    %21 = vector.shape_cast %17 : vector<8x1xf32> to vector<8x1xf32>
    %22 = vector.broadcast %21 : vector<8x1xf32> to vector<8x128xf32>
    %23 = arith.select %8, %22, %20 : vector<8x128xi1>, vector<8x128xf32>
    %cst_10 = arith.constant 7.500000e-01 : f32
    %24 = vector.broadcast %cst_10 : f32 to vector<8x128xf32>
    %25 = arith.mulf %24, %3 : vector<8x128xf32>
    %cst_11 = arith.constant 2.500000e-01 : f32
    %26 = vector.broadcast %cst_11 : f32 to vector<8x128xf32>
    %27 = arith.mulf %26, %23 : vector<8x128xf32>
    %28 = arith.addf %25, %27 : vector<8x128xf32>
    %cst_12 = arith.constant dense<0.000000e+00> : vector<8x128xf32>
    %29 = tpu.matmul %23, %1, %cst_12 {dimension_numbers = #tpu.dot_dimension_numbers<[1], [0], [0], [1], [0, 0, 1, 1], [], []>} : vector<8x128xf32>, vector<128x128xf32>, vector<8x128xf32> -> vector<8x128xf32>
    %cst_13 = arith.constant dense<0.000000e+00> : vector<8x128xf32>
    %30 = tpu.matmul %23, %2, %cst_13 {dimension_numbers = #tpu.dot_dimension_numbers<[1], [0], [0], [1], [0, 0, 1, 1], [], []>} : vector<8x128xf32>, vector<128x128xf32>, vector<8x128xf32> -> vector<8x128xf32>
    %31 = tpu.concatenate %29, %23, %30 in 0 : vector<8x128xf32>, vector<8x128xf32>, vector<8x128xf32> -> vector<24x128xf32>
    %cst_14 = arith.constant dense<0.000000e+00> : vector<8x128xf32>
    %32 = tpu.matmul %0, %31, %cst_14 {dimension_numbers = #tpu.dot_dimension_numbers<[1], [0], [0], [1], [0, 0, 1, 1], [], []>} : vector<8x24xf32>, vector<24x128xf32>, vector<8x128xf32> -> vector<8x128xf32>
    %cst_15 = arith.constant 2.500000e-04 : f32
    %33 = vector.broadcast %cst_15 : f32 to vector<8x128xf32>
    %34 = arith.mulf %33, %32 : vector<8x128xf32>
    %35 = arith.addf %28, %34 : vector<8x128xf32>
    %36 = vector.extract_strided_slice %35 {offsets = [0, 10], sizes = [8, 1], strides = [1, 1]} : vector<8x128xf32> to vector<8x1xf32>
    %37 = vector.extract_strided_slice %35 {offsets = [0, 117], sizes = [8, 1], strides = [1, 1]} : vector<8x128xf32> to vector<8x1xf32>
    %38 = vector.shape_cast %36 : vector<8x1xf32> to vector<8x1xf32>
    %39 = vector.broadcast %38 : vector<8x1xf32> to vector<8x128xf32>
    %40 = arith.select %6, %39, %35 : vector<8x128xi1>, vector<8x128xf32>
    %41 = vector.shape_cast %37 : vector<8x1xf32> to vector<8x1xf32>
    %42 = vector.broadcast %41 : vector<8x1xf32> to vector<8x128xf32>
    %43 = arith.select %8, %42, %40 : vector<8x128xi1>, vector<8x128xf32>
    %cst_16 = arith.constant 3.000000e+00 : f32
    %44 = vector.broadcast %cst_16 : f32 to vector<8x128xf32>
    %45 = arith.divf %3, %44 : vector<8x128xf32>
    %cst_17 = arith.constant 2.000000e+00 : f32
    %46 = vector.broadcast %cst_17 : f32 to vector<8x128xf32>
    %47 = arith.mulf %46, %43 : vector<8x128xf32>
    %cst_18 = arith.constant 3.000000e+00 : f32
    %48 = vector.broadcast %cst_18 : f32 to vector<8x128xf32>
    %49 = arith.divf %47, %48 : vector<8x128xf32>
    %50 = arith.addf %45, %49 : vector<8x128xf32>
    %cst_19 = arith.constant dense<0.000000e+00> : vector<8x128xf32>
    %51 = tpu.matmul %43, %1, %cst_19 {dimension_numbers = #tpu.dot_dimension_numbers<[1], [0], [0], [1], [0, 0, 1, 1], [], []>} : vector<8x128xf32>, vector<128x128xf32>, vector<8x128xf32> -> vector<8x128xf32>
    %cst_20 = arith.constant dense<0.000000e+00> : vector<8x128xf32>
    %52 = tpu.matmul %43, %2, %cst_20 {dimension_numbers = #tpu.dot_dimension_numbers<[1], [0], [0], [1], [0, 0, 1, 1], [], []>} : vector<8x128xf32>, vector<128x128xf32>, vector<8x128xf32> -> vector<8x128xf32>
    %53 = tpu.concatenate %51, %43, %52 in 0 : vector<8x128xf32>, vector<8x128xf32>, vector<8x128xf32> -> vector<24x128xf32>
    %cst_21 = arith.constant dense<0.000000e+00> : vector<8x128xf32>
    %54 = tpu.matmul %0, %53, %cst_21 {dimension_numbers = #tpu.dot_dimension_numbers<[1], [0], [0], [1], [0, 0, 1, 1], [], []>} : vector<8x24xf32>, vector<24x128xf32>, vector<8x128xf32> -> vector<8x128xf32>
    %cst_22 = arith.constant 2.000000e-03 : f32
    %55 = vector.broadcast %cst_22 : f32 to vector<8x128xf32>
    %56 = arith.mulf %55, %54 : vector<8x128xf32>
    %cst_23 = arith.constant 3.000000e+00 : f32
    %57 = vector.broadcast %cst_23 : f32 to vector<8x128xf32>
    %58 = arith.divf %56, %57 : vector<8x128xf32>
    %59 = arith.addf %50, %58 : vector<8x128xf32>
    %60 = vector.extract_strided_slice %59 {offsets = [0, 10], sizes = [8, 1], strides = [1, 1]} : vector<8x128xf32> to vector<8x1xf32>
    %61 = vector.extract_strided_slice %59 {offsets = [0, 117], sizes = [8, 1], strides = [1, 1]} : vector<8x128xf32> to vector<8x1xf32>
    %62 = vector.shape_cast %60 : vector<8x1xf32> to vector<8x1xf32>
    %63 = vector.broadcast %62 : vector<8x1xf32> to vector<8x128xf32>
    %64 = arith.select %6, %63, %59 : vector<8x128xi1>, vector<8x128xf32>
    %65 = vector.shape_cast %61 : vector<8x1xf32> to vector<8x1xf32>
    %66 = vector.broadcast %65 : vector<8x1xf32> to vector<8x128xf32>
    %67 = arith.select %8, %66, %64 : vector<8x128xi1>, vector<8x128xf32>
    %c1_i32 = arith.constant 1 : i32
    %cst_24 = arith.constant dense<0.000000e+00> : vector<8x128xf32>
    %68 = tpu.matmul %67, %1, %cst_24 {dimension_numbers = #tpu.dot_dimension_numbers<[1], [0], [0], [1], [0, 0, 1, 1], [], []>} : vector<8x128xf32>, vector<128x128xf32>, vector<8x128xf32> -> vector<8x128xf32>
    %cst_25 = arith.constant dense<0.000000e+00> : vector<8x128xf32>
    %69 = tpu.matmul %67, %2, %cst_25 {dimension_numbers = #tpu.dot_dimension_numbers<[1], [0], [0], [1], [0, 0, 1, 1], [], []>} : vector<8x128xf32>, vector<128x128xf32>, vector<8x128xf32> -> vector<8x128xf32>
    %70 = tpu.concatenate %68, %67, %69 in 0 : vector<8x128xf32>, vector<8x128xf32>, vector<8x128xf32> -> vector<24x128xf32>
    %cst_26 = arith.constant dense<0.000000e+00> : vector<8x128xf32>
    %71 = tpu.matmul %0, %70, %cst_26 {dimension_numbers = #tpu.dot_dimension_numbers<[1], [0], [0], [1], [0, 0, 1, 1], [], []>} : vector<8x24xf32>, vector<24x128xf32>, vector<8x128xf32> -> vector<8x128xf32>
    %cst_27 = arith.constant 1.000000e-03 : f32
    %72 = vector.broadcast %cst_27 : f32 to vector<8x128xf32>
    %73 = arith.mulf %72, %71 : vector<8x128xf32>
    %74 = arith.addf %67, %73 : vector<8x128xf32>
    %75 = vector.extract_strided_slice %74 {offsets = [0, 10], sizes = [8, 1], strides = [1, 1]} : vector<8x128xf32> to vector<8x1xf32>
    %76 = vector.extract_strided_slice %74 {offsets = [0, 117], sizes = [8, 1], strides = [1, 1]} : vector<8x128xf32> to vector<8x1xf32>
    %77 = vector.shape_cast %75 : vector<8x1xf32> to vector<8x1xf32>
    %78 = vector.broadcast %77 : vector<8x1xf32> to vector<8x128xf32>
    %79 = arith.select %6, %78, %74 : vector<8x128xi1>, vector<8x128xf32>
    %80 = vector.shape_cast %76 : vector<8x1xf32> to vector<8x1xf32>
    %81 = vector.broadcast %80 : vector<8x1xf32> to vector<8x128xf32>
    %82 = arith.select %8, %81, %79 : vector<8x128xi1>, vector<8x128xf32>
    %cst_28 = arith.constant 7.500000e-01 : f32
    %83 = vector.broadcast %cst_28 : f32 to vector<8x128xf32>
    %84 = arith.mulf %83, %67 : vector<8x128xf32>
    %cst_29 = arith.constant 2.500000e-01 : f32
    %85 = vector.broadcast %cst_29 : f32 to vector<8x128xf32>
    %86 = arith.mulf %85, %82 : vector<8x128xf32>
    %87 = arith.addf %84, %86 : vector<8x128xf32>
    %cst_30 = arith.constant dense<0.000000e+00> : vector<8x128xf32>
    %88 = tpu.matmul %82, %1, %cst_30 {dimension_numbers = #tpu.dot_dimension_numbers<[1], [0], [0], [1], [0, 0, 1, 1], [], []>} : vector<8x128xf32>, vector<128x128xf32>, vector<8x128xf32> -> vector<8x128xf32>
    %cst_31 = arith.constant dense<0.000000e+00> : vector<8x128xf32>
    %89 = tpu.matmul %82, %2, %cst_31 {dimension_numbers = #tpu.dot_dimension_numbers<[1], [0], [0], [1], [0, 0, 1, 1], [], []>} : vector<8x128xf32>, vector<128x128xf32>, vector<8x128xf32> -> vector<8x128xf32>
    %90 = tpu.concatenate %88, %82, %89 in 0 : vector<8x128xf32>, vector<8x128xf32>, vector<8x128xf32> -> vector<24x128xf32>
    %cst_32 = arith.constant dense<0.000000e+00> : vector<8x128xf32>
    %91 = tpu.matmul %0, %90, %cst_32 {dimension_numbers = #tpu.dot_dimension_numbers<[1], [0], [0], [1], [0, 0, 1, 1], [], []>} : vector<8x24xf32>, vector<24x128xf32>, vector<8x128xf32> -> vector<8x128xf32>
    %cst_33 = arith.constant 2.500000e-04 : f32
    %92 = vector.broadcast %cst_33 : f32 to vector<8x128xf32>
    %93 = arith.mulf %92, %91 : vector<8x128xf32>
    %94 = arith.addf %87, %93 : vector<8x128xf32>
    %95 = vector.extract_strided_slice %94 {offsets = [0, 10], sizes = [8, 1], strides = [1, 1]} : vector<8x128xf32> to vector<8x1xf32>
    %96 = vector.extract_strided_slice %94 {offsets = [0, 117], sizes = [8, 1], strides = [1, 1]} : vector<8x128xf32> to vector<8x1xf32>
    %97 = vector.shape_cast %95 : vector<8x1xf32> to vector<8x1xf32>
    %98 = vector.broadcast %97 : vector<8x1xf32> to vector<8x128xf32>
    %99 = arith.select %6, %98, %94 : vector<8x128xi1>, vector<8x128xf32>
    %100 = vector.shape_cast %96 : vector<8x1xf32> to vector<8x1xf32>
    %101 = vector.broadcast %100 : vector<8x1xf32> to vector<8x128xf32>
    %102 = arith.select %8, %101, %99 : vector<8x128xi1>, vector<8x128xf32>
    %cst_34 = arith.constant 3.000000e+00 : f32
    %103 = vector.broadcast %cst_34 : f32 to vector<8x128xf32>
    %104 = arith.divf %67, %103 : vector<8x128xf32>
    %cst_35 = arith.constant 2.000000e+00 : f32
    %105 = vector.broadcast %cst_35 : f32 to vector<8x128xf32>
    %106 = arith.mulf %105, %102 : vector<8x128xf32>
    %cst_36 = arith.constant 3.000000e+00 : f32
    %107 = vector.broadcast %cst_36 : f32 to vector<8x128xf32>
    %108 = arith.divf %106, %107 : vector<8x128xf32>
    %109 = arith.addf %104, %108 : vector<8x128xf32>
    %cst_37 = arith.constant dense<0.000000e+00> : vector<8x128xf32>
    %110 = tpu.matmul %102, %1, %cst_37 {dimension_numbers = #tpu.dot_dimension_numbers<[1], [0], [0], [1], [0, 0, 1, 1], [], []>} : vector<8x128xf32>, vector<128x128xf32>, vector<8x128xf32> -> vector<8x128xf32>
    %cst_38 = arith.constant dense<0.000000e+00> : vector<8x128xf32>
    %111 = tpu.matmul %102, %2, %cst_38 {dimension_numbers = #tpu.dot_dimension_numbers<[1], [0], [0], [1], [0, 0, 1, 1], [], []>} : vector<8x128xf32>, vector<128x128xf32>, vector<8x128xf32> -> vector<8x128xf32>
    %112 = tpu.concatenate %110, %102, %111 in 0 : vector<8x128xf32>, vector<8x128xf32>, vector<8x128xf32> -> vector<24x128xf32>
    %cst_39 = arith.constant dense<0.000000e+00> : vector<8x128xf32>
    %113 = tpu.matmul %0, %112, %cst_39 {dimension_numbers = #tpu.dot_dimension_numbers<[1], [0], [0], [1], [0, 0, 1, 1], [], []>} : vector<8x24xf32>, vector<24x128xf32>, vector<8x128xf32> -> vector<8x128xf32>
    %cst_40 = arith.constant 2.000000e-03 : f32
    %114 = vector.broadcast %cst_40 : f32 to vector<8x128xf32>
    %115 = arith.mulf %114, %113 : vector<8x128xf32>
    %cst_41 = arith.constant 3.000000e+00 : f32
    %116 = vector.broadcast %cst_41 : f32 to vector<8x128xf32>
    %117 = arith.divf %115, %116 : vector<8x128xf32>
    %118 = arith.addf %109, %117 : vector<8x128xf32>
    %119 = vector.extract_strided_slice %118 {offsets = [0, 10], sizes = [8, 1], strides = [1, 1]} : vector<8x128xf32> to vector<8x1xf32>
    %120 = vector.extract_strided_slice %118 {offsets = [0, 117], sizes = [8, 1], strides = [1, 1]} : vector<8x128xf32> to vector<8x1xf32>
    %121 = vector.shape_cast %119 : vector<8x1xf32> to vector<8x1xf32>
    %122 = vector.broadcast %121 : vector<8x1xf32> to vector<8x128xf32>
    %123 = arith.select %6, %122, %118 : vector<8x128xi1>, vector<8x128xf32>
    %124 = vector.shape_cast %120 : vector<8x1xf32> to vector<8x1xf32>
    %125 = vector.broadcast %124 : vector<8x1xf32> to vector<8x128xf32>
    %126 = arith.select %8, %125, %123 : vector<8x128xi1>, vector<8x128xf32>
    %c2_i32 = arith.constant 2 : i32
    %cst_42 = arith.constant dense<0.000000e+00> : vector<8x128xf32>
    %127 = tpu.matmul %126, %1, %cst_42 {dimension_numbers = #tpu.dot_dimension_numbers<[1], [0], [0], [1], [0, 0, 1, 1], [], []>} : vector<8x128xf32>, vector<128x128xf32>, vector<8x128xf32> -> vector<8x128xf32>
    %cst_43 = arith.constant dense<0.000000e+00> : vector<8x128xf32>
    %128 = tpu.matmul %126, %2, %cst_43 {dimension_numbers = #tpu.dot_dimension_numbers<[1], [0], [0], [1], [0, 0, 1, 1], [], []>} : vector<8x128xf32>, vector<128x128xf32>, vector<8x128xf32> -> vector<8x128xf32>
    %129 = tpu.concatenate %127, %126, %128 in 0 : vector<8x128xf32>, vector<8x128xf32>, vector<8x128xf32> -> vector<24x128xf32>
    %cst_44 = arith.constant dense<0.000000e+00> : vector<8x128xf32>
    %130 = tpu.matmul %0, %129, %cst_44 {dimension_numbers = #tpu.dot_dimension_numbers<[1], [0], [0], [1], [0, 0, 1, 1], [], []>} : vector<8x24xf32>, vector<24x128xf32>, vector<8x128xf32> -> vector<8x128xf32>
    %cst_45 = arith.constant 1.000000e-03 : f32
    %131 = vector.broadcast %cst_45 : f32 to vector<8x128xf32>
    %132 = arith.mulf %131, %130 : vector<8x128xf32>
    %133 = arith.addf %126, %132 : vector<8x128xf32>
    %134 = vector.extract_strided_slice %133 {offsets = [0, 10], sizes = [8, 1], strides = [1, 1]} : vector<8x128xf32> to vector<8x1xf32>
    %135 = vector.extract_strided_slice %133 {offsets = [0, 117], sizes = [8, 1], strides = [1, 1]} : vector<8x128xf32> to vector<8x1xf32>
    %136 = vector.shape_cast %134 : vector<8x1xf32> to vector<8x1xf32>
    %137 = vector.broadcast %136 : vector<8x1xf32> to vector<8x128xf32>
    %138 = arith.select %6, %137, %133 : vector<8x128xi1>, vector<8x128xf32>
    %139 = vector.shape_cast %135 : vector<8x1xf32> to vector<8x1xf32>
    %140 = vector.broadcast %139 : vector<8x1xf32> to vector<8x128xf32>
    %141 = arith.select %8, %140, %138 : vector<8x128xi1>, vector<8x128xf32>
    %cst_46 = arith.constant 7.500000e-01 : f32
    %142 = vector.broadcast %cst_46 : f32 to vector<8x128xf32>
    %143 = arith.mulf %142, %126 : vector<8x128xf32>
    %cst_47 = arith.constant 2.500000e-01 : f32
    %144 = vector.broadcast %cst_47 : f32 to vector<8x128xf32>
    %145 = arith.mulf %144, %141 : vector<8x128xf32>
    %146 = arith.addf %143, %145 : vector<8x128xf32>
    %cst_48 = arith.constant dense<0.000000e+00> : vector<8x128xf32>
    %147 = tpu.matmul %141, %1, %cst_48 {dimension_numbers = #tpu.dot_dimension_numbers<[1], [0], [0], [1], [0, 0, 1, 1], [], []>} : vector<8x128xf32>, vector<128x128xf32>, vector<8x128xf32> -> vector<8x128xf32>
    %cst_49 = arith.constant dense<0.000000e+00> : vector<8x128xf32>
    %148 = tpu.matmul %141, %2, %cst_49 {dimension_numbers = #tpu.dot_dimension_numbers<[1], [0], [0], [1], [0, 0, 1, 1], [], []>} : vector<8x128xf32>, vector<128x128xf32>, vector<8x128xf32> -> vector<8x128xf32>
    %149 = tpu.concatenate %147, %141, %148 in 0 : vector<8x128xf32>, vector<8x128xf32>, vector<8x128xf32> -> vector<24x128xf32>
    %cst_50 = arith.constant dense<0.000000e+00> : vector<8x128xf32>
    %150 = tpu.matmul %0, %149, %cst_50 {dimension_numbers = #tpu.dot_dimension_numbers<[1], [0], [0], [1], [0, 0, 1, 1], [], []>} : vector<8x24xf32>, vector<24x128xf32>, vector<8x128xf32> -> vector<8x128xf32>
    %cst_51 = arith.constant 2.500000e-04 : f32
    %151 = vector.broadcast %cst_51 : f32 to vector<8x128xf32>
    %152 = arith.mulf %151, %150 : vector<8x128xf32>
    %153 = arith.addf %146, %152 : vector<8x128xf32>
    %154 = vector.extract_strided_slice %153 {offsets = [0, 10], sizes = [8, 1], strides = [1, 1]} : vector<8x128xf32> to vector<8x1xf32>
    %155 = vector.extract_strided_slice %153 {offsets = [0, 117], sizes = [8, 1], strides = [1, 1]} : vector<8x128xf32> to vector<8x1xf32>
    %156 = vector.shape_cast %154 : vector<8x1xf32> to vector<8x1xf32>
    %157 = vector.broadcast %156 : vector<8x1xf32> to vector<8x128xf32>
    %158 = arith.select %6, %157, %153 : vector<8x128xi1>, vector<8x128xf32>
    %159 = vector.shape_cast %155 : vector<8x1xf32> to vector<8x1xf32>
    %160 = vector.broadcast %159 : vector<8x1xf32> to vector<8x128xf32>
    %161 = arith.select %8, %160, %158 : vector<8x128xi1>, vector<8x128xf32>
    %cst_52 = arith.constant 3.000000e+00 : f32
    %162 = vector.broadcast %cst_52 : f32 to vector<8x128xf32>
    %163 = arith.divf %126, %162 : vector<8x128xf32>
    %cst_53 = arith.constant 2.000000e+00 : f32
    %164 = vector.broadcast %cst_53 : f32 to vector<8x128xf32>
    %165 = arith.mulf %164, %161 : vector<8x128xf32>
    %cst_54 = arith.constant 3.000000e+00 : f32
    %166 = vector.broadcast %cst_54 : f32 to vector<8x128xf32>
    %167 = arith.divf %165, %166 : vector<8x128xf32>
    %168 = arith.addf %163, %167 : vector<8x128xf32>
    %cst_55 = arith.constant dense<0.000000e+00> : vector<8x128xf32>
    %169 = tpu.matmul %161, %1, %cst_55 {dimension_numbers = #tpu.dot_dimension_numbers<[1], [0], [0], [1], [0, 0, 1, 1], [], []>} : vector<8x128xf32>, vector<128x128xf32>, vector<8x128xf32> -> vector<8x128xf32>
    %cst_56 = arith.constant dense<0.000000e+00> : vector<8x128xf32>
    %170 = tpu.matmul %161, %2, %cst_56 {dimension_numbers = #tpu.dot_dimension_numbers<[1], [0], [0], [1], [0, 0, 1, 1], [], []>} : vector<8x128xf32>, vector<128x128xf32>, vector<8x128xf32> -> vector<8x128xf32>
    %171 = tpu.concatenate %169, %161, %170 in 0 : vector<8x128xf32>, vector<8x128xf32>, vector<8x128xf32> -> vector<24x128xf32>
    %cst_57 = arith.constant dense<0.000000e+00> : vector<8x128xf32>
    %172 = tpu.matmul %0, %171, %cst_57 {dimension_numbers = #tpu.dot_dimension_numbers<[1], [0], [0], [1], [0, 0, 1, 1], [], []>} : vector<8x24xf32>, vector<24x128xf32>, vector<8x128xf32> -> vector<8x128xf32>
    %cst_58 = arith.constant 2.000000e-03 : f32
    %173 = vector.broadcast %cst_58 : f32 to vector<8x128xf32>
    %174 = arith.mulf %173, %172 : vector<8x128xf32>
    %cst_59 = arith.constant 3.000000e+00 : f32
    %175 = vector.broadcast %cst_59 : f32 to vector<8x128xf32>
    %176 = arith.divf %174, %175 : vector<8x128xf32>
    %177 = arith.addf %168, %176 : vector<8x128xf32>
    %178 = vector.extract_strided_slice %177 {offsets = [0, 10], sizes = [8, 1], strides = [1, 1]} : vector<8x128xf32> to vector<8x1xf32>
    %179 = vector.extract_strided_slice %177 {offsets = [0, 117], sizes = [8, 1], strides = [1, 1]} : vector<8x128xf32> to vector<8x1xf32>
    %180 = vector.shape_cast %178 : vector<8x1xf32> to vector<8x1xf32>
    %181 = vector.broadcast %180 : vector<8x1xf32> to vector<8x128xf32>
    %182 = arith.select %6, %181, %177 : vector<8x128xi1>, vector<8x128xf32>
    %183 = vector.shape_cast %179 : vector<8x1xf32> to vector<8x1xf32>
    %184 = vector.broadcast %183 : vector<8x1xf32> to vector<8x128xf32>
    %185 = arith.select %8, %184, %182 : vector<8x128xi1>, vector<8x128xf32>
    %c3_i32 = arith.constant 3 : i32
    %cst_60 = arith.constant dense<0.000000e+00> : vector<8x128xf32>
    %186 = tpu.matmul %185, %1, %cst_60 {dimension_numbers = #tpu.dot_dimension_numbers<[1], [0], [0], [1], [0, 0, 1, 1], [], []>} : vector<8x128xf32>, vector<128x128xf32>, vector<8x128xf32> -> vector<8x128xf32>
    %cst_61 = arith.constant dense<0.000000e+00> : vector<8x128xf32>
    %187 = tpu.matmul %185, %2, %cst_61 {dimension_numbers = #tpu.dot_dimension_numbers<[1], [0], [0], [1], [0, 0, 1, 1], [], []>} : vector<8x128xf32>, vector<128x128xf32>, vector<8x128xf32> -> vector<8x128xf32>
    %188 = tpu.concatenate %186, %185, %187 in 0 : vector<8x128xf32>, vector<8x128xf32>, vector<8x128xf32> -> vector<24x128xf32>
    %cst_62 = arith.constant dense<0.000000e+00> : vector<8x128xf32>
    %189 = tpu.matmul %0, %188, %cst_62 {dimension_numbers = #tpu.dot_dimension_numbers<[1], [0], [0], [1], [0, 0, 1, 1], [], []>} : vector<8x24xf32>, vector<24x128xf32>, vector<8x128xf32> -> vector<8x128xf32>
    %cst_63 = arith.constant 1.000000e-03 : f32
    %190 = vector.broadcast %cst_63 : f32 to vector<8x128xf32>
    %191 = arith.mulf %190, %189 : vector<8x128xf32>
    %192 = arith.addf %185, %191 : vector<8x128xf32>
    %193 = vector.extract_strided_slice %192 {offsets = [0, 10], sizes = [8, 1], strides = [1, 1]} : vector<8x128xf32> to vector<8x1xf32>
    %194 = vector.extract_strided_slice %192 {offsets = [0, 117], sizes = [8, 1], strides = [1, 1]} : vector<8x128xf32> to vector<8x1xf32>
    %195 = vector.shape_cast %193 : vector<8x1xf32> to vector<8x1xf32>
    %196 = vector.broadcast %195 : vector<8x1xf32> to vector<8x128xf32>
    %197 = arith.select %6, %196, %192 : vector<8x128xi1>, vector<8x128xf32>
    %198 = vector.shape_cast %194 : vector<8x1xf32> to vector<8x1xf32>
    %199 = vector.broadcast %198 : vector<8x1xf32> to vector<8x128xf32>
    %200 = arith.select %8, %199, %197 : vector<8x128xi1>, vector<8x128xf32>
    %cst_64 = arith.constant 7.500000e-01 : f32
    %201 = vector.broadcast %cst_64 : f32 to vector<8x128xf32>
    %202 = arith.mulf %201, %185 : vector<8x128xf32>
    %cst_65 = arith.constant 2.500000e-01 : f32
    %203 = vector.broadcast %cst_65 : f32 to vector<8x128xf32>
    %204 = arith.mulf %203, %200 : vector<8x128xf32>
    %205 = arith.addf %202, %204 : vector<8x128xf32>
    %cst_66 = arith.constant dense<0.000000e+00> : vector<8x128xf32>
    %206 = tpu.matmul %200, %1, %cst_66 {dimension_numbers = #tpu.dot_dimension_numbers<[1], [0], [0], [1], [0, 0, 1, 1], [], []>} : vector<8x128xf32>, vector<128x128xf32>, vector<8x128xf32> -> vector<8x128xf32>
    %cst_67 = arith.constant dense<0.000000e+00> : vector<8x128xf32>
    %207 = tpu.matmul %200, %2, %cst_67 {dimension_numbers = #tpu.dot_dimension_numbers<[1], [0], [0], [1], [0, 0, 1, 1], [], []>} : vector<8x128xf32>, vector<128x128xf32>, vector<8x128xf32> -> vector<8x128xf32>
    %208 = tpu.concatenate %206, %200, %207 in 0 : vector<8x128xf32>, vector<8x128xf32>, vector<8x128xf32> -> vector<24x128xf32>
    %cst_68 = arith.constant dense<0.000000e+00> : vector<8x128xf32>
    %209 = tpu.matmul %0, %208, %cst_68 {dimension_numbers = #tpu.dot_dimension_numbers<[1], [0], [0], [1], [0, 0, 1, 1], [], []>} : vector<8x24xf32>, vector<24x128xf32>, vector<8x128xf32> -> vector<8x128xf32>
    %cst_69 = arith.constant 2.500000e-04 : f32
    %210 = vector.broadcast %cst_69 : f32 to vector<8x128xf32>
    %211 = arith.mulf %210, %209 : vector<8x128xf32>
    %212 = arith.addf %205, %211 : vector<8x128xf32>
    %213 = vector.extract_strided_slice %212 {offsets = [0, 10], sizes = [8, 1], strides = [1, 1]} : vector<8x128xf32> to vector<8x1xf32>
    %214 = vector.extract_strided_slice %212 {offsets = [0, 117], sizes = [8, 1], strides = [1, 1]} : vector<8x128xf32> to vector<8x1xf32>
    %215 = vector.shape_cast %213 : vector<8x1xf32> to vector<8x1xf32>
    %216 = vector.broadcast %215 : vector<8x1xf32> to vector<8x128xf32>
    %217 = arith.select %6, %216, %212 : vector<8x128xi1>, vector<8x128xf32>
    %218 = vector.shape_cast %214 : vector<8x1xf32> to vector<8x1xf32>
    %219 = vector.broadcast %218 : vector<8x1xf32> to vector<8x128xf32>
    %220 = arith.select %8, %219, %217 : vector<8x128xi1>, vector<8x128xf32>
    %cst_70 = arith.constant 3.000000e+00 : f32
    %221 = vector.broadcast %cst_70 : f32 to vector<8x128xf32>
    %222 = arith.divf %185, %221 : vector<8x128xf32>
    %cst_71 = arith.constant 2.000000e+00 : f32
    %223 = vector.broadcast %cst_71 : f32 to vector<8x128xf32>
    %224 = arith.mulf %223, %220 : vector<8x128xf32>
    %cst_72 = arith.constant 3.000000e+00 : f32
    %225 = vector.broadcast %cst_72 : f32 to vector<8x128xf32>
    %226 = arith.divf %224, %225 : vector<8x128xf32>
    %227 = arith.addf %222, %226 : vector<8x128xf32>
    %cst_73 = arith.constant dense<0.000000e+00> : vector<8x128xf32>
    %228 = tpu.matmul %220, %1, %cst_73 {dimension_numbers = #tpu.dot_dimension_numbers<[1], [0], [0], [1], [0, 0, 1, 1], [], []>} : vector<8x128xf32>, vector<128x128xf32>, vector<8x128xf32> -> vector<8x128xf32>
    %cst_74 = arith.constant dense<0.000000e+00> : vector<8x128xf32>
    %229 = tpu.matmul %220, %2, %cst_74 {dimension_numbers = #tpu.dot_dimension_numbers<[1], [0], [0], [1], [0, 0, 1, 1], [], []>} : vector<8x128xf32>, vector<128x128xf32>, vector<8x128xf32> -> vector<8x128xf32>
    %230 = tpu.concatenate %228, %220, %229 in 0 : vector<8x128xf32>, vector<8x128xf32>, vector<8x128xf32> -> vector<24x128xf32>
    %cst_75 = arith.constant dense<0.000000e+00> : vector<8x128xf32>
    %231 = tpu.matmul %0, %230, %cst_75 {dimension_numbers = #tpu.dot_dimension_numbers<[1], [0], [0], [1], [0, 0, 1, 1], [], []>} : vector<8x24xf32>, vector<24x128xf32>, vector<8x128xf32> -> vector<8x128xf32>
    %cst_76 = arith.constant 2.000000e-03 : f32
    %232 = vector.broadcast %cst_76 : f32 to vector<8x128xf32>
    %233 = arith.mulf %232, %231 : vector<8x128xf32>
    %cst_77 = arith.constant 3.000000e+00 : f32
    %234 = vector.broadcast %cst_77 : f32 to vector<8x128xf32>
    %235 = arith.divf %233, %234 : vector<8x128xf32>
    %236 = arith.addf %227, %235 : vector<8x128xf32>
    %237 = vector.extract_strided_slice %236 {offsets = [0, 10], sizes = [8, 1], strides = [1, 1]} : vector<8x128xf32> to vector<8x1xf32>
    %238 = vector.extract_strided_slice %236 {offsets = [0, 117], sizes = [8, 1], strides = [1, 1]} : vector<8x128xf32> to vector<8x1xf32>
    %239 = vector.shape_cast %237 : vector<8x1xf32> to vector<8x1xf32>
    %240 = vector.broadcast %239 : vector<8x1xf32> to vector<8x128xf32>
    %241 = arith.select %6, %240, %236 : vector<8x128xi1>, vector<8x128xf32>
    %242 = vector.shape_cast %238 : vector<8x1xf32> to vector<8x1xf32>
    %243 = vector.broadcast %242 : vector<8x1xf32> to vector<8x128xf32>
    %244 = arith.select %8, %243, %241 : vector<8x128xi1>, vector<8x128xf32>
    %c4_i32 = arith.constant 4 : i32
    %cst_78 = arith.constant dense<0.000000e+00> : vector<8x128xf32>
    %245 = tpu.matmul %244, %1, %cst_78 {dimension_numbers = #tpu.dot_dimension_numbers<[1], [0], [0], [1], [0, 0, 1, 1], [], []>} : vector<8x128xf32>, vector<128x128xf32>, vector<8x128xf32> -> vector<8x128xf32>
    %cst_79 = arith.constant dense<0.000000e+00> : vector<8x128xf32>
    %246 = tpu.matmul %244, %2, %cst_79 {dimension_numbers = #tpu.dot_dimension_numbers<[1], [0], [0], [1], [0, 0, 1, 1], [], []>} : vector<8x128xf32>, vector<128x128xf32>, vector<8x128xf32> -> vector<8x128xf32>
    %247 = tpu.concatenate %245, %244, %246 in 0 : vector<8x128xf32>, vector<8x128xf32>, vector<8x128xf32> -> vector<24x128xf32>
    %cst_80 = arith.constant dense<0.000000e+00> : vector<8x128xf32>
    %248 = tpu.matmul %0, %247, %cst_80 {dimension_numbers = #tpu.dot_dimension_numbers<[1], [0], [0], [1], [0, 0, 1, 1], [], []>} : vector<8x24xf32>, vector<24x128xf32>, vector<8x128xf32> -> vector<8x128xf32>
    %cst_81 = arith.constant 1.000000e-03 : f32
    %249 = vector.broadcast %cst_81 : f32 to vector<8x128xf32>
    %250 = arith.mulf %249, %248 : vector<8x128xf32>
    %251 = arith.addf %244, %250 : vector<8x128xf32>
    %252 = vector.extract_strided_slice %251 {offsets = [0, 10], sizes = [8, 1], strides = [1, 1]} : vector<8x128xf32> to vector<8x1xf32>
    %253 = vector.extract_strided_slice %251 {offsets = [0, 117], sizes = [8, 1], strides = [1, 1]} : vector<8x128xf32> to vector<8x1xf32>
    %254 = vector.shape_cast %252 : vector<8x1xf32> to vector<8x1xf32>
    %255 = vector.broadcast %254 : vector<8x1xf32> to vector<8x128xf32>
    %256 = arith.select %6, %255, %251 : vector<8x128xi1>, vector<8x128xf32>
    %257 = vector.shape_cast %253 : vector<8x1xf32> to vector<8x1xf32>
    %258 = vector.broadcast %257 : vector<8x1xf32> to vector<8x128xf32>
    %259 = arith.select %8, %258, %256 : vector<8x128xi1>, vector<8x128xf32>
    %cst_82 = arith.constant 7.500000e-01 : f32
    %260 = vector.broadcast %cst_82 : f32 to vector<8x128xf32>
    %261 = arith.mulf %260, %244 : vector<8x128xf32>
    %cst_83 = arith.constant 2.500000e-01 : f32
    %262 = vector.broadcast %cst_83 : f32 to vector<8x128xf32>
    %263 = arith.mulf %262, %259 : vector<8x128xf32>
    %264 = arith.addf %261, %263 : vector<8x128xf32>
    %cst_84 = arith.constant dense<0.000000e+00> : vector<8x128xf32>
    %265 = tpu.matmul %259, %1, %cst_84 {dimension_numbers = #tpu.dot_dimension_numbers<[1], [0], [0], [1], [0, 0, 1, 1], [], []>} : vector<8x128xf32>, vector<128x128xf32>, vector<8x128xf32> -> vector<8x128xf32>
    %cst_85 = arith.constant dense<0.000000e+00> : vector<8x128xf32>
    %266 = tpu.matmul %259, %2, %cst_85 {dimension_numbers = #tpu.dot_dimension_numbers<[1], [0], [0], [1], [0, 0, 1, 1], [], []>} : vector<8x128xf32>, vector<128x128xf32>, vector<8x128xf32> -> vector<8x128xf32>
    %267 = tpu.concatenate %265, %259, %266 in 0 : vector<8x128xf32>, vector<8x128xf32>, vector<8x128xf32> -> vector<24x128xf32>
    %cst_86 = arith.constant dense<0.000000e+00> : vector<8x128xf32>
    %268 = tpu.matmul %0, %267, %cst_86 {dimension_numbers = #tpu.dot_dimension_numbers<[1], [0], [0], [1], [0, 0, 1, 1], [], []>} : vector<8x24xf32>, vector<24x128xf32>, vector<8x128xf32> -> vector<8x128xf32>
    %cst_87 = arith.constant 2.500000e-04 : f32
    %269 = vector.broadcast %cst_87 : f32 to vector<8x128xf32>
    %270 = arith.mulf %269, %268 : vector<8x128xf32>
    %271 = arith.addf %264, %270 : vector<8x128xf32>
    %272 = vector.extract_strided_slice %271 {offsets = [0, 10], sizes = [8, 1], strides = [1, 1]} : vector<8x128xf32> to vector<8x1xf32>
    %273 = vector.extract_strided_slice %271 {offsets = [0, 117], sizes = [8, 1], strides = [1, 1]} : vector<8x128xf32> to vector<8x1xf32>
    %274 = vector.shape_cast %272 : vector<8x1xf32> to vector<8x1xf32>
    %275 = vector.broadcast %274 : vector<8x1xf32> to vector<8x128xf32>
    %276 = arith.select %6, %275, %271 : vector<8x128xi1>, vector<8x128xf32>
    %277 = vector.shape_cast %273 : vector<8x1xf32> to vector<8x1xf32>
    %278 = vector.broadcast %277 : vector<8x1xf32> to vector<8x128xf32>
    %279 = arith.select %8, %278, %276 : vector<8x128xi1>, vector<8x128xf32>
    %cst_88 = arith.constant 3.000000e+00 : f32
    %280 = vector.broadcast %cst_88 : f32 to vector<8x128xf32>
    %281 = arith.divf %244, %280 : vector<8x128xf32>
    %cst_89 = arith.constant 2.000000e+00 : f32
    %282 = vector.broadcast %cst_89 : f32 to vector<8x128xf32>
    %283 = arith.mulf %282, %279 : vector<8x128xf32>
    %cst_90 = arith.constant 3.000000e+00 : f32
    %284 = vector.broadcast %cst_90 : f32 to vector<8x128xf32>
    %285 = arith.divf %283, %284 : vector<8x128xf32>
    %286 = arith.addf %281, %285 : vector<8x128xf32>
    %cst_91 = arith.constant dense<0.000000e+00> : vector<8x128xf32>
    %287 = tpu.matmul %279, %1, %cst_91 {dimension_numbers = #tpu.dot_dimension_numbers<[1], [0], [0], [1], [0, 0, 1, 1], [], []>} : vector<8x128xf32>, vector<128x128xf32>, vector<8x128xf32> -> vector<8x128xf32>
    %cst_92 = arith.constant dense<0.000000e+00> : vector<8x128xf32>
    %288 = tpu.matmul %279, %2, %cst_92 {dimension_numbers = #tpu.dot_dimension_numbers<[1], [0], [0], [1], [0, 0, 1, 1], [], []>} : vector<8x128xf32>, vector<128x128xf32>, vector<8x128xf32> -> vector<8x128xf32>
    %289 = tpu.concatenate %287, %279, %288 in 0 : vector<8x128xf32>, vector<8x128xf32>, vector<8x128xf32> -> vector<24x128xf32>
    %cst_93 = arith.constant dense<0.000000e+00> : vector<8x128xf32>
    %290 = tpu.matmul %0, %289, %cst_93 {dimension_numbers = #tpu.dot_dimension_numbers<[1], [0], [0], [1], [0, 0, 1, 1], [], []>} : vector<8x24xf32>, vector<24x128xf32>, vector<8x128xf32> -> vector<8x128xf32>
    %cst_94 = arith.constant 2.000000e-03 : f32
    %291 = vector.broadcast %cst_94 : f32 to vector<8x128xf32>
    %292 = arith.mulf %291, %290 : vector<8x128xf32>
    %cst_95 = arith.constant 3.000000e+00 : f32
    %293 = vector.broadcast %cst_95 : f32 to vector<8x128xf32>
    %294 = arith.divf %292, %293 : vector<8x128xf32>
    %295 = arith.addf %286, %294 : vector<8x128xf32>
    %296 = vector.extract_strided_slice %295 {offsets = [0, 10], sizes = [8, 1], strides = [1, 1]} : vector<8x128xf32> to vector<8x1xf32>
    %297 = vector.extract_strided_slice %295 {offsets = [0, 117], sizes = [8, 1], strides = [1, 1]} : vector<8x128xf32> to vector<8x1xf32>
    %298 = vector.shape_cast %296 : vector<8x1xf32> to vector<8x1xf32>
    %299 = vector.broadcast %298 : vector<8x1xf32> to vector<8x128xf32>
    %300 = arith.select %6, %299, %295 : vector<8x128xi1>, vector<8x128xf32>
    %301 = vector.shape_cast %297 : vector<8x1xf32> to vector<8x1xf32>
    %302 = vector.broadcast %301 : vector<8x1xf32> to vector<8x128xf32>
    %303 = arith.select %8, %302, %300 : vector<8x128xi1>, vector<8x128xf32>
    %c5_i32 = arith.constant 5 : i32
    %cst_96 = arith.constant dense<0.000000e+00> : vector<8x128xf32>
    %304 = tpu.matmul %303, %1, %cst_96 {dimension_numbers = #tpu.dot_dimension_numbers<[1], [0], [0], [1], [0, 0, 1, 1], [], []>} : vector<8x128xf32>, vector<128x128xf32>, vector<8x128xf32> -> vector<8x128xf32>
    %cst_97 = arith.constant dense<0.000000e+00> : vector<8x128xf32>
    %305 = tpu.matmul %303, %2, %cst_97 {dimension_numbers = #tpu.dot_dimension_numbers<[1], [0], [0], [1], [0, 0, 1, 1], [], []>} : vector<8x128xf32>, vector<128x128xf32>, vector<8x128xf32> -> vector<8x128xf32>
    %306 = tpu.concatenate %304, %303, %305 in 0 : vector<8x128xf32>, vector<8x128xf32>, vector<8x128xf32> -> vector<24x128xf32>
    %cst_98 = arith.constant dense<0.000000e+00> : vector<8x128xf32>
    %307 = tpu.matmul %0, %306, %cst_98 {dimension_numbers = #tpu.dot_dimension_numbers<[1], [0], [0], [1], [0, 0, 1, 1], [], []>} : vector<8x24xf32>, vector<24x128xf32>, vector<8x128xf32> -> vector<8x128xf32>
    %cst_99 = arith.constant 1.000000e-03 : f32
    %308 = vector.broadcast %cst_99 : f32 to vector<8x128xf32>
    %309 = arith.mulf %308, %307 : vector<8x128xf32>
    %310 = arith.addf %303, %309 : vector<8x128xf32>
    %311 = vector.extract_strided_slice %310 {offsets = [0, 10], sizes = [8, 1], strides = [1, 1]} : vector<8x128xf32> to vector<8x1xf32>
    %312 = vector.extract_strided_slice %310 {offsets = [0, 117], sizes = [8, 1], strides = [1, 1]} : vector<8x128xf32> to vector<8x1xf32>
    %313 = vector.shape_cast %311 : vector<8x1xf32> to vector<8x1xf32>
    %314 = vector.broadcast %313 : vector<8x1xf32> to vector<8x128xf32>
    %315 = arith.select %6, %314, %310 : vector<8x128xi1>, vector<8x128xf32>
    %316 = vector.shape_cast %312 : vector<8x1xf32> to vector<8x1xf32>
    %317 = vector.broadcast %316 : vector<8x1xf32> to vector<8x128xf32>
    %318 = arith.select %8, %317, %315 : vector<8x128xi1>, vector<8x128xf32>
    %cst_100 = arith.constant 7.500000e-01 : f32
    %319 = vector.broadcast %cst_100 : f32 to vector<8x128xf32>
    %320 = arith.mulf %319, %303 : vector<8x128xf32>
    %cst_101 = arith.constant 2.500000e-01 : f32
    %321 = vector.broadcast %cst_101 : f32 to vector<8x128xf32>
    %322 = arith.mulf %321, %318 : vector<8x128xf32>
    %323 = arith.addf %320, %322 : vector<8x128xf32>
    %cst_102 = arith.constant dense<0.000000e+00> : vector<8x128xf32>
    %324 = tpu.matmul %318, %1, %cst_102 {dimension_numbers = #tpu.dot_dimension_numbers<[1], [0], [0], [1], [0, 0, 1, 1], [], []>} : vector<8x128xf32>, vector<128x128xf32>, vector<8x128xf32> -> vector<8x128xf32>
    %cst_103 = arith.constant dense<0.000000e+00> : vector<8x128xf32>
    %325 = tpu.matmul %318, %2, %cst_103 {dimension_numbers = #tpu.dot_dimension_numbers<[1], [0], [0], [1], [0, 0, 1, 1], [], []>} : vector<8x128xf32>, vector<128x128xf32>, vector<8x128xf32> -> vector<8x128xf32>
    %326 = tpu.concatenate %324, %318, %325 in 0 : vector<8x128xf32>, vector<8x128xf32>, vector<8x128xf32> -> vector<24x128xf32>
    %cst_104 = arith.constant dense<0.000000e+00> : vector<8x128xf32>
    %327 = tpu.matmul %0, %326, %cst_104 {dimension_numbers = #tpu.dot_dimension_numbers<[1], [0], [0], [1], [0, 0, 1, 1], [], []>} : vector<8x24xf32>, vector<24x128xf32>, vector<8x128xf32> -> vector<8x128xf32>
    %cst_105 = arith.constant 2.500000e-04 : f32
    %328 = vector.broadcast %cst_105 : f32 to vector<8x128xf32>
    %329 = arith.mulf %328, %327 : vector<8x128xf32>
    %330 = arith.addf %323, %329 : vector<8x128xf32>
    %331 = vector.extract_strided_slice %330 {offsets = [0, 10], sizes = [8, 1], strides = [1, 1]} : vector<8x128xf32> to vector<8x1xf32>
    %332 = vector.extract_strided_slice %330 {offsets = [0, 117], sizes = [8, 1], strides = [1, 1]} : vector<8x128xf32> to vector<8x1xf32>
    %333 = vector.shape_cast %331 : vector<8x1xf32> to vector<8x1xf32>
    %334 = vector.broadcast %333 : vector<8x1xf32> to vector<8x128xf32>
    %335 = arith.select %6, %334, %330 : vector<8x128xi1>, vector<8x128xf32>
    %336 = vector.shape_cast %332 : vector<8x1xf32> to vector<8x1xf32>
    %337 = vector.broadcast %336 : vector<8x1xf32> to vector<8x128xf32>
    %338 = arith.select %8, %337, %335 : vector<8x128xi1>, vector<8x128xf32>
    %cst_106 = arith.constant 3.000000e+00 : f32
    %339 = vector.broadcast %cst_106 : f32 to vector<8x128xf32>
    %340 = arith.divf %303, %339 : vector<8x128xf32>
    %cst_107 = arith.constant 2.000000e+00 : f32
    %341 = vector.broadcast %cst_107 : f32 to vector<8x128xf32>
    %342 = arith.mulf %341, %338 : vector<8x128xf32>
    %cst_108 = arith.constant 3.000000e+00 : f32
    %343 = vector.broadcast %cst_108 : f32 to vector<8x128xf32>
    %344 = arith.divf %342, %343 : vector<8x128xf32>
    %345 = arith.addf %340, %344 : vector<8x128xf32>
    %cst_109 = arith.constant dense<0.000000e+00> : vector<8x128xf32>
    %346 = tpu.matmul %338, %1, %cst_109 {dimension_numbers = #tpu.dot_dimension_numbers<[1], [0], [0], [1], [0, 0, 1, 1], [], []>} : vector<8x128xf32>, vector<128x128xf32>, vector<8x128xf32> -> vector<8x128xf32>
    %cst_110 = arith.constant dense<0.000000e+00> : vector<8x128xf32>
    %347 = tpu.matmul %338, %2, %cst_110 {dimension_numbers = #tpu.dot_dimension_numbers<[1], [0], [0], [1], [0, 0, 1, 1], [], []>} : vector<8x128xf32>, vector<128x128xf32>, vector<8x128xf32> -> vector<8x128xf32>
    %348 = tpu.concatenate %346, %338, %347 in 0 : vector<8x128xf32>, vector<8x128xf32>, vector<8x128xf32> -> vector<24x128xf32>
    %cst_111 = arith.constant dense<0.000000e+00> : vector<8x128xf32>
    %349 = tpu.matmul %0, %348, %cst_111 {dimension_numbers = #tpu.dot_dimension_numbers<[1], [0], [0], [1], [0, 0, 1, 1], [], []>} : vector<8x24xf32>, vector<24x128xf32>, vector<8x128xf32> -> vector<8x128xf32>
    %cst_112 = arith.constant 2.000000e-03 : f32
    %350 = vector.broadcast %cst_112 : f32 to vector<8x128xf32>
    %351 = arith.mulf %350, %349 : vector<8x128xf32>
    %cst_113 = arith.constant 3.000000e+00 : f32
    %352 = vector.broadcast %cst_113 : f32 to vector<8x128xf32>
    %353 = arith.divf %351, %352 : vector<8x128xf32>
    %354 = arith.addf %345, %353 : vector<8x128xf32>
    %355 = vector.extract_strided_slice %354 {offsets = [0, 10], sizes = [8, 1], strides = [1, 1]} : vector<8x128xf32> to vector<8x1xf32>
    %356 = vector.extract_strided_slice %354 {offsets = [0, 117], sizes = [8, 1], strides = [1, 1]} : vector<8x128xf32> to vector<8x1xf32>
    %357 = vector.shape_cast %355 : vector<8x1xf32> to vector<8x1xf32>
    %358 = vector.broadcast %357 : vector<8x1xf32> to vector<8x128xf32>
    %359 = arith.select %6, %358, %354 : vector<8x128xi1>, vector<8x128xf32>
    %360 = vector.shape_cast %356 : vector<8x1xf32> to vector<8x1xf32>
    %361 = vector.broadcast %360 : vector<8x1xf32> to vector<8x128xf32>
    %362 = arith.select %8, %361, %359 : vector<8x128xi1>, vector<8x128xf32>
    %c6_i32 = arith.constant 6 : i32
    %cst_114 = arith.constant dense<0.000000e+00> : vector<8x128xf32>
    %363 = tpu.matmul %362, %1, %cst_114 {dimension_numbers = #tpu.dot_dimension_numbers<[1], [0], [0], [1], [0, 0, 1, 1], [], []>} : vector<8x128xf32>, vector<128x128xf32>, vector<8x128xf32> -> vector<8x128xf32>
    %cst_115 = arith.constant dense<0.000000e+00> : vector<8x128xf32>
    %364 = tpu.matmul %362, %2, %cst_115 {dimension_numbers = #tpu.dot_dimension_numbers<[1], [0], [0], [1], [0, 0, 1, 1], [], []>} : vector<8x128xf32>, vector<128x128xf32>, vector<8x128xf32> -> vector<8x128xf32>
    %365 = tpu.concatenate %363, %362, %364 in 0 : vector<8x128xf32>, vector<8x128xf32>, vector<8x128xf32> -> vector<24x128xf32>
    %cst_116 = arith.constant dense<0.000000e+00> : vector<8x128xf32>
    %366 = tpu.matmul %0, %365, %cst_116 {dimension_numbers = #tpu.dot_dimension_numbers<[1], [0], [0], [1], [0, 0, 1, 1], [], []>} : vector<8x24xf32>, vector<24x128xf32>, vector<8x128xf32> -> vector<8x128xf32>
    %cst_117 = arith.constant 1.000000e-03 : f32
    %367 = vector.broadcast %cst_117 : f32 to vector<8x128xf32>
    %368 = arith.mulf %367, %366 : vector<8x128xf32>
    %369 = arith.addf %362, %368 : vector<8x128xf32>
    %370 = vector.extract_strided_slice %369 {offsets = [0, 10], sizes = [8, 1], strides = [1, 1]} : vector<8x128xf32> to vector<8x1xf32>
    %371 = vector.extract_strided_slice %369 {offsets = [0, 117], sizes = [8, 1], strides = [1, 1]} : vector<8x128xf32> to vector<8x1xf32>
    %372 = vector.shape_cast %370 : vector<8x1xf32> to vector<8x1xf32>
    %373 = vector.broadcast %372 : vector<8x1xf32> to vector<8x128xf32>
    %374 = arith.select %6, %373, %369 : vector<8x128xi1>, vector<8x128xf32>
    %375 = vector.shape_cast %371 : vector<8x1xf32> to vector<8x1xf32>
    %376 = vector.broadcast %375 : vector<8x1xf32> to vector<8x128xf32>
    %377 = arith.select %8, %376, %374 : vector<8x128xi1>, vector<8x128xf32>
    %cst_118 = arith.constant 7.500000e-01 : f32
    %378 = vector.broadcast %cst_118 : f32 to vector<8x128xf32>
    %379 = arith.mulf %378, %362 : vector<8x128xf32>
    %cst_119 = arith.constant 2.500000e-01 : f32
    %380 = vector.broadcast %cst_119 : f32 to vector<8x128xf32>
    %381 = arith.mulf %380, %377 : vector<8x128xf32>
    %382 = arith.addf %379, %381 : vector<8x128xf32>
    %cst_120 = arith.constant dense<0.000000e+00> : vector<8x128xf32>
    %383 = tpu.matmul %377, %1, %cst_120 {dimension_numbers = #tpu.dot_dimension_numbers<[1], [0], [0], [1], [0, 0, 1, 1], [], []>} : vector<8x128xf32>, vector<128x128xf32>, vector<8x128xf32> -> vector<8x128xf32>
    %cst_121 = arith.constant dense<0.000000e+00> : vector<8x128xf32>
    %384 = tpu.matmul %377, %2, %cst_121 {dimension_numbers = #tpu.dot_dimension_numbers<[1], [0], [0], [1], [0, 0, 1, 1], [], []>} : vector<8x128xf32>, vector<128x128xf32>, vector<8x128xf32> -> vector<8x128xf32>
    %385 = tpu.concatenate %383, %377, %384 in 0 : vector<8x128xf32>, vector<8x128xf32>, vector<8x128xf32> -> vector<24x128xf32>
    %cst_122 = arith.constant dense<0.000000e+00> : vector<8x128xf32>
    %386 = tpu.matmul %0, %385, %cst_122 {dimension_numbers = #tpu.dot_dimension_numbers<[1], [0], [0], [1], [0, 0, 1, 1], [], []>} : vector<8x24xf32>, vector<24x128xf32>, vector<8x128xf32> -> vector<8x128xf32>
    %cst_123 = arith.constant 2.500000e-04 : f32
    %387 = vector.broadcast %cst_123 : f32 to vector<8x128xf32>
    %388 = arith.mulf %387, %386 : vector<8x128xf32>
    %389 = arith.addf %382, %388 : vector<8x128xf32>
    %390 = vector.extract_strided_slice %389 {offsets = [0, 10], sizes = [8, 1], strides = [1, 1]} : vector<8x128xf32> to vector<8x1xf32>
    %391 = vector.extract_strided_slice %389 {offsets = [0, 117], sizes = [8, 1], strides = [1, 1]} : vector<8x128xf32> to vector<8x1xf32>
    %392 = vector.shape_cast %390 : vector<8x1xf32> to vector<8x1xf32>
    %393 = vector.broadcast %392 : vector<8x1xf32> to vector<8x128xf32>
    %394 = arith.select %6, %393, %389 : vector<8x128xi1>, vector<8x128xf32>
    %395 = vector.shape_cast %391 : vector<8x1xf32> to vector<8x1xf32>
    %396 = vector.broadcast %395 : vector<8x1xf32> to vector<8x128xf32>
    %397 = arith.select %8, %396, %394 : vector<8x128xi1>, vector<8x128xf32>
    %cst_124 = arith.constant 3.000000e+00 : f32
    %398 = vector.broadcast %cst_124 : f32 to vector<8x128xf32>
    %399 = arith.divf %362, %398 : vector<8x128xf32>
    %cst_125 = arith.constant 2.000000e+00 : f32
    %400 = vector.broadcast %cst_125 : f32 to vector<8x128xf32>
    %401 = arith.mulf %400, %397 : vector<8x128xf32>
    %cst_126 = arith.constant 3.000000e+00 : f32
    %402 = vector.broadcast %cst_126 : f32 to vector<8x128xf32>
    %403 = arith.divf %401, %402 : vector<8x128xf32>
    %404 = arith.addf %399, %403 : vector<8x128xf32>
    %cst_127 = arith.constant dense<0.000000e+00> : vector<8x128xf32>
    %405 = tpu.matmul %397, %1, %cst_127 {dimension_numbers = #tpu.dot_dimension_numbers<[1], [0], [0], [1], [0, 0, 1, 1], [], []>} : vector<8x128xf32>, vector<128x128xf32>, vector<8x128xf32> -> vector<8x128xf32>
    %cst_128 = arith.constant dense<0.000000e+00> : vector<8x128xf32>
    %406 = tpu.matmul %397, %2, %cst_128 {dimension_numbers = #tpu.dot_dimension_numbers<[1], [0], [0], [1], [0, 0, 1, 1], [], []>} : vector<8x128xf32>, vector<128x128xf32>, vector<8x128xf32> -> vector<8x128xf32>
    %407 = tpu.concatenate %405, %397, %406 in 0 : vector<8x128xf32>, vector<8x128xf32>, vector<8x128xf32> -> vector<24x128xf32>
    %cst_129 = arith.constant dense<0.000000e+00> : vector<8x128xf32>
    %408 = tpu.matmul %0, %407, %cst_129 {dimension_numbers = #tpu.dot_dimension_numbers<[1], [0], [0], [1], [0, 0, 1, 1], [], []>} : vector<8x24xf32>, vector<24x128xf32>, vector<8x128xf32> -> vector<8x128xf32>
    %cst_130 = arith.constant 2.000000e-03 : f32
    %409 = vector.broadcast %cst_130 : f32 to vector<8x128xf32>
    %410 = arith.mulf %409, %408 : vector<8x128xf32>
    %cst_131 = arith.constant 3.000000e+00 : f32
    %411 = vector.broadcast %cst_131 : f32 to vector<8x128xf32>
    %412 = arith.divf %410, %411 : vector<8x128xf32>
    %413 = arith.addf %404, %412 : vector<8x128xf32>
    %414 = vector.extract_strided_slice %413 {offsets = [0, 10], sizes = [8, 1], strides = [1, 1]} : vector<8x128xf32> to vector<8x1xf32>
    %415 = vector.extract_strided_slice %413 {offsets = [0, 117], sizes = [8, 1], strides = [1, 1]} : vector<8x128xf32> to vector<8x1xf32>
    %416 = vector.shape_cast %414 : vector<8x1xf32> to vector<8x1xf32>
    %417 = vector.broadcast %416 : vector<8x1xf32> to vector<8x128xf32>
    %418 = arith.select %6, %417, %413 : vector<8x128xi1>, vector<8x128xf32>
    %419 = vector.shape_cast %415 : vector<8x1xf32> to vector<8x1xf32>
    %420 = vector.broadcast %419 : vector<8x1xf32> to vector<8x128xf32>
    %421 = arith.select %8, %420, %418 : vector<8x128xi1>, vector<8x128xf32>
    %c7_i32 = arith.constant 7 : i32
    %cst_132 = arith.constant dense<0.000000e+00> : vector<8x128xf32>
    %422 = tpu.matmul %421, %1, %cst_132 {dimension_numbers = #tpu.dot_dimension_numbers<[1], [0], [0], [1], [0, 0, 1, 1], [], []>} : vector<8x128xf32>, vector<128x128xf32>, vector<8x128xf32> -> vector<8x128xf32>
    %cst_133 = arith.constant dense<0.000000e+00> : vector<8x128xf32>
    %423 = tpu.matmul %421, %2, %cst_133 {dimension_numbers = #tpu.dot_dimension_numbers<[1], [0], [0], [1], [0, 0, 1, 1], [], []>} : vector<8x128xf32>, vector<128x128xf32>, vector<8x128xf32> -> vector<8x128xf32>
    %424 = tpu.concatenate %422, %421, %423 in 0 : vector<8x128xf32>, vector<8x128xf32>, vector<8x128xf32> -> vector<24x128xf32>
    %cst_134 = arith.constant dense<0.000000e+00> : vector<8x128xf32>
    %425 = tpu.matmul %0, %424, %cst_134 {dimension_numbers = #tpu.dot_dimension_numbers<[1], [0], [0], [1], [0, 0, 1, 1], [], []>} : vector<8x24xf32>, vector<24x128xf32>, vector<8x128xf32> -> vector<8x128xf32>
    %cst_135 = arith.constant 1.000000e-03 : f32
    %426 = vector.broadcast %cst_135 : f32 to vector<8x128xf32>
    %427 = arith.mulf %426, %425 : vector<8x128xf32>
    %428 = arith.addf %421, %427 : vector<8x128xf32>
    %429 = vector.extract_strided_slice %428 {offsets = [0, 10], sizes = [8, 1], strides = [1, 1]} : vector<8x128xf32> to vector<8x1xf32>
    %430 = vector.extract_strided_slice %428 {offsets = [0, 117], sizes = [8, 1], strides = [1, 1]} : vector<8x128xf32> to vector<8x1xf32>
    %431 = vector.shape_cast %429 : vector<8x1xf32> to vector<8x1xf32>
    %432 = vector.broadcast %431 : vector<8x1xf32> to vector<8x128xf32>
    %433 = arith.select %6, %432, %428 : vector<8x128xi1>, vector<8x128xf32>
    %434 = vector.shape_cast %430 : vector<8x1xf32> to vector<8x1xf32>
    %435 = vector.broadcast %434 : vector<8x1xf32> to vector<8x128xf32>
    %436 = arith.select %8, %435, %433 : vector<8x128xi1>, vector<8x128xf32>
    %cst_136 = arith.constant 7.500000e-01 : f32
    %437 = vector.broadcast %cst_136 : f32 to vector<8x128xf32>
    %438 = arith.mulf %437, %421 : vector<8x128xf32>
    %cst_137 = arith.constant 2.500000e-01 : f32
    %439 = vector.broadcast %cst_137 : f32 to vector<8x128xf32>
    %440 = arith.mulf %439, %436 : vector<8x128xf32>
    %441 = arith.addf %438, %440 : vector<8x128xf32>
    %cst_138 = arith.constant dense<0.000000e+00> : vector<8x128xf32>
    %442 = tpu.matmul %436, %1, %cst_138 {dimension_numbers = #tpu.dot_dimension_numbers<[1], [0], [0], [1], [0, 0, 1, 1], [], []>} : vector<8x128xf32>, vector<128x128xf32>, vector<8x128xf32> -> vector<8x128xf32>
    %cst_139 = arith.constant dense<0.000000e+00> : vector<8x128xf32>
    %443 = tpu.matmul %436, %2, %cst_139 {dimension_numbers = #tpu.dot_dimension_numbers<[1], [0], [0], [1], [0, 0, 1, 1], [], []>} : vector<8x128xf32>, vector<128x128xf32>, vector<8x128xf32> -> vector<8x128xf32>
    %444 = tpu.concatenate %442, %436, %443 in 0 : vector<8x128xf32>, vector<8x128xf32>, vector<8x128xf32> -> vector<24x128xf32>
    %cst_140 = arith.constant dense<0.000000e+00> : vector<8x128xf32>
    %445 = tpu.matmul %0, %444, %cst_140 {dimension_numbers = #tpu.dot_dimension_numbers<[1], [0], [0], [1], [0, 0, 1, 1], [], []>} : vector<8x24xf32>, vector<24x128xf32>, vector<8x128xf32> -> vector<8x128xf32>
    %cst_141 = arith.constant 2.500000e-04 : f32
    %446 = vector.broadcast %cst_141 : f32 to vector<8x128xf32>
    %447 = arith.mulf %446, %445 : vector<8x128xf32>
    %448 = arith.addf %441, %447 : vector<8x128xf32>
    %449 = vector.extract_strided_slice %448 {offsets = [0, 10], sizes = [8, 1], strides = [1, 1]} : vector<8x128xf32> to vector<8x1xf32>
    %450 = vector.extract_strided_slice %448 {offsets = [0, 117], sizes = [8, 1], strides = [1, 1]} : vector<8x128xf32> to vector<8x1xf32>
    %451 = vector.shape_cast %449 : vector<8x1xf32> to vector<8x1xf32>
    %452 = vector.broadcast %451 : vector<8x1xf32> to vector<8x128xf32>
    %453 = arith.select %6, %452, %448 : vector<8x128xi1>, vector<8x128xf32>
    %454 = vector.shape_cast %450 : vector<8x1xf32> to vector<8x1xf32>
    %455 = vector.broadcast %454 : vector<8x1xf32> to vector<8x128xf32>
    %456 = arith.select %8, %455, %453 : vector<8x128xi1>, vector<8x128xf32>
    %cst_142 = arith.constant 3.000000e+00 : f32
    %457 = vector.broadcast %cst_142 : f32 to vector<8x128xf32>
    %458 = arith.divf %421, %457 : vector<8x128xf32>
    %cst_143 = arith.constant 2.000000e+00 : f32
    %459 = vector.broadcast %cst_143 : f32 to vector<8x128xf32>
    %460 = arith.mulf %459, %456 : vector<8x128xf32>
    %cst_144 = arith.constant 3.000000e+00 : f32
    %461 = vector.broadcast %cst_144 : f32 to vector<8x128xf32>
    %462 = arith.divf %460, %461 : vector<8x128xf32>
    %463 = arith.addf %458, %462 : vector<8x128xf32>
    %cst_145 = arith.constant dense<0.000000e+00> : vector<8x128xf32>
    %464 = tpu.matmul %456, %1, %cst_145 {dimension_numbers = #tpu.dot_dimension_numbers<[1], [0], [0], [1], [0, 0, 1, 1], [], []>} : vector<8x128xf32>, vector<128x128xf32>, vector<8x128xf32> -> vector<8x128xf32>
    %cst_146 = arith.constant dense<0.000000e+00> : vector<8x128xf32>
    %465 = tpu.matmul %456, %2, %cst_146 {dimension_numbers = #tpu.dot_dimension_numbers<[1], [0], [0], [1], [0, 0, 1, 1], [], []>} : vector<8x128xf32>, vector<128x128xf32>, vector<8x128xf32> -> vector<8x128xf32>
    %466 = tpu.concatenate %464, %456, %465 in 0 : vector<8x128xf32>, vector<8x128xf32>, vector<8x128xf32> -> vector<24x128xf32>
    %cst_147 = arith.constant dense<0.000000e+00> : vector<8x128xf32>
    %467 = tpu.matmul %0, %466, %cst_147 {dimension_numbers = #tpu.dot_dimension_numbers<[1], [0], [0], [1], [0, 0, 1, 1], [], []>} : vector<8x24xf32>, vector<24x128xf32>, vector<8x128xf32> -> vector<8x128xf32>
    %cst_148 = arith.constant 2.000000e-03 : f32
    %468 = vector.broadcast %cst_148 : f32 to vector<8x128xf32>
    %469 = arith.mulf %468, %467 : vector<8x128xf32>
    %cst_149 = arith.constant 3.000000e+00 : f32
    %470 = vector.broadcast %cst_149 : f32 to vector<8x128xf32>
    %471 = arith.divf %469, %470 : vector<8x128xf32>
    %472 = arith.addf %463, %471 : vector<8x128xf32>
    %473 = vector.extract_strided_slice %472 {offsets = [0, 10], sizes = [8, 1], strides = [1, 1]} : vector<8x128xf32> to vector<8x1xf32>
    %474 = vector.extract_strided_slice %472 {offsets = [0, 117], sizes = [8, 1], strides = [1, 1]} : vector<8x128xf32> to vector<8x1xf32>
    %475 = vector.shape_cast %473 : vector<8x1xf32> to vector<8x1xf32>
    %476 = vector.broadcast %475 : vector<8x1xf32> to vector<8x128xf32>
    %477 = arith.select %6, %476, %472 : vector<8x128xi1>, vector<8x128xf32>
    %478 = vector.shape_cast %474 : vector<8x1xf32> to vector<8x1xf32>
    %479 = vector.broadcast %478 : vector<8x1xf32> to vector<8x128xf32>
    %480 = arith.select %8, %479, %477 : vector<8x128xi1>, vector<8x128xf32>
    %c8_i32 = arith.constant 8 : i32
    %cst_150 = arith.constant dense<0.000000e+00> : vector<8x128xf32>
    %481 = tpu.matmul %480, %1, %cst_150 {dimension_numbers = #tpu.dot_dimension_numbers<[1], [0], [0], [1], [0, 0, 1, 1], [], []>} : vector<8x128xf32>, vector<128x128xf32>, vector<8x128xf32> -> vector<8x128xf32>
    %cst_151 = arith.constant dense<0.000000e+00> : vector<8x128xf32>
    %482 = tpu.matmul %480, %2, %cst_151 {dimension_numbers = #tpu.dot_dimension_numbers<[1], [0], [0], [1], [0, 0, 1, 1], [], []>} : vector<8x128xf32>, vector<128x128xf32>, vector<8x128xf32> -> vector<8x128xf32>
    %483 = tpu.concatenate %481, %480, %482 in 0 : vector<8x128xf32>, vector<8x128xf32>, vector<8x128xf32> -> vector<24x128xf32>
    %cst_152 = arith.constant dense<0.000000e+00> : vector<8x128xf32>
    %484 = tpu.matmul %0, %483, %cst_152 {dimension_numbers = #tpu.dot_dimension_numbers<[1], [0], [0], [1], [0, 0, 1, 1], [], []>} : vector<8x24xf32>, vector<24x128xf32>, vector<8x128xf32> -> vector<8x128xf32>
    %cst_153 = arith.constant 1.000000e-03 : f32
    %485 = vector.broadcast %cst_153 : f32 to vector<8x128xf32>
    %486 = arith.mulf %485, %484 : vector<8x128xf32>
    %487 = arith.addf %480, %486 : vector<8x128xf32>
    %488 = vector.extract_strided_slice %487 {offsets = [0, 10], sizes = [8, 1], strides = [1, 1]} : vector<8x128xf32> to vector<8x1xf32>
    %489 = vector.extract_strided_slice %487 {offsets = [0, 117], sizes = [8, 1], strides = [1, 1]} : vector<8x128xf32> to vector<8x1xf32>
    %490 = vector.shape_cast %488 : vector<8x1xf32> to vector<8x1xf32>
    %491 = vector.broadcast %490 : vector<8x1xf32> to vector<8x128xf32>
    %492 = arith.select %6, %491, %487 : vector<8x128xi1>, vector<8x128xf32>
    %493 = vector.shape_cast %489 : vector<8x1xf32> to vector<8x1xf32>
    %494 = vector.broadcast %493 : vector<8x1xf32> to vector<8x128xf32>
    %495 = arith.select %8, %494, %492 : vector<8x128xi1>, vector<8x128xf32>
    %cst_154 = arith.constant 7.500000e-01 : f32
    %496 = vector.broadcast %cst_154 : f32 to vector<8x128xf32>
    %497 = arith.mulf %496, %480 : vector<8x128xf32>
    %cst_155 = arith.constant 2.500000e-01 : f32
    %498 = vector.broadcast %cst_155 : f32 to vector<8x128xf32>
    %499 = arith.mulf %498, %495 : vector<8x128xf32>
    %500 = arith.addf %497, %499 : vector<8x128xf32>
    %cst_156 = arith.constant dense<0.000000e+00> : vector<8x128xf32>
    %501 = tpu.matmul %495, %1, %cst_156 {dimension_numbers = #tpu.dot_dimension_numbers<[1], [0], [0], [1], [0, 0, 1, 1], [], []>} : vector<8x128xf32>, vector<128x128xf32>, vector<8x128xf32> -> vector<8x128xf32>
    %cst_157 = arith.constant dense<0.000000e+00> : vector<8x128xf32>
    %502 = tpu.matmul %495, %2, %cst_157 {dimension_numbers = #tpu.dot_dimension_numbers<[1], [0], [0], [1], [0, 0, 1, 1], [], []>} : vector<8x128xf32>, vector<128x128xf32>, vector<8x128xf32> -> vector<8x128xf32>
    %503 = tpu.concatenate %501, %495, %502 in 0 : vector<8x128xf32>, vector<8x128xf32>, vector<8x128xf32> -> vector<24x128xf32>
    %cst_158 = arith.constant dense<0.000000e+00> : vector<8x128xf32>
    %504 = tpu.matmul %0, %503, %cst_158 {dimension_numbers = #tpu.dot_dimension_numbers<[1], [0], [0], [1], [0, 0, 1, 1], [], []>} : vector<8x24xf32>, vector<24x128xf32>, vector<8x128xf32> -> vector<8x128xf32>
    %cst_159 = arith.constant 2.500000e-04 : f32
    %505 = vector.broadcast %cst_159 : f32 to vector<8x128xf32>
    %506 = arith.mulf %505, %504 : vector<8x128xf32>
    %507 = arith.addf %500, %506 : vector<8x128xf32>
    %508 = vector.extract_strided_slice %507 {offsets = [0, 10], sizes = [8, 1], strides = [1, 1]} : vector<8x128xf32> to vector<8x1xf32>
    %509 = vector.extract_strided_slice %507 {offsets = [0, 117], sizes = [8, 1], strides = [1, 1]} : vector<8x128xf32> to vector<8x1xf32>
    %510 = vector.shape_cast %508 : vector<8x1xf32> to vector<8x1xf32>
    %511 = vector.broadcast %510 : vector<8x1xf32> to vector<8x128xf32>
    %512 = arith.select %6, %511, %507 : vector<8x128xi1>, vector<8x128xf32>
    %513 = vector.shape_cast %509 : vector<8x1xf32> to vector<8x1xf32>
    %514 = vector.broadcast %513 : vector<8x1xf32> to vector<8x128xf32>
    %515 = arith.select %8, %514, %512 : vector<8x128xi1>, vector<8x128xf32>
    %cst_160 = arith.constant 3.000000e+00 : f32
    %516 = vector.broadcast %cst_160 : f32 to vector<8x128xf32>
    %517 = arith.divf %480, %516 : vector<8x128xf32>
    %cst_161 = arith.constant 2.000000e+00 : f32
    %518 = vector.broadcast %cst_161 : f32 to vector<8x128xf32>
    %519 = arith.mulf %518, %515 : vector<8x128xf32>
    %cst_162 = arith.constant 3.000000e+00 : f32
    %520 = vector.broadcast %cst_162 : f32 to vector<8x128xf32>
    %521 = arith.divf %519, %520 : vector<8x128xf32>
    %522 = arith.addf %517, %521 : vector<8x128xf32>
    %cst_163 = arith.constant dense<0.000000e+00> : vector<8x128xf32>
    %523 = tpu.matmul %515, %1, %cst_163 {dimension_numbers = #tpu.dot_dimension_numbers<[1], [0], [0], [1], [0, 0, 1, 1], [], []>} : vector<8x128xf32>, vector<128x128xf32>, vector<8x128xf32> -> vector<8x128xf32>
    %cst_164 = arith.constant dense<0.000000e+00> : vector<8x128xf32>
    %524 = tpu.matmul %515, %2, %cst_164 {dimension_numbers = #tpu.dot_dimension_numbers<[1], [0], [0], [1], [0, 0, 1, 1], [], []>} : vector<8x128xf32>, vector<128x128xf32>, vector<8x128xf32> -> vector<8x128xf32>
    %525 = tpu.concatenate %523, %515, %524 in 0 : vector<8x128xf32>, vector<8x128xf32>, vector<8x128xf32> -> vector<24x128xf32>
    %cst_165 = arith.constant dense<0.000000e+00> : vector<8x128xf32>
    %526 = tpu.matmul %0, %525, %cst_165 {dimension_numbers = #tpu.dot_dimension_numbers<[1], [0], [0], [1], [0, 0, 1, 1], [], []>} : vector<8x24xf32>, vector<24x128xf32>, vector<8x128xf32> -> vector<8x128xf32>
    %cst_166 = arith.constant 2.000000e-03 : f32
    %527 = vector.broadcast %cst_166 : f32 to vector<8x128xf32>
    %528 = arith.mulf %527, %526 : vector<8x128xf32>
    %cst_167 = arith.constant 3.000000e+00 : f32
    %529 = vector.broadcast %cst_167 : f32 to vector<8x128xf32>
    %530 = arith.divf %528, %529 : vector<8x128xf32>
    %531 = arith.addf %522, %530 : vector<8x128xf32>
    %532 = vector.extract_strided_slice %531 {offsets = [0, 10], sizes = [8, 1], strides = [1, 1]} : vector<8x128xf32> to vector<8x1xf32>
    %533 = vector.extract_strided_slice %531 {offsets = [0, 117], sizes = [8, 1], strides = [1, 1]} : vector<8x128xf32> to vector<8x1xf32>
    %534 = vector.shape_cast %532 : vector<8x1xf32> to vector<8x1xf32>
    %535 = vector.broadcast %534 : vector<8x1xf32> to vector<8x128xf32>
    %536 = arith.select %6, %535, %531 : vector<8x128xi1>, vector<8x128xf32>
    %537 = vector.shape_cast %533 : vector<8x1xf32> to vector<8x1xf32>
    %538 = vector.broadcast %537 : vector<8x1xf32> to vector<8x128xf32>
    %539 = arith.select %8, %538, %536 : vector<8x128xi1>, vector<8x128xf32>
    %c9_i32 = arith.constant 9 : i32
    %cst_168 = arith.constant dense<0.000000e+00> : vector<8x128xf32>
    %540 = tpu.matmul %539, %1, %cst_168 {dimension_numbers = #tpu.dot_dimension_numbers<[1], [0], [0], [1], [0, 0, 1, 1], [], []>} : vector<8x128xf32>, vector<128x128xf32>, vector<8x128xf32> -> vector<8x128xf32>
    %cst_169 = arith.constant dense<0.000000e+00> : vector<8x128xf32>
    %541 = tpu.matmul %539, %2, %cst_169 {dimension_numbers = #tpu.dot_dimension_numbers<[1], [0], [0], [1], [0, 0, 1, 1], [], []>} : vector<8x128xf32>, vector<128x128xf32>, vector<8x128xf32> -> vector<8x128xf32>
    %542 = tpu.concatenate %540, %539, %541 in 0 : vector<8x128xf32>, vector<8x128xf32>, vector<8x128xf32> -> vector<24x128xf32>
    %cst_170 = arith.constant dense<0.000000e+00> : vector<8x128xf32>
    %543 = tpu.matmul %0, %542, %cst_170 {dimension_numbers = #tpu.dot_dimension_numbers<[1], [0], [0], [1], [0, 0, 1, 1], [], []>} : vector<8x24xf32>, vector<24x128xf32>, vector<8x128xf32> -> vector<8x128xf32>
    %cst_171 = arith.constant 1.000000e-03 : f32
    %544 = vector.broadcast %cst_171 : f32 to vector<8x128xf32>
    %545 = arith.mulf %544, %543 : vector<8x128xf32>
    %546 = arith.addf %539, %545 : vector<8x128xf32>
    %547 = vector.extract_strided_slice %546 {offsets = [0, 10], sizes = [8, 1], strides = [1, 1]} : vector<8x128xf32> to vector<8x1xf32>
    %548 = vector.extract_strided_slice %546 {offsets = [0, 117], sizes = [8, 1], strides = [1, 1]} : vector<8x128xf32> to vector<8x1xf32>
    %549 = vector.shape_cast %547 : vector<8x1xf32> to vector<8x1xf32>
    %550 = vector.broadcast %549 : vector<8x1xf32> to vector<8x128xf32>
    %551 = arith.select %6, %550, %546 : vector<8x128xi1>, vector<8x128xf32>
    %552 = vector.shape_cast %548 : vector<8x1xf32> to vector<8x1xf32>
    %553 = vector.broadcast %552 : vector<8x1xf32> to vector<8x128xf32>
    %554 = arith.select %8, %553, %551 : vector<8x128xi1>, vector<8x128xf32>
    %cst_172 = arith.constant 7.500000e-01 : f32
    %555 = vector.broadcast %cst_172 : f32 to vector<8x128xf32>
    %556 = arith.mulf %555, %539 : vector<8x128xf32>
    %cst_173 = arith.constant 2.500000e-01 : f32
    %557 = vector.broadcast %cst_173 : f32 to vector<8x128xf32>
    %558 = arith.mulf %557, %554 : vector<8x128xf32>
    %559 = arith.addf %556, %558 : vector<8x128xf32>
    %cst_174 = arith.constant dense<0.000000e+00> : vector<8x128xf32>
    %560 = tpu.matmul %554, %1, %cst_174 {dimension_numbers = #tpu.dot_dimension_numbers<[1], [0], [0], [1], [0, 0, 1, 1], [], []>} : vector<8x128xf32>, vector<128x128xf32>, vector<8x128xf32> -> vector<8x128xf32>
    %cst_175 = arith.constant dense<0.000000e+00> : vector<8x128xf32>
    %561 = tpu.matmul %554, %2, %cst_175 {dimension_numbers = #tpu.dot_dimension_numbers<[1], [0], [0], [1], [0, 0, 1, 1], [], []>} : vector<8x128xf32>, vector<128x128xf32>, vector<8x128xf32> -> vector<8x128xf32>
    %562 = tpu.concatenate %560, %554, %561 in 0 : vector<8x128xf32>, vector<8x128xf32>, vector<8x128xf32> -> vector<24x128xf32>
    %cst_176 = arith.constant dense<0.000000e+00> : vector<8x128xf32>
    %563 = tpu.matmul %0, %562, %cst_176 {dimension_numbers = #tpu.dot_dimension_numbers<[1], [0], [0], [1], [0, 0, 1, 1], [], []>} : vector<8x24xf32>, vector<24x128xf32>, vector<8x128xf32> -> vector<8x128xf32>
    %cst_177 = arith.constant 2.500000e-04 : f32
    %564 = vector.broadcast %cst_177 : f32 to vector<8x128xf32>
    %565 = arith.mulf %564, %563 : vector<8x128xf32>
    %566 = arith.addf %559, %565 : vector<8x128xf32>
    %567 = vector.extract_strided_slice %566 {offsets = [0, 10], sizes = [8, 1], strides = [1, 1]} : vector<8x128xf32> to vector<8x1xf32>
    %568 = vector.extract_strided_slice %566 {offsets = [0, 117], sizes = [8, 1], strides = [1, 1]} : vector<8x128xf32> to vector<8x1xf32>
    %569 = vector.shape_cast %567 : vector<8x1xf32> to vector<8x1xf32>
    %570 = vector.broadcast %569 : vector<8x1xf32> to vector<8x128xf32>
    %571 = arith.select %6, %570, %566 : vector<8x128xi1>, vector<8x128xf32>
    %572 = vector.shape_cast %568 : vector<8x1xf32> to vector<8x1xf32>
    %573 = vector.broadcast %572 : vector<8x1xf32> to vector<8x128xf32>
    %574 = arith.select %8, %573, %571 : vector<8x128xi1>, vector<8x128xf32>
    %cst_178 = arith.constant 3.000000e+00 : f32
    %575 = vector.broadcast %cst_178 : f32 to vector<8x128xf32>
    %576 = arith.divf %539, %575 : vector<8x128xf32>
    %cst_179 = arith.constant 2.000000e+00 : f32
    %577 = vector.broadcast %cst_179 : f32 to vector<8x128xf32>
    %578 = arith.mulf %577, %574 : vector<8x128xf32>
    %cst_180 = arith.constant 3.000000e+00 : f32
    %579 = vector.broadcast %cst_180 : f32 to vector<8x128xf32>
    %580 = arith.divf %578, %579 : vector<8x128xf32>
    %581 = arith.addf %576, %580 : vector<8x128xf32>
    %cst_181 = arith.constant dense<0.000000e+00> : vector<8x128xf32>
    %582 = tpu.matmul %574, %1, %cst_181 {dimension_numbers = #tpu.dot_dimension_numbers<[1], [0], [0], [1], [0, 0, 1, 1], [], []>} : vector<8x128xf32>, vector<128x128xf32>, vector<8x128xf32> -> vector<8x128xf32>
    %cst_182 = arith.constant dense<0.000000e+00> : vector<8x128xf32>
    %583 = tpu.matmul %574, %2, %cst_182 {dimension_numbers = #tpu.dot_dimension_numbers<[1], [0], [0], [1], [0, 0, 1, 1], [], []>} : vector<8x128xf32>, vector<128x128xf32>, vector<8x128xf32> -> vector<8x128xf32>
    %584 = tpu.concatenate %582, %574, %583 in 0 : vector<8x128xf32>, vector<8x128xf32>, vector<8x128xf32> -> vector<24x128xf32>
    %cst_183 = arith.constant dense<0.000000e+00> : vector<8x128xf32>
    %585 = tpu.matmul %0, %584, %cst_183 {dimension_numbers = #tpu.dot_dimension_numbers<[1], [0], [0], [1], [0, 0, 1, 1], [], []>} : vector<8x24xf32>, vector<24x128xf32>, vector<8x128xf32> -> vector<8x128xf32>
    %cst_184 = arith.constant 2.000000e-03 : f32
    %586 = vector.broadcast %cst_184 : f32 to vector<8x128xf32>
    %587 = arith.mulf %586, %585 : vector<8x128xf32>
    %cst_185 = arith.constant 3.000000e+00 : f32
    %588 = vector.broadcast %cst_185 : f32 to vector<8x128xf32>
    %589 = arith.divf %587, %588 : vector<8x128xf32>
    %590 = arith.addf %581, %589 : vector<8x128xf32>
    %591 = vector.extract_strided_slice %590 {offsets = [0, 10], sizes = [8, 1], strides = [1, 1]} : vector<8x128xf32> to vector<8x1xf32>
    %592 = vector.extract_strided_slice %590 {offsets = [0, 117], sizes = [8, 1], strides = [1, 1]} : vector<8x128xf32> to vector<8x1xf32>
    %593 = vector.shape_cast %591 : vector<8x1xf32> to vector<8x1xf32>
    %594 = vector.broadcast %593 : vector<8x1xf32> to vector<8x128xf32>
    %595 = arith.select %6, %594, %590 : vector<8x128xi1>, vector<8x128xf32>
    %596 = vector.shape_cast %592 : vector<8x1xf32> to vector<8x1xf32>
    %597 = vector.broadcast %596 : vector<8x1xf32> to vector<8x128xf32>
    %598 = arith.select %8, %597, %595 : vector<8x128xi1>, vector<8x128xf32>
    %c0_186 = arith.constant 0 : index
    %c0_187 = arith.constant 0 : index
    %599 = vector.load %arg5[%c0_186, %c0_187] : memref<8x128xf32, #tpu.memory_space<vmem>>, vector<8x128xf32>
    tpu.vector_store %arg5[%c0_186, %c0_187], %598 {strides = array<i32>} : memref<8x128xf32, #tpu.memory_space<vmem>>, vector<8x128xf32>,
    return
  }
  func.func @transform_0(%arg0: i32) -> (i32, i32) {
    %c0_i32 = arith.constant 0 : i32
    %c0_i32_0 = arith.constant 0 : i32
    %c0_i32_1 = arith.constant 0 : i32
    return %c0_i32, %c0_i32_0 : i32, i32
  }
  func.func @transform_1(%arg0: i32) -> (i32, i32) {
    %c0_i32 = arith.constant 0 : i32
    %c0_i32_0 = arith.constant 0 : i32
    %c0_i32_1 = arith.constant 0 : i32
    return %c0_i32, %c0_i32_0 : i32, i32
  }
  func.func @transform_2(%arg0: i32) -> (i32, i32) {
    %c0_i32 = arith.constant 0 : i32
    %c0_i32_0 = arith.constant 0 : i32
    %c0_i32_1 = arith.constant 0 : i32
    return %c0_i32, %c0_i32_0 : i32, i32
  }
  func.func @transform_3(%arg0: i32) -> (i32, i32) {
    %c0_i32 = arith.constant 0 : i32
    %c0_i32_0 = arith.constant 0 : i32
    return %arg0, %c0_i32 : i32, i32
  }
  func.func @transform_4(%arg0: i32) -> (i32, i32) {
    %c0_i32 = arith.constant 0 : i32
    %c0_i32_0 = arith.constant 0 : i32
    return %arg0, %c0_i32 : i32, i32
  }
}

</mosaic_0001>

<llo_original>
// kernel: neural_ode_forward.1
$region0: #{neural_ode_forward.1}
  #allocation0 [shape = 'u32[]', space=smem, size = 0x4, offset = 0x4, fixed_abs, tag = 'smem constant byte address 0x4 - core index']
  #allocation1 [shape = 'u32[72,128]{1,0:T(1,128)}', space=vmem, size = 0x9000, scoped, tag = 'internal scratch']
  %s0 = inlined_call_operand.vmem [shape: f32[8,24], index: 0, kind: input, shape index: {}]
  %s1 = inlined_call_operand.vmem [shape: f32[128,128], index: 1, kind: input, shape index: {}]
  %s2 = inlined_call_operand.vmem [shape: f32[128,128], index: 2, kind: input, shape index: {}]
  %s3 = inlined_call_operand.vmem [shape: f32[16,128], index: 3, kind: input, shape index: {}]
  %s4 = inlined_call_operand.hbm [shape: f32[16,128], index: 4, kind: output, shape index: {}]
  %s5 = sld [smem:[#allocation0]]
  $region49: #{neural_ode_forward.1} parent=0
    _
  %s7 = ssub.s32 1, %s5
  %s8 = scalar_select 0, %s7, %s5
  $region1: #{neural_ode_forward.1} parent=0
    #allocation2 [shape = 'u8[8192]{0}', space=vmem, size = 0x2000, scoped, tag = 'output window, operand 0']
    #allocation3 [shape = 's32[2]{0}', space=sflag, size = 0x8, scoped, tag = 'scoped memory for neural_ode_forward.1']
    %9 = vsyncpa [#allocation3], 0
    %s10 = scalar_lea.sflag [#allocation3], 1
    %11 = vsyncpa %s10, 0
    loop: start=0, step=1, limit=4
    $region2: #{neural_ode_forward.1} parent=1 // loop_pre_header
      _
    $region3: #{neural_ode_forward.1} parent=1 // loop_header
      %s13 = sphi 0, %s17
      %p14 = scmp.ge.s32.totalorder %s13, 4
      %s21 = sphi 0, %s21
      %s23 = sphi 0, %s21
      %s24 = sphi 0, %s23
      %s38 = sphi 0, %s24
      %s42 = sphi 0, %s42
      %s44 = sphi 0, %s42
      %s45 = sphi 0, %s44
      %s59 = sphi 0, %s45
      %s63 = sphi 0, %s63
      %s65 = sphi 0, %s63
      %s66 = sphi 0, %s65
      %s80 = sphi 0, %s66
      %s86 = sphi 0, %s88
      %s89 = sphi 0, %s86
      %s90 = sphi 0, %s89
      %s106 = sphi 0, %s90
      %s112 = sphi 0, %s114
      %s115 = sphi 0, %s112
      %s116 = sphi 0, %s115
      %s132 = sphi 0, %s116
    $region4: #{neural_ode_forward.1} parent=1 // loop_header_branch
      %16 = sbr.rel (%p14) target = $region8
    $region5: #{neural_ode_forward.1} parent=1 // loop_body
      %s18 = ssub.s32 %s13, 1
      %s19 = ssub.s32 %s13, 2
      %s20 = sadd.s32 %s13, 1
      %s22 = sadd.s32 %s21, 1
      %p25 = scmp.eq.s32.totalorder %s13, 1
      %p26 = scmp.ne.s32.totalorder %s21, %s23
      %p27 = scmp.eq.s32.totalorder %s13, 0
      %p28 = por %p26, %p27
      %p29 = scmp.ne.s32.totalorder %s21, %s23
      %p30 = scmp.eq.s32.totalorder %s18, 1
      %p31 = por %p29, %p30
      %p32 = scmp.ne.s32.totalorder %s23, %s24
      %p33 = scmp.eq.s32.totalorder %s18, 0
      %p34 = por %p32, %p33
      %p35 = scmp.ne.s32.totalorder %s23, %s24
      %p36 = scmp.eq.s32.totalorder %s19, 1
      %p37 = por %p35, %p36
      %p39 = scmp.ne.s32.totalorder %s24, %s38
      %p40 = scmp.eq.s32.totalorder %s19, 0
      %p41 = por %p39, %p40
      %s43 = sadd.s32 %s42, 1
      %p46 = scmp.eq.s32.totalorder %s13, 1
      %p47 = scmp.ne.s32.totalorder %s42, %s44
      %p48 = scmp.eq.s32.totalorder %s13, 0
      %p49 = por %p47, %p48
      %p50 = scmp.ne.s32.totalorder %s42, %s44
      %p51 = scmp.eq.s32.totalorder %s18, 1
      %p52 = por %p50, %p51
      %p53 = scmp.ne.s32.totalorder %s44, %s45
      %p54 = scmp.eq.s32.totalorder %s18, 0
      %p55 = por %p53, %p54
      %p56 = scmp.ne.s32.totalorder %s44, %s45
      %p57 = scmp.eq.s32.totalorder %s19, 1
      %p58 = por %p56, %p57
      %p60 = scmp.ne.s32.totalorder %s45, %s59
      %p61 = scmp.eq.s32.totalorder %s19, 0
      %p62 = por %p60, %p61
      %s64 = sadd.s32 %s63, 1
      %p67 = scmp.eq.s32.totalorder %s13, 1
      %p68 = scmp.ne.s32.totalorder %s63, %s65
      %p69 = scmp.eq.s32.totalorder %s13, 0
      %p70 = por %p68, %p69
      %p71 = scmp.ne.s32.totalorder %s63, %s65
      %p72 = scmp.eq.s32.totalorder %s18, 1
      %p73 = por %p71, %p72
      %p74 = scmp.ne.s32.totalorder %s65, %s66
      %p75 = scmp.eq.s32.totalorder %s18, 0
      %p76 = por %p74, %p75
      %p77 = scmp.ne.s32.totalorder %s65, %s66
      %p78 = scmp.eq.s32.totalorder %s19, 1
      %p79 = por %p77, %p78
      %p81 = scmp.ne.s32.totalorder %s66, %s80
      %p82 = scmp.eq.s32.totalorder %s19, 0
      %p83 = por %p81, %p82
      %s84 = ssub.s32 %s13, %s20
      %p85 = scmp.eq.s32.totalorder %s84, 0
      %s87 = sadd.s32 %s86, 1
      %s88 = scalar_select %p85, %s86, %s87
      %p91 = pneg %p85
      %p92 = scmp.eq.s32.totalorder %s13, 1
      %p93 = por %p91, %p92
      %p94 = scmp.ne.s32.totalorder %s86, %s89
      %p95 = scmp.eq.s32.totalorder %s13, 0
      %p96 = por %p94, %p95
      %p97 = scmp.ne.s32.totalorder %s86, %s89
      %p98 = scmp.eq.s32.totalorder %s18, 1
      %p99 = por %p97, %p98
      %p100 = scmp.ne.s32.totalorder %s89, %s90
      %p101 = scmp.eq.s32.totalorder %s18, 0
      %p102 = por %p100, %p101
      %p103 = scmp.ne.s32.totalorder %s89, %s90
      %p104 = scmp.eq.s32.totalorder %s19, 1
      %p105 = por %p103, %p104
      %p107 = scmp.ne.s32.totalorder %s90, %s106
      %p108 = scmp.eq.s32.totalorder %s19, 0
      %p109 = por %p107, %p108
      %s110 = ssub.s32 %s13, %s20
      %p111 = scmp.eq.s32.totalorder %s110, 0
      %s113 = sadd.s32 %s112, 1
      %s114 = scalar_select %p111, %s112, %s113
      %p117 = pneg %p111
      %p118 = scmp.eq.s32.totalorder %s13, 1
      %p119 = por %p117, %p118
      %p120 = scmp.ne.s32.totalorder %s112, %s115
      %p121 = scmp.eq.s32.totalorder %s13, 0
      %p122 = por %p120, %p121
      %p123 = scmp.ne.s32.totalorder %s112, %s115
      %p124 = scmp.eq.s32.totalorder %s18, 1
      %p125 = por %p123, %p124
      %p126 = scmp.ne.s32.totalorder %s115, %s116
      %p127 = scmp.eq.s32.totalorder %s18, 0
      %p128 = por %p126, %p127
      %p129 = scmp.ne.s32.totalorder %s115, %s116
      %p130 = scmp.eq.s32.totalorder %s19, 1
      %p131 = por %p129, %p130
      %p133 = scmp.ne.s32.totalorder %s116, %s132
      %p134 = scmp.eq.s32.totalorder %s19, 0
      %p135 = por %p133, %p134
      %p136 = scmp.le.s32.totalorder 1, %s13
      %p137 = scmp.lt.s32.totalorder %s13, 3
      %p138 = pnand %p136, %p137
      %p139 = pneg %p138
      // Predicated region
      $region9: #{neural_ode_forward.1} parent=5 // pred_check
        _
      $region10: #{neural_ode_forward.1} parent=5 // pred_check_branch
        %141 = sbr.rel (%p138) target = $region12
      $region11: #{neural_ode_forward.1} parent=5 // pred_region
        %s142 = ssub.s32 %s13, 1
        // Predicated region
        $region13: #{neural_ode_forward.1} parent=11 // pred_check
          %p143 = pneg %p34
        $region14: #{neural_ode_forward.1} parent=11 // pred_check_branch
          %145 = sbr.rel (%p143) target = $region16
        $region15: #{neural_ode_forward.1} parent=11 // pred_region
          _
        $region16: #{neural_ode_forward.1} parent=11 // pred_fallthru
          _
        // Predicated region
        $region17: #{neural_ode_forward.1} parent=11 // pred_check
          %p146 = pneg %p55
        $region18: #{neural_ode_forward.1} parent=11 // pred_check_branch
          %148 = sbr.rel (%p146) target = $region20
        $region19: #{neural_ode_forward.1} parent=11 // pred_region
          _
        $region20: #{neural_ode_forward.1} parent=11 // pred_fallthru
          _
        // Predicated region
        $region21: #{neural_ode_forward.1} parent=11 // pred_check
          %p149 = pneg %p76
        $region22: #{neural_ode_forward.1} parent=11 // pred_check_branch
          %151 = sbr.rel (%p149) target = $region24
        $region23: #{neural_ode_forward.1} parent=11 // pred_region
          _
        $region24: #{neural_ode_forward.1} parent=11 // pred_fallthru
          _
      $region12: #{neural_ode_forward.1} parent=5 // pred_fallthru
        _
      %p152 = scmp.lt.s32.totalorder %s13, 2
      // Predicated region
      $region25: #{neural_ode_forward.1} parent=5 // pred_check
        %p153 = pneg %p152
      $region26: #{neural_ode_forward.1} parent=5 // pred_check_branch
        %155 = sbr.rel (%p153) target = $region28
      $region27: #{neural_ode_forward.1} parent=5 // pred_region
        // Predicated region
        $region29: #{neural_ode_forward.1} parent=27 // pred_check
          %p156 = pneg %p96
        $region30: #{neural_ode_forward.1} parent=27 // pred_check_branch
          %158 = sbr.rel (%p156) target = $region32
        $region31: #{neural_ode_forward.1} parent=27 // pred_region
          %p159 = scmp.lt.s32.totalorder %s13, 1
          %s160 = scalar_select %p159, %s13, 1
          %s161 = smul.addr %s160, 8
          %s162 = scalar_lea.vmem %s3, %s161
        $region32: #{neural_ode_forward.1} parent=27 // pred_fallthru
          _
      $region28: #{neural_ode_forward.1} parent=5 // pred_fallthru
        _
      %p163 = scmp.le.s32.totalorder 1, %s13
      %p164 = scmp.lt.s32.totalorder %s13, 3
      %p165 = pnand %p163, %p164
      %p166 = pneg %p165
      // Predicated region
      $region33: #{neural_ode_forward.1} parent=5 // pred_check
        _
      $region34: #{neural_ode_forward.1} parent=5 // pred_check_branch
        %168 = sbr.rel (%p165) target = $region36
      $region35: #{neural_ode_forward.1} parent=5 // pred_region
        %s169 = ssub.s32 %s13, 1
        %p170 = pneg %p34
        %p171 = pneg %p31
        %p172 = pneg %p55
        %p173 = pneg %p52
        %p174 = pneg %p76
        %p175 = pneg %p73
        %p176 = scmp.lt.s32.totalorder %s18, 1
        %s177 = scalar_select %p176, %s18, 1
        %s178 = smul.addr %s177, 8
        %s179 = scalar_lea.vmem %s3, %s178
        %p180 = pneg %p102
        %p181 = pneg %p99
        %p182 = pneg %p128
        %p183 = pneg %p125
        %s184 = sand.u32 %s115, 1
        %s185 = scalar_lea.sflag [#allocation3], %s184
        %s186 = sand.u32 %s115, 1
        %s187 = smul.addr %s186, 8
        %s188 = scalar_lea.vmem [#allocation2], %s187
        %p189 = scmp.lt.s32.totalorder %s18, 1
        %s190 = scalar_select %p189, %s18, 1
        %s191 = smul.addr %s190, 8
        %s192 = scalar_lea.vmem %s3, %s191
        %v193 = vld [vmem:[%s0] sm:$0xff]
        %v194 = vld [vmem:[%s1] sm:$0xff]
        %v195 = vld [vmem:[%s1 + $0x8] sm:$0xff]
        %v196 = vld [vmem:[%s1 + $0x10] sm:$0xff]
        %v197 = vld [vmem:[%s1 + $0x18] sm:$0xff]
        %v198 = vld [vmem:[%s1 + $0x20] sm:$0xff]
        %v199 = vld [vmem:[%s1 + $0x28] sm:$0xff]
        %v200 = vld [vmem:[%s1 + $0x30] sm:$0xff]
        %v201 = vld [vmem:[%s1 + $0x38] sm:$0xff]
        %v202 = vld [vmem:[%s1 + $0x40] sm:$0xff]
        %v203 = vld [vmem:[%s1 + $0x48] sm:$0xff]
        %v204 = vld [vmem:[%s1 + $0x50] sm:$0xff]
        %v205 = vld [vmem:[%s1 + $0x58] sm:$0xff]
        %v206 = vld [vmem:[%s1 + $0x60] sm:$0xff]
        %v207 = vld [vmem:[%s1 + $0x68] sm:$0xff]
        %v208 = vld [vmem:[%s1 + $0x70] sm:$0xff]
        %v209 = vld [vmem:[%s1 + $0x78] sm:$0xff]
        %v210 = vld [vmem:[%s2] sm:$0xff]
        %v211 = vld [vmem:[%s2 + $0x8] sm:$0xff]
        %v212 = vld [vmem:[%s2 + $0x10] sm:$0xff]
        %v213 = vld [vmem:[%s2 + $0x18] sm:$0xff]
        %v214 = vld [vmem:[%s2 + $0x20] sm:$0xff]
        %v215 = vld [vmem:[%s2 + $0x28] sm:$0xff]
        %v216 = vld [vmem:[%s2 + $0x30] sm:$0xff]
        %v217 = vld [vmem:[%s2 + $0x38] sm:$0xff]
        %v218 = vld [vmem:[%s2 + $0x40] sm:$0xff]
        %v219 = vld [vmem:[%s2 + $0x48] sm:$0xff]
        %v220 = vld [vmem:[%s2 + $0x50] sm:$0xff]
        %v221 = vld [vmem:[%s2 + $0x58] sm:$0xff]
        %v222 = vld [vmem:[%s2 + $0x60] sm:$0xff]
        %v223 = vld [vmem:[%s2 + $0x68] sm:$0xff]
        %v224 = vld [vmem:[%s2 + $0x70] sm:$0xff]
        %v225 = vld [vmem:[%s2 + $0x78] sm:$0xff]
        %v226 = vld [vmem:[%s192] sm:$0xff]
        %v227 = vlaneseq
        %v228 = vand.u32 %v227, 127
        %vm229 = vcmp.lt.s32.totalorder %v228, 10
        %vm230 = vcmp.ge.s32.totalorder %v228, 118
        %231 = vmatpush.msra.mxu0 %v209
        %232 = vmatpush.msra.mxu0 %v208
        %233 = vmatpush.msra.mxu0 %v207
        %234 = vmatpush.msra.mxu0 %v206
        %235 = vmatpush.msra.mxu0 %v205
        %236 = vmatpush.msra.mxu0 %v204
        %237 = vmatpush.msra.mxu0 %v203
        %238 = vmatpush.msra.mxu0 %v202
        %239 = vmatpush.msra.mxu0 %v201
        %240 = vmatpush.msra.mxu0 %v200
        %241 = vmatpush.msra.mxu0 %v199
        %242 = vmatpush.msra.mxu0 %v198
        %243 = vmatpush.msra.mxu0 %v197
        %244 = vmatpush.msra.mxu0 %v196
        %245 = vmatpush.msra.mxu0 %v195
        %246 = vmatpush.msra.mxu0 %v194
        %247 = vmatmul.f32.gmra.mxu0 %v226
        %v248 = vpop.f32.mrf.mxu0
        %v249 = vadd.f32 0.0, %v248
        %250 = vdwg.mxu0
        %251 = vmatpush.msra.mxu0 %v225
        %252 = vmatpush.msra.mxu0 %v224
        %253 = vmatpush.msra.mxu0 %v223
        %254 = vmatpush.msra.mxu0 %v222
        %255 = vmatpush.msra.mxu0 %v221
        %256 = vmatpush.msra.mxu0 %v220
        %257 = vmatpush.msra.mxu0 %v219
        %258 = vmatpush.msra.mxu0 %v218
        %259 = vmatpush.msra.mxu0 %v217
        %260 = vmatpush.msra.mxu0 %v216
        %261 = vmatpush.msra.mxu0 %v215
        %262 = vmatpush.msra.mxu0 %v214
        %263 = vmatpush.msra.mxu0 %v213
        %264 = vmatpush.msra.mxu0 %v212
        %265 = vmatpush.msra.mxu0 %v211
        %266 = vmatpush.msra.mxu0 %v210
        %267 = vmatmul.f32.gmra.mxu0 %v226
        %v268 = vpop.f32.mrf.mxu0
        %v269 = vadd.f32 0.0, %v268
        %270 = vdwg.mxu0
        %vm271 = vcmask 195584
        %v273 = vsel %vm271, %v193, 0
        %275 = vmatpush.msra.mxu0 0.0
        %276 = vmatpush.msra.mxu0 0.0
        %277 = vmatpush.msra.mxu0 0.0
        %278 = vmatpush.msra.mxu0 0.0
        %279 = vmatpush.msra.mxu0 0.0
        %280 = vmatpush.msra.mxu0 0.0
        %281 = vmatpush.msra.mxu0 0.0
        %282 = vmatpush.msra.mxu0 0.0
        %283 = vmatpush.msra.mxu0 0.0
        %284 = vmatpush.msra.mxu0 0.0
        %285 = vmatpush.msra.mxu0 0.0
        %286 = vmatpush.msra.mxu0 0.0
        %287 = vmatpush.msra.mxu0 0.0
        %288 = vmatpush.msra.mxu0 %v269
        %289 = vmatpush.msra.mxu0 %v226
        %290 = vmatpush.msra.mxu0 %v249
        %291 = vmatmul.f32.gmra.mxu0 %v273
        %v292 = vpop.f32.mrf.mxu0
        %v293 = vadd.f32 0.0, %v292
        %294 = vdwg.mxu0
        %v295 = vmul.f32 %v293, 0.001
        %v296 = vadd.f32 %v226, %v295
        %298 = vset.pattern.permute.xlu0 10
        %299 = vperm.xlu0 %298, %v296
        %v300 = vpop.permute.xlu0 %299
        %v302 = vsel %vm229, %v300, %v296
        %303 = vset.pattern.permute.xlu0 117
        %304 = vperm.xlu0 %303, %v296
        %v305 = vpop.permute.xlu0 %304
        %v307 = vsel %vm230, %v305, %v302
        %v308 = vmul.f32 %v226, 0.75
        %v309 = vmul.f32 %v307, 0.25
        %v310 = vadd.f32 %v308, %v309
        %311 = vmatpush.msra.mxu0 %v209
        %312 = vmatpush.msra.mxu0 %v208
        %313 = vmatpush.msra.mxu0 %v207
        %314 = vmatpush.msra.mxu0 %v206
        %315 = vmatpush.msra.mxu0 %v205
        %316 = vmatpush.msra.mxu0 %v204
        %317 = vmatpush.msra.mxu0 %v203
        %318 = vmatpush.msra.mxu0 %v202
        %319 = vmatpush.msra.mxu0 %v201
        %320 = vmatpush.msra.mxu0 %v200
        %321 = vmatpush.msra.mxu0 %v199
        %322 = vmatpush.msra.mxu0 %v198
        %323 = vmatpush.msra.mxu0 %v197
        %324 = vmatpush.msra.mxu0 %v196
        %325 = vmatpush.msra.mxu0 %v195
        %326 = vmatpush.msra.mxu0 %v194
        %327 = vmatmul.f32.gmra.mxu0 %v307
        %v328 = vpop.f32.mrf.mxu0
        %v329 = vadd.f32 0.0, %v328
        %330 = vdwg.mxu0
        %331 = vmatpush.msra.mxu0 %v225
        %332 = vmatpush.msra.mxu0 %v224
        %333 = vmatpush.msra.mxu0 %v223
        %334 = vmatpush.msra.mxu0 %v222
        %335 = vmatpush.msra.mxu0 %v221
        %336 = vmatpush.msra.mxu0 %v220
        %337 = vmatpush.msra.mxu0 %v219
        %338 = vmatpush.msra.mxu0 %v218
        %339 = vmatpush.msra.mxu0 %v217
        %340 = vmatpush.msra.mxu0 %v216
        %341 = vmatpush.msra.mxu0 %v215
        %342 = vmatpush.msra.mxu0 %v214
        %343 = vmatpush.msra.mxu0 %v213
        %344 = vmatpush.msra.mxu0 %v212
        %345 = vmatpush.msra.mxu0 %v211
        %346 = vmatpush.msra.mxu0 %v210
        %347 = vmatmul.f32.gmra.mxu0 %v307
        %v348 = vpop.f32.mrf.mxu0
        %v349 = vadd.f32 0.0, %v348
        %350 = vdwg.mxu0
        %351 = vmatpush.msra.mxu0 0.0
        %352 = vmatpush.msra.mxu0 0.0
        %353 = vmatpush.msra.mxu0 0.0
        %354 = vmatpush.msra.mxu0 0.0
        %355 = vmatpush.msra.mxu0 0.0
        %356 = vmatpush.msra.mxu0 0.0
        %357 = vmatpush.msra.mxu0 0.0
        %358 = vmatpush.msra.mxu0 0.0
        %359 = vmatpush.msra.mxu0 0.0
        %360 = vmatpush.msra.mxu0 0.0
        %361 = vmatpush.msra.mxu0 0.0
        %362 = vmatpush.msra.mxu0 0.0
        %363 = vmatpush.msra.mxu0 0.0
        %364 = vmatpush.msra.mxu0 %v349
        %365 = vmatpush.msra.mxu0 %v307
        %366 = vmatpush.msra.mxu0 %v329
        %367 = vmatmul.f32.gmra.mxu0 %v273
        %v368 = vpop.f32.mrf.mxu0
        %v369 = vadd.f32 0.0, %v368
        %370 = vdwg.mxu0
        %v371 = vmul.f32 %v369, 0.00025
        %v372 = vadd.f32 %v310, %v371
        %374 = vset.pattern.permute.xlu0 10
        %375 = vperm.xlu0 %374, %v372
        %v376 = vpop.permute.xlu0 %375
        %v378 = vsel %vm229, %v376, %v372
        %379 = vset.pattern.permute.xlu0 117
        %380 = vperm.xlu0 %379, %v372
        %v381 = vpop.permute.xlu0 %380
        %v383 = vsel %vm230, %v381, %v378
        %v384 = vrcp.pop 3.0
        %v385 = vmul.f32 3.0, %v384
        %v386 = vsub.f32 1.0, %v385
        %v387 = vmul.f32 %v384, %v386
        %v388 = vadd.f32 %v384, %v387
        %vm389 = vweird.f32 %v384
        %v390 = vsel %vm389, %v384, %v388
        %v391 = vmul.f32 %v226, %v390
        %v392 = vmul.f32 %v383, 2.0
        %v393 = vmul.f32 %v392, %v390
        %v394 = vadd.f32 %v391, %v393
        %395 = vmatpush.msra.mxu0 %v209
        %396 = vmatpush.msra.mxu0 %v208
        %397 = vmatpush.msra.mxu0 %v207
        %398 = vmatpush.msra.mxu0 %v206
        %399 = vmatpush.msra.mxu0 %v205
        %400 = vmatpush.msra.mxu0 %v204
        %401 = vmatpush.msra.mxu0 %v203
        %402 = vmatpush.msra.mxu0 %v202
        %403 = vmatpush.msra.mxu0 %v201
        %404 = vmatpush.msra.mxu0 %v200
        %405 = vmatpush.msra.mxu0 %v199
        %406 = vmatpush.msra.mxu0 %v198
        %407 = vmatpush.msra.mxu0 %v197
        %408 = vmatpush.msra.mxu0 %v196
        %409 = vmatpush.msra.mxu0 %v195
        %410 = vmatpush.msra.mxu0 %v194
        %411 = vmatmul.f32.gmra.mxu0 %v383
        %v412 = vpop.f32.mrf.mxu0
        %v413 = vadd.f32 0.0, %v412
        %414 = vdwg.mxu0
        %415 = vmatpush.msra.mxu0 %v225
        %416 = vmatpush.msra.mxu0 %v224
        %417 = vmatpush.msra.mxu0 %v223
        %418 = vmatpush.msra.mxu0 %v222
        %419 = vmatpush.msra.mxu0 %v221
        %420 = vmatpush.msra.mxu0 %v220
        %421 = vmatpush.msra.mxu0 %v219
        %422 = vmatpush.msra.mxu0 %v218
        %423 = vmatpush.msra.mxu0 %v217
        %424 = vmatpush.msra.mxu0 %v216
        %425 = vmatpush.msra.mxu0 %v215
        %426 = vmatpush.msra.mxu0 %v214
        %427 = vmatpush.msra.mxu0 %v213
        %428 = vmatpush.msra.mxu0 %v212
        %429 = vmatpush.msra.mxu0 %v211
        %430 = vmatpush.msra.mxu0 %v210
        %431 = vmatmul.f32.gmra.mxu0 %v383
        %v432 = vpop.f32.mrf.mxu0
        %v433 = vadd.f32 0.0, %v432
        %434 = vdwg.mxu0
        %435 = vmatpush.msra.mxu0 0.0
        %436 = vmatpush.msra.mxu0 0.0
        %437 = vmatpush.msra.mxu0 0.0
        %438 = vmatpush.msra.mxu0 0.0
        %439 = vmatpush.msra.mxu0 0.0
        %440 = vmatpush.msra.mxu0 0.0
        %441 = vmatpush.msra.mxu0 0.0
        %442 = vmatpush.msra.mxu0 0.0
        %443 = vmatpush.msra.mxu0 0.0
        %444 = vmatpush.msra.mxu0 0.0
        %445 = vmatpush.msra.mxu0 0.0
        %446 = vmatpush.msra.mxu0 0.0
        %447 = vmatpush.msra.mxu0 0.0
        %448 = vmatpush.msra.mxu0 %v433
        %449 = vmatpush.msra.mxu0 %v383
        %450 = vmatpush.msra.mxu0 %v413
        %451 = vmatmul.f32.gmra.mxu0 %v273
        %v452 = vpop.f32.mrf.mxu0
        %v453 = vadd.f32 0.0, %v452
        %454 = vdwg.mxu0
        %v455 = vmul.f32 %v453, 0.002
        %v456 = vmul.f32 %v455, %v390
        %v457 = vadd.f32 %v394, %v456
        %459 = vset.pattern.permute.xlu0 10
        %460 = vperm.xlu0 %459, %v457
        %v461 = vpop.permute.xlu0 %460
        %v463 = vsel %vm229, %v461, %v457
        %464 = vset.pattern.permute.xlu0 117
        %465 = vperm.xlu0 %464, %v457
        %v466 = vpop.permute.xlu0 %465
        %v468 = vsel %vm230, %v466, %v463
        %469 = vmatpush.msra.mxu0 %v209
        %470 = vmatpush.msra.mxu0 %v208
        %471 = vmatpush.msra.mxu0 %v207
        %472 = vmatpush.msra.mxu0 %v206
        %473 = vmatpush.msra.mxu0 %v205
        %474 = vmatpush.msra.mxu0 %v204
        %475 = vmatpush.msra.mxu0 %v203
        %476 = vmatpush.msra.mxu0 %v202
        %477 = vmatpush.msra.mxu0 %v201
        %478 = vmatpush.msra.mxu0 %v200
        %479 = vmatpush.msra.mxu0 %v199
        %480 = vmatpush.msra.mxu0 %v198
        %481 = vmatpush.msra.mxu0 %v197
        %482 = vmatpush.msra.mxu0 %v196
        %483 = vmatpush.msra.mxu0 %v195
        %484 = vmatpush.msra.mxu0 %v194
        %485 = vmatmul.f32.gmra.mxu0 %v468
        %v486 = vpop.f32.mrf.mxu0
        %v487 = vadd.f32 0.0, %v486
        %488 = vdwg.mxu0
        %489 = vmatpush.msra.mxu0 %v225
        %490 = vmatpush.msra.mxu0 %v224
        %491 = vmatpush.msra.mxu0 %v223
        %492 = vmatpush.msra.mxu0 %v222
        %493 = vmatpush.msra.mxu0 %v221
        %494 = vmatpush.msra.mxu0 %v220
        %495 = vmatpush.msra.mxu0 %v219
        %496 = vmatpush.msra.mxu0 %v218
        %497 = vmatpush.msra.mxu0 %v217
        %498 = vmatpush.msra.mxu0 %v216
        %499 = vmatpush.msra.mxu0 %v215
        %500 = vmatpush.msra.mxu0 %v214
        %501 = vmatpush.msra.mxu0 %v213
        %502 = vmatpush.msra.mxu0 %v212
        %503 = vmatpush.msra.mxu0 %v211
        %504 = vmatpush.msra.mxu0 %v210
        %505 = vmatmul.f32.gmra.mxu0 %v468
        %v506 = vpop.f32.mrf.mxu0
        %v507 = vadd.f32 0.0, %v506
        %508 = vdwg.mxu0
        %509 = vmatpush.msra.mxu0 0.0
        %510 = vmatpush.msra.mxu0 0.0
        %511 = vmatpush.msra.mxu0 0.0
        %512 = vmatpush.msra.mxu0 0.0
        %513 = vmatpush.msra.mxu0 0.0
        %514 = vmatpush.msra.mxu0 0.0
        %515 = vmatpush.msra.mxu0 0.0
        %516 = vmatpush.msra.mxu0 0.0
        %517 = vmatpush.msra.mxu0 0.0
        %518 = vmatpush.msra.mxu0 0.0
        %519 = vmatpush.msra.mxu0 0.0
        %520 = vmatpush.msra.mxu0 0.0
        %521 = vmatpush.msra.mxu0 0.0
        %522 = vmatpush.msra.mxu0 %v507
        %523 = vmatpush.msra.mxu0 %v468
        %524 = vmatpush.msra.mxu0 %v487
        %525 = vmatmul.f32.gmra.mxu0 %v273
        %v526 = vpop.f32.mrf.mxu0
        %v527 = vadd.f32 0.0, %v526
        %528 = vdwg.mxu0
        %v529 = vmul.f32 %v527, 0.001
        %v530 = vadd.f32 %v468, %v529
        %532 = vset.pattern.permute.xlu0 10
        %533 = vperm.xlu0 %532, %v530
        %v534 = vpop.permute.xlu0 %533
        %v536 = vsel %vm229, %v534, %v530
        %537 = vset.pattern.permute.xlu0 117
        %538 = vperm.xlu0 %537, %v530
        %v539 = vpop.permute.xlu0 %538
        %v541 = vsel %vm230, %v539, %v536
        %v542 = vmul.f32 %v468, 0.75
        %v543 = vmul.f32 %v541, 0.25
        %v544 = vadd.f32 %v542, %v543
        %545 = vmatpush.msra.mxu0 %v209
        %546 = vmatpush.msra.mxu0 %v208
        %547 = vmatpush.msra.mxu0 %v207
        %548 = vmatpush.msra.mxu0 %v206
        %549 = vmatpush.msra.mxu0 %v205
        %550 = vmatpush.msra.mxu0 %v204
        %551 = vmatpush.msra.mxu0 %v203
        %552 = vmatpush.msra.mxu0 %v202
        %553 = vmatpush.msra.mxu0 %v201
        %554 = vmatpush.msra.mxu0 %v200
        %555 = vmatpush.msra.mxu0 %v199
        %556 = vmatpush.msra.mxu0 %v198
        %557 = vmatpush.msra.mxu0 %v197
        %558 = vmatpush.msra.mxu0 %v196
        %559 = vmatpush.msra.mxu0 %v195
        %560 = vmatpush.msra.mxu0 %v194
        %561 = vmatmul.f32.gmra.mxu0 %v541
        %v562 = vpop.f32.mrf.mxu0
        %v563 = vadd.f32 0.0, %v562
        %564 = vdwg.mxu0
        %565 = vmatpush.msra.mxu0 %v225
        %566 = vmatpush.msra.mxu0 %v224
        %567 = vmatpush.msra.mxu0 %v223
        %568 = vmatpush.msra.mxu0 %v222
        %569 = vmatpush.msra.mxu0 %v221
        %570 = vmatpush.msra.mxu0 %v220
        %571 = vmatpush.msra.mxu0 %v219
        %572 = vmatpush.msra.mxu0 %v218
        %573 = vmatpush.msra.mxu0 %v217
        %574 = vmatpush.msra.mxu0 %v216
        %575 = vmatpush.msra.mxu0 %v215
        %576 = vmatpush.msra.mxu0 %v214
        %577 = vmatpush.msra.mxu0 %v213
        %578 = vmatpush.msra.mxu0 %v212
        %579 = vmatpush.msra.mxu0 %v211
        %580 = vmatpush.msra.mxu0 %v210
        %581 = vmatmul.f32.gmra.mxu0 %v541
        %v582 = vpop.f32.mrf.mxu0
        %v583 = vadd.f32 0.0, %v582
        %584 = vdwg.mxu0
        %585 = vmatpush.msra.mxu0 0.0
        %586 = vmatpush.msra.mxu0 0.0
        %587 = vmatpush.msra.mxu0 0.0
        %588 = vmatpush.msra.mxu0 0.0
        %589 = vmatpush.msra.mxu0 0.0
        %590 = vmatpush.msra.mxu0 0.0
        %591 = vmatpush.msra.mxu0 0.0
        %592 = vmatpush.msra.mxu0 0.0
        %593 = vmatpush.msra.mxu0 0.0
        %594 = vmatpush.msra.mxu0 0.0
        %595 = vmatpush.msra.mxu0 0.0
        %596 = vmatpush.msra.mxu0 0.0
        %597 = vmatpush.msra.mxu0 0.0
        %598 = vmatpush.msra.mxu0 %v583
        %599 = vmatpush.msra.mxu0 %v541
        %600 = vmatpush.msra.mxu0 %v563
        %601 = vmatmul.f32.gmra.mxu0 %v273
        %v602 = vpop.f32.mrf.mxu0
        %v603 = vadd.f32 0.0, %v602
        %604 = vdwg.mxu0
        %v605 = vmul.f32 %v603, 0.00025
        %v606 = vadd.f32 %v544, %v605
        %608 = vset.pattern.permute.xlu0 10
        %609 = vperm.xlu0 %608, %v606
        %v610 = vpop.permute.xlu0 %609
        %v612 = vsel %vm229, %v610, %v606
        %613 = vset.pattern.permute.xlu0 117
        %614 = vperm.xlu0 %613, %v606
        %v615 = vpop.permute.xlu0 %614
        %v617 = vsel %vm230, %v615, %v612
        %v618 = vmul.f32 %v468, %v390
        %v619 = vmul.f32 %v617, 2.0
        %v620 = vmul.f32 %v619, %v390
        %v621 = vadd.f32 %v618, %v620
        %622 = vmatpush.msra.mxu0 %v209
        %623 = vmatpush.msra.mxu0 %v208
        %624 = vmatpush.msra.mxu0 %v207
        %625 = vmatpush.msra.mxu0 %v206
        %626 = vmatpush.msra.mxu0 %v205
        %627 = vmatpush.msra.mxu0 %v204
        %628 = vmatpush.msra.mxu0 %v203
        %629 = vmatpush.msra.mxu0 %v202
        %630 = vmatpush.msra.mxu0 %v201
        %631 = vmatpush.msra.mxu0 %v200
        %632 = vmatpush.msra.mxu0 %v199
        %633 = vmatpush.msra.mxu0 %v198
        %634 = vmatpush.msra.mxu0 %v197
        %635 = vmatpush.msra.mxu0 %v196
        %636 = vmatpush.msra.mxu0 %v195
        %637 = vmatpush.msra.mxu0 %v194
        %638 = vmatmul.f32.gmra.mxu0 %v617
        %v639 = vpop.f32.mrf.mxu0
        %v640 = vadd.f32 0.0, %v639
        %641 = vdwg.mxu0
        %642 = vmatpush.msra.mxu0 %v225
        %643 = vmatpush.msra.mxu0 %v224
        %644 = vmatpush.msra.mxu0 %v223
        %645 = vmatpush.msra.mxu0 %v222
        %646 = vmatpush.msra.mxu0 %v221
        %647 = vmatpush.msra.mxu0 %v220
        %648 = vmatpush.msra.mxu0 %v219
        %649 = vmatpush.msra.mxu0 %v218
        %650 = vmatpush.msra.mxu0 %v217
        %651 = vmatpush.msra.mxu0 %v216
        %652 = vmatpush.msra.mxu0 %v215
        %653 = vmatpush.msra.mxu0 %v214
        %654 = vmatpush.msra.mxu0 %v213
        %655 = vmatpush.msra.mxu0 %v212
        %656 = vmatpush.msra.mxu0 %v211
        %657 = vmatpush.msra.mxu0 %v210
        %658 = vmatmul.f32.gmra.mxu0 %v617
        %v659 = vpop.f32.mrf.mxu0
        %v660 = vadd.f32 0.0, %v659
        %661 = vdwg.mxu0
        %662 = vmatpush.msra.mxu0 0.0
        %663 = vmatpush.msra.mxu0 0.0
        %664 = vmatpush.msra.mxu0 0.0
        %665 = vmatpush.msra.mxu0 0.0
        %666 = vmatpush.msra.mxu0 0.0
        %667 = vmatpush.msra.mxu0 0.0
        %668 = vmatpush.msra.mxu0 0.0
        %669 = vmatpush.msra.mxu0 0.0
        %670 = vmatpush.msra.mxu0 0.0
        %671 = vmatpush.msra.mxu0 0.0
        %672 = vmatpush.msra.mxu0 0.0
        %673 = vmatpush.msra.mxu0 0.0
        %674 = vmatpush.msra.mxu0 0.0
        %675 = vmatpush.msra.mxu0 %v660
        %676 = vmatpush.msra.mxu0 %v617
        %677 = vmatpush.msra.mxu0 %v640
        %678 = vmatmul.f32.gmra.mxu0 %v273
        %v679 = vpop.f32.mrf.mxu0
        %v680 = vadd.f32 0.0, %v679
        %681 = vdwg.mxu0
        %v682 = vmul.f32 %v680, 0.002
        %v683 = vmul.f32 %v682, %v390
        %v684 = vadd.f32 %v621, %v683
        %686 = vset.pattern.permute.xlu0 10
        %687 = vperm.xlu0 %686, %v684
        %v688 = vpop.permute.xlu0 %687
        %v690 = vsel %vm229, %v688, %v684
        %691 = vset.pattern.permute.xlu0 117
        %692 = vperm.xlu0 %691, %v684
        %v693 = vpop.permute.xlu0 %692
        %v695 = vsel %vm230, %v693, %v690
        %696 = vmatpush.msra.mxu0 %v209
        %697 = vmatpush.msra.mxu0 %v208
        %698 = vmatpush.msra.mxu0 %v207
        %699 = vmatpush.msra.mxu0 %v206
        %700 = vmatpush.msra.mxu0 %v205
        %701 = vmatpush.msra.mxu0 %v204
        %702 = vmatpush.msra.mxu0 %v203
        %703 = vmatpush.msra.mxu0 %v202
        %704 = vmatpush.msra.mxu0 %v201
        %705 = vmatpush.msra.mxu0 %v200
        %706 = vmatpush.msra.mxu0 %v199
        %707 = vmatpush.msra.mxu0 %v198
        %708 = vmatpush.msra.mxu0 %v197
        %709 = vmatpush.msra.mxu0 %v196
        %710 = vmatpush.msra.mxu0 %v195
        %711 = vmatpush.msra.mxu0 %v194
        %712 = vmatmul.f32.gmra.mxu0 %v695
        %v713 = vpop.f32.mrf.mxu0
        %v714 = vadd.f32 0.0, %v713
        %715 = vdwg.mxu0
        %716 = vmatpush.msra.mxu0 %v225
        %717 = vmatpush.msra.mxu0 %v224
        %718 = vmatpush.msra.mxu0 %v223
        %719 = vmatpush.msra.mxu0 %v222
        %720 = vmatpush.msra.mxu0 %v221
        %721 = vmatpush.msra.mxu0 %v220
        %722 = vmatpush.msra.mxu0 %v219
        %723 = vmatpush.msra.mxu0 %v218
        %724 = vmatpush.msra.mxu0 %v217
        %725 = vmatpush.msra.mxu0 %v216
        %726 = vmatpush.msra.mxu0 %v215
        %727 = vmatpush.msra.mxu0 %v214
        %728 = vmatpush.msra.mxu0 %v213
        %729 = vmatpush.msra.mxu0 %v212
        %730 = vmatpush.msra.mxu0 %v211
        %731 = vmatpush.msra.mxu0 %v210
        %732 = vmatmul.f32.gmra.mxu0 %v695
        %v733 = vpop.f32.mrf.mxu0
        %v734 = vadd.f32 0.0, %v733
        %735 = vdwg.mxu0
        %736 = vmatpush.msra.mxu0 0.0
        %737 = vmatpush.msra.mxu0 0.0
        %738 = vmatpush.msra.mxu0 0.0
        %739 = vmatpush.msra.mxu0 0.0
        %740 = vmatpush.msra.mxu0 0.0
        %741 = vmatpush.msra.mxu0 0.0
        %742 = vmatpush.msra.mxu0 0.0
        %743 = vmatpush.msra.mxu0 0.0
        %744 = vmatpush.msra.mxu0 0.0
        %745 = vmatpush.msra.mxu0 0.0
        %746 = vmatpush.msra.mxu0 0.0
        %747 = vmatpush.msra.mxu0 0.0
        %748 = vmatpush.msra.mxu0 0.0
        %749 = vmatpush.msra.mxu0 %v734
        %750 = vmatpush.msra.mxu0 %v695
        %751 = vmatpush.msra.mxu0 %v714
        %752 = vmatmul.f32.gmra.mxu0 %v273
        %v753 = vpop.f32.mrf.mxu0
        %v754 = vadd.f32 0.0, %v753
        %755 = vdwg.mxu0
        %v756 = vmul.f32 %v754, 0.001
        %v757 = vadd.f32 %v695, %v756
        %759 = vset.pattern.permute.xlu0 10
        %760 = vperm.xlu0 %759, %v757
        %v761 = vpop.permute.xlu0 %760
        %v763 = vsel %vm229, %v761, %v757
        %764 = vset.pattern.permute.xlu0 117
        %765 = vperm.xlu0 %764, %v757
        %v766 = vpop.permute.xlu0 %765
        %v768 = vsel %vm230, %v766, %v763
        %v769 = vmul.f32 %v695, 0.75
        %v770 = vmul.f32 %v768, 0.25
        %v771 = vadd.f32 %v769, %v770
        %772 = vmatpush.msra.mxu0 %v209
        %773 = vmatpush.msra.mxu0 %v208
        %774 = vmatpush.msra.mxu0 %v207
        %775 = vmatpush.msra.mxu0 %v206
        %776 = vmatpush.msra.mxu0 %v205
        %777 = vmatpush.msra.mxu0 %v204
        %778 = vmatpush.msra.mxu0 %v203
        %779 = vmatpush.msra.mxu0 %v202
        %780 = vmatpush.msra.mxu0 %v201
        %781 = vmatpush.msra.mxu0 %v200
        %782 = vmatpush.msra.mxu0 %v199
        %783 = vmatpush.msra.mxu0 %v198
        %784 = vmatpush.msra.mxu0 %v197
        %785 = vmatpush.msra.mxu0 %v196
        %786 = vmatpush.msra.mxu0 %v195
        %787 = vmatpush.msra.mxu0 %v194
        %788 = vmatmul.f32.gmra.mxu0 %v768
        %v789 = vpop.f32.mrf.mxu0
        %v790 = vadd.f32 0.0, %v789
        %791 = vdwg.mxu0
        %792 = vmatpush.msra.mxu0 %v225
        %793 = vmatpush.msra.mxu0 %v224
        %794 = vmatpush.msra.mxu0 %v223
        %795 = vmatpush.msra.mxu0 %v222
        %796 = vmatpush.msra.mxu0 %v221
        %797 = vmatpush.msra.mxu0 %v220
        %798 = vmatpush.msra.mxu0 %v219
        %799 = vmatpush.msra.mxu0 %v218
        %800 = vmatpush.msra.mxu0 %v217
        %801 = vmatpush.msra.mxu0 %v216
        %802 = vmatpush.msra.mxu0 %v215
        %803 = vmatpush.msra.mxu0 %v214
        %804 = vmatpush.msra.mxu0 %v213
        %805 = vmatpush.msra.mxu0 %v212
        %806 = vmatpush.msra.mxu0 %v211
        %807 = vmatpush.msra.mxu0 %v210
        %808 = vmatmul.f32.gmra.mxu0 %v768
        %v809 = vpop.f32.mrf.mxu0
        %v810 = vadd.f32 0.0, %v809
        %811 = vdwg.mxu0
        %812 = vmatpush.msra.mxu0 0.0
        %813 = vmatpush.msra.mxu0 0.0
        %814 = vmatpush.msra.mxu0 0.0
        %815 = vmatpush.msra.mxu0 0.0
        %816 = vmatpush.msra.mxu0 0.0
        %817 = vmatpush.msra.mxu0 0.0
        %818 = vmatpush.msra.mxu0 0.0
        %819 = vmatpush.msra.mxu0 0.0
        %820 = vmatpush.msra.mxu0 0.0
        %821 = vmatpush.msra.mxu0 0.0
        %822 = vmatpush.msra.mxu0 0.0
        %823 = vmatpush.msra.mxu0 0.0
        %824 = vmatpush.msra.mxu0 0.0
        %825 = vmatpush.msra.mxu0 %v810
        %826 = vmatpush.msra.mxu0 %v768
        %827 = vmatpush.msra.mxu0 %v790
        %828 = vmatmul.f32.gmra.mxu0 %v273
        %v829 = vpop.f32.mrf.mxu0
        %v830 = vadd.f32 0.0, %v829
        %831 = vdwg.mxu0
        %v832 = vmul.f32 %v830, 0.00025
        %v833 = vadd.f32 %v771, %v832
        %835 = vset.pattern.permute.xlu0 10
        %836 = vperm.xlu0 %835, %v833
        %v837 = vpop.permute.xlu0 %836
        %v839 = vsel %vm229, %v837, %v833
        %840 = vset.pattern.permute.xlu0 117
        %841 = vperm.xlu0 %840, %v833
        %v842 = vpop.permute.xlu0 %841
        %v844 = vsel %vm230, %v842, %v839
        %v845 = vmul.f32 %v695, %v390
        %v846 = vmul.f32 %v844, 2.0
        %v847 = vmul.f32 %v846, %v390
        %v848 = vadd.f32 %v845, %v847
        %849 = vmatpush.msra.mxu0 %v209
        %850 = vmatpush.msra.mxu0 %v208
        %851 = vmatpush.msra.mxu0 %v207
        %852 = vmatpush.msra.mxu0 %v206
        %853 = vmatpush.msra.mxu0 %v205
        %854 = vmatpush.msra.mxu0 %v204
        %855 = vmatpush.msra.mxu0 %v203
        %856 = vmatpush.msra.mxu0 %v202
        %857 = vmatpush.msra.mxu0 %v201
        %858 = vmatpush.msra.mxu0 %v200
        %859 = vmatpush.msra.mxu0 %v199
        %860 = vmatpush.msra.mxu0 %v198
        %861 = vmatpush.msra.mxu0 %v197
        %862 = vmatpush.msra.mxu0 %v196
        %863 = vmatpush.msra.mxu0 %v195
        %864 = vmatpush.msra.mxu0 %v194
        %865 = vmatmul.f32.gmra.mxu0 %v844
        %v866 = vpop.f32.mrf.mxu0
        %v867 = vadd.f32 0.0, %v866
        %868 = vdwg.mxu0
        %869 = vmatpush.msra.mxu0 %v225
        %870 = vmatpush.msra.mxu0 %v224
        %871 = vmatpush.msra.mxu0 %v223
        %872 = vmatpush.msra.mxu0 %v222
        %873 = vmatpush.msra.mxu0 %v221
        %874 = vmatpush.msra.mxu0 %v220
        %875 = vmatpush.msra.mxu0 %v219
        %876 = vmatpush.msra.mxu0 %v218
        %877 = vmatpush.msra.mxu0 %v217
        %878 = vmatpush.msra.mxu0 %v216
        %879 = vmatpush.msra.mxu0 %v215
        %880 = vmatpush.msra.mxu0 %v214
        %881 = vmatpush.msra.mxu0 %v213
        %882 = vmatpush.msra.mxu0 %v212
        %883 = vmatpush.msra.mxu0 %v211
        %884 = vmatpush.msra.mxu0 %v210
        %885 = vmatmul.f32.gmra.mxu0 %v844
        %v886 = vpop.f32.mrf.mxu0
        %v887 = vadd.f32 0.0, %v886
        %888 = vdwg.mxu0
        %889 = vmatpush.msra.mxu0 0.0
        %890 = vmatpush.msra.mxu0 0.0
        %891 = vmatpush.msra.mxu0 0.0
        %892 = vmatpush.msra.mxu0 0.0
        %893 = vmatpush.msra.mxu0 0.0
        %894 = vmatpush.msra.mxu0 0.0
        %895 = vmatpush.msra.mxu0 0.0
        %896 = vmatpush.msra.mxu0 0.0
        %897 = vmatpush.msra.mxu0 0.0
        %898 = vmatpush.msra.mxu0 0.0
        %899 = vmatpush.msra.mxu0 0.0
        %900 = vmatpush.msra.mxu0 0.0
        %901 = vmatpush.msra.mxu0 0.0
        %902 = vmatpush.msra.mxu0 %v887
        %903 = vmatpush.msra.mxu0 %v844
        %904 = vmatpush.msra.mxu0 %v867
        %905 = vmatmul.f32.gmra.mxu0 %v273
        %v906 = vpop.f32.mrf.mxu0
        %v907 = vadd.f32 0.0, %v906
        %908 = vdwg.mxu0
        %v909 = vmul.f32 %v907, 0.002
        %v910 = vmul.f32 %v909, %v390
        %v911 = vadd.f32 %v848, %v910
        %913 = vset.pattern.permute.xlu0 10
        %914 = vperm.xlu0 %913, %v911
        %v915 = vpop.permute.xlu0 %914
        %v917 = vsel %vm229, %v915, %v911
        %918 = vset.pattern.permute.xlu0 117
        %919 = vperm.xlu0 %918, %v911
        %v920 = vpop.permute.xlu0 %919
        %v922 = vsel %vm230, %v920, %v917
        %923 = vmatpush.msra.mxu0 %v209
        %924 = vmatpush.msra.mxu0 %v208
        %925 = vmatpush.msra.mxu0 %v207
        %926 = vmatpush.msra.mxu0 %v206
        %927 = vmatpush.msra.mxu0 %v205
        %928 = vmatpush.msra.mxu0 %v204
        %929 = vmatpush.msra.mxu0 %v203
        %930 = vmatpush.msra.mxu0 %v202
        %931 = vmatpush.msra.mxu0 %v201
        %932 = vmatpush.msra.mxu0 %v200
        %933 = vmatpush.msra.mxu0 %v199
        %934 = vmatpush.msra.mxu0 %v198
        %935 = vmatpush.msra.mxu0 %v197
        %936 = vmatpush.msra.mxu0 %v196
        %937 = vmatpush.msra.mxu0 %v195
        %938 = vmatpush.msra.mxu0 %v194
        %939 = vmatmul.f32.gmra.mxu0 %v922
        %v940 = vpop.f32.mrf.mxu0
        %v941 = vadd.f32 0.0, %v940
        %942 = vdwg.mxu0
        %943 = vmatpush.msra.mxu0 %v225
        %944 = vmatpush.msra.mxu0 %v224
        %945 = vmatpush.msra.mxu0 %v223
        %946 = vmatpush.msra.mxu0 %v222
        %947 = vmatpush.msra.mxu0 %v221
        %948 = vmatpush.msra.mxu0 %v220
        %949 = vmatpush.msra.mxu0 %v219
        %950 = vmatpush.msra.mxu0 %v218
        %951 = vmatpush.msra.mxu0 %v217
        %952 = vmatpush.msra.mxu0 %v216
        %953 = vmatpush.msra.mxu0 %v215
        %954 = vmatpush.msra.mxu0 %v214
        %955 = vmatpush.msra.mxu0 %v213
        %956 = vmatpush.msra.mxu0 %v212
        %957 = vmatpush.msra.mxu0 %v211
        %958 = vmatpush.msra.mxu0 %v210
        %959 = vmatmul.f32.gmra.mxu0 %v922
        %v960 = vpop.f32.mrf.mxu0
        %v961 = vadd.f32 0.0, %v960
        %962 = vdwg.mxu0
        %963 = vmatpush.msra.mxu0 0.0
        %964 = vmatpush.msra.mxu0 0.0
        %965 = vmatpush.msra.mxu0 0.0
        %966 = vmatpush.msra.mxu0 0.0
        %967 = vmatpush.msra.mxu0 0.0
        %968 = vmatpush.msra.mxu0 0.0
        %969 = vmatpush.msra.mxu0 0.0
        %970 = vmatpush.msra.mxu0 0.0
        %971 = vmatpush.msra.mxu0 0.0
        %972 = vmatpush.msra.mxu0 0.0
        %973 = vmatpush.msra.mxu0 0.0
        %974 = vmatpush.msra.mxu0 0.0
        %975 = vmatpush.msra.mxu0 0.0
        %976 = vmatpush.msra.mxu0 %v961
        %977 = vmatpush.msra.mxu0 %v922
        %978 = vmatpush.msra.mxu0 %v941
        %979 = vmatmul.f32.gmra.mxu0 %v273
        %v980 = vpop.f32.mrf.mxu0
        %v981 = vadd.f32 0.0, %v980
        %982 = vdwg.mxu0
        %v983 = vmul.f32 %v981, 0.001
        %v984 = vadd.f32 %v922, %v983
        %986 = vset.pattern.permute.xlu0 10
        %987 = vperm.xlu0 %986, %v984
        %v988 = vpop.permute.xlu0 %987
        %v990 = vsel %vm229, %v988, %v984
        %991 = vset.pattern.permute.xlu0 117
        %992 = vperm.xlu0 %991, %v984
        %v993 = vpop.permute.xlu0 %992
        %v995 = vsel %vm230, %v993, %v990
        %v996 = vmul.f32 %v922, 0.75
        %v997 = vmul.f32 %v995, 0.25
        %v998 = vadd.f32 %v996, %v997
        %999 = vmatpush.msra.mxu0 %v209
        %1000 = vmatpush.msra.mxu0 %v208
        %1001 = vmatpush.msra.mxu0 %v207
        %1002 = vmatpush.msra.mxu0 %v206
        %1003 = vmatpush.msra.mxu0 %v205
        %1004 = vmatpush.msra.mxu0 %v204
        %1005 = vmatpush.msra.mxu0 %v203
        %1006 = vmatpush.msra.mxu0 %v202
        %1007 = vmatpush.msra.mxu0 %v201
        %1008 = vmatpush.msra.mxu0 %v200
        %1009 = vmatpush.msra.mxu0 %v199
        %1010 = vmatpush.msra.mxu0 %v198
        %1011 = vmatpush.msra.mxu0 %v197
        %1012 = vmatpush.msra.mxu0 %v196
        %1013 = vmatpush.msra.mxu0 %v195
        %1014 = vmatpush.msra.mxu0 %v194
        %1015 = vmatmul.f32.gmra.mxu0 %v995
        %v1016 = vpop.f32.mrf.mxu0
        %v1017 = vadd.f32 0.0, %v1016
        %1018 = vdwg.mxu0
        %1019 = vmatpush.msra.mxu0 %v225
        %1020 = vmatpush.msra.mxu0 %v224
        %1021 = vmatpush.msra.mxu0 %v223
        %1022 = vmatpush.msra.mxu0 %v222
        %1023 = vmatpush.msra.mxu0 %v221
        %1024 = vmatpush.msra.mxu0 %v220
        %1025 = vmatpush.msra.mxu0 %v219
        %1026 = vmatpush.msra.mxu0 %v218
        %1027 = vmatpush.msra.mxu0 %v217
        %1028 = vmatpush.msra.mxu0 %v216
        %1029 = vmatpush.msra.mxu0 %v215
        %1030 = vmatpush.msra.mxu0 %v214
        %1031 = vmatpush.msra.mxu0 %v213
        %1032 = vmatpush.msra.mxu0 %v212
        %1033 = vmatpush.msra.mxu0 %v211
        %1034 = vmatpush.msra.mxu0 %v210
        %1035 = vmatmul.f32.gmra.mxu0 %v995
        %v1036 = vpop.f32.mrf.mxu0
        %v1037 = vadd.f32 0.0, %v1036
        %1038 = vdwg.mxu0
        %1039 = vmatpush.msra.mxu0 0.0
        %1040 = vmatpush.msra.mxu0 0.0
        %1041 = vmatpush.msra.mxu0 0.0
        %1042 = vmatpush.msra.mxu0 0.0
        %1043 = vmatpush.msra.mxu0 0.0
        %1044 = vmatpush.msra.mxu0 0.0
        %1045 = vmatpush.msra.mxu0 0.0
        %1046 = vmatpush.msra.mxu0 0.0
        %1047 = vmatpush.msra.mxu0 0.0
        %1048 = vmatpush.msra.mxu0 0.0
        %1049 = vmatpush.msra.mxu0 0.0
        %1050 = vmatpush.msra.mxu0 0.0
        %1051 = vmatpush.msra.mxu0 0.0
        %1052 = vmatpush.msra.mxu0 %v1037
        %1053 = vmatpush.msra.mxu0 %v995
        %1054 = vmatpush.msra.mxu0 %v1017
        %1055 = vmatmul.f32.gmra.mxu0 %v273
        %v1056 = vpop.f32.mrf.mxu0
        %v1057 = vadd.f32 0.0, %v1056
        %1058 = vdwg.mxu0
        %v1059 = vmul.f32 %v1057, 0.00025
        %v1060 = vadd.f32 %v998, %v1059
        %1062 = vset.pattern.permute.xlu0 10
        %1063 = vperm.xlu0 %1062, %v1060
        %v1064 = vpop.permute.xlu0 %1063
        %v1066 = vsel %vm229, %v1064, %v1060
        %1067 = vset.pattern.permute.xlu0 117
        %1068 = vperm.xlu0 %1067, %v1060
        %v1069 = vpop.permute.xlu0 %1068
        %v1071 = vsel %vm230, %v1069, %v1066
        %v1072 = vmul.f32 %v922, %v390
        %v1073 = vmul.f32 %v1071, 2.0
        %v1074 = vmul.f32 %v1073, %v390
        %v1075 = vadd.f32 %v1072, %v1074
        %1076 = vmatpush.msra.mxu0 %v209
        %1077 = vmatpush.msra.mxu0 %v208
        %1078 = vmatpush.msra.mxu0 %v207
        %1079 = vmatpush.msra.mxu0 %v206
        %1080 = vmatpush.msra.mxu0 %v205
        %1081 = vmatpush.msra.mxu0 %v204
        %1082 = vmatpush.msra.mxu0 %v203
        %1083 = vmatpush.msra.mxu0 %v202
        %1084 = vmatpush.msra.mxu0 %v201
        %1085 = vmatpush.msra.mxu0 %v200
        %1086 = vmatpush.msra.mxu0 %v199
        %1087 = vmatpush.msra.mxu0 %v198
        %1088 = vmatpush.msra.mxu0 %v197
        %1089 = vmatpush.msra.mxu0 %v196
        %1090 = vmatpush.msra.mxu0 %v195
        %1091 = vmatpush.msra.mxu0 %v194
        %1092 = vmatmul.f32.gmra.mxu0 %v1071
        %v1093 = vpop.f32.mrf.mxu0
        %v1094 = vadd.f32 0.0, %v1093
        %1095 = vdwg.mxu0
        %1096 = vmatpush.msra.mxu0 %v225
        %1097 = vmatpush.msra.mxu0 %v224
        %1098 = vmatpush.msra.mxu0 %v223
        %1099 = vmatpush.msra.mxu0 %v222
        %1100 = vmatpush.msra.mxu0 %v221
        %1101 = vmatpush.msra.mxu0 %v220
        %1102 = vmatpush.msra.mxu0 %v219
        %1103 = vmatpush.msra.mxu0 %v218
        %1104 = vmatpush.msra.mxu0 %v217
        %1105 = vmatpush.msra.mxu0 %v216
        %1106 = vmatpush.msra.mxu0 %v215
        %1107 = vmatpush.msra.mxu0 %v214
        %1108 = vmatpush.msra.mxu0 %v213
        %1109 = vmatpush.msra.mxu0 %v212
        %1110 = vmatpush.msra.mxu0 %v211
        %1111 = vmatpush.msra.mxu0 %v210
        %1112 = vmatmul.f32.gmra.mxu0 %v1071
        %v1113 = vpop.f32.mrf.mxu0
        %v1114 = vadd.f32 0.0, %v1113
        %1115 = vdwg.mxu0
        %1116 = vmatpush.msra.mxu0 0.0
        %1117 = vmatpush.msra.mxu0 0.0
        %1118 = vmatpush.msra.mxu0 0.0
        %1119 = vmatpush.msra.mxu0 0.0
        %1120 = vmatpush.msra.mxu0 0.0
        %1121 = vmatpush.msra.mxu0 0.0
        %1122 = vmatpush.msra.mxu0 0.0
        %1123 = vmatpush.msra.mxu0 0.0
        %1124 = vmatpush.msra.mxu0 0.0
        %1125 = vmatpush.msra.mxu0 0.0
        %1126 = vmatpush.msra.mxu0 0.0
        %1127 = vmatpush.msra.mxu0 0.0
        %1128 = vmatpush.msra.mxu0 0.0
        %1129 = vmatpush.msra.mxu0 %v1114
        %1130 = vmatpush.msra.mxu0 %v1071
        %1131 = vmatpush.msra.mxu0 %v1094
        %1132 = vmatmul.f32.gmra.mxu0 %v273
        %v1133 = vpop.f32.mrf.mxu0
        %v1134 = vadd.f32 0.0, %v1133
        %1135 = vdwg.mxu0
        %v1136 = vmul.f32 %v1134, 0.002
        %v1137 = vmul.f32 %v1136, %v390
        %v1138 = vadd.f32 %v1075, %v1137
        %1140 = vset.pattern.permute.xlu0 10
        %1141 = vperm.xlu0 %1140, %v1138
        %v1142 = vpop.permute.xlu0 %1141
        %v1144 = vsel %vm229, %v1142, %v1138
        %1145 = vset.pattern.permute.xlu0 117
        %1146 = vperm.xlu0 %1145, %v1138
        %v1147 = vpop.permute.xlu0 %1146
        %v1149 = vsel %vm230, %v1147, %v1144
        %1150 = vmatpush.msra.mxu0 %v209
        %1151 = vmatpush.msra.mxu0 %v208
        %1152 = vmatpush.msra.mxu0 %v207
        %1153 = vmatpush.msra.mxu0 %v206
        %1154 = vmatpush.msra.mxu0 %v205
        %1155 = vmatpush.msra.mxu0 %v204
        %1156 = vmatpush.msra.mxu0 %v203
        %1157 = vmatpush.msra.mxu0 %v202
        %1158 = vmatpush.msra.mxu0 %v201
        %1159 = vmatpush.msra.mxu0 %v200
        %1160 = vmatpush.msra.mxu0 %v199
        %1161 = vmatpush.msra.mxu0 %v198
        %1162 = vmatpush.msra.mxu0 %v197
        %1163 = vmatpush.msra.mxu0 %v196
        %1164 = vmatpush.msra.mxu0 %v195
        %1165 = vmatpush.msra.mxu0 %v194
        %1166 = vmatmul.f32.gmra.mxu0 %v1149
        %v1167 = vpop.f32.mrf.mxu0
        %v1168 = vadd.f32 0.0, %v1167
        %1169 = vdwg.mxu0
        %1170 = vmatpush.msra.mxu0 %v225
        %1171 = vmatpush.msra.mxu0 %v224
        %1172 = vmatpush.msra.mxu0 %v223
        %1173 = vmatpush.msra.mxu0 %v222
        %1174 = vmatpush.msra.mxu0 %v221
        %1175 = vmatpush.msra.mxu0 %v220
        %1176 = vmatpush.msra.mxu0 %v219
        %1177 = vmatpush.msra.mxu0 %v218
        %1178 = vmatpush.msra.mxu0 %v217
        %1179 = vmatpush.msra.mxu0 %v216
        %1180 = vmatpush.msra.mxu0 %v215
        %1181 = vmatpush.msra.mxu0 %v214
        %1182 = vmatpush.msra.mxu0 %v213
        %1183 = vmatpush.msra.mxu0 %v212
        %1184 = vmatpush.msra.mxu0 %v211
        %1185 = vmatpush.msra.mxu0 %v210
        %1186 = vmatmul.f32.gmra.mxu0 %v1149
        %v1187 = vpop.f32.mrf.mxu0
        %v1188 = vadd.f32 0.0, %v1187
        %1189 = vdwg.mxu0
        %1190 = vmatpush.msra.mxu0 0.0
        %1191 = vmatpush.msra.mxu0 0.0
        %1192 = vmatpush.msra.mxu0 0.0
        %1193 = vmatpush.msra.mxu0 0.0
        %1194 = vmatpush.msra.mxu0 0.0
        %1195 = vmatpush.msra.mxu0 0.0
        %1196 = vmatpush.msra.mxu0 0.0
        %1197 = vmatpush.msra.mxu0 0.0
        %1198 = vmatpush.msra.mxu0 0.0
        %1199 = vmatpush.msra.mxu0 0.0
        %1200 = vmatpush.msra.mxu0 0.0
        %1201 = vmatpush.msra.mxu0 0.0
        %1202 = vmatpush.msra.mxu0 0.0
        %1203 = vmatpush.msra.mxu0 %v1188
        %1204 = vmatpush.msra.mxu0 %v1149
        %1205 = vmatpush.msra.mxu0 %v1168
        %1206 = vmatmul.f32.gmra.mxu0 %v273
        %v1207 = vpop.f32.mrf.mxu0
        %v1208 = vadd.f32 0.0, %v1207
        %1209 = vdwg.mxu0
        %v1210 = vmul.f32 %v1208, 0.001
        %v1211 = vadd.f32 %v1149, %v1210
        %1213 = vset.pattern.permute.xlu0 10
        %1214 = vperm.xlu0 %1213, %v1211
        %v1215 = vpop.permute.xlu0 %1214
        %v1217 = vsel %vm229, %v1215, %v1211
        %1218 = vset.pattern.permute.xlu0 117
        %1219 = vperm.xlu0 %1218, %v1211
        %v1220 = vpop.permute.xlu0 %1219
        %v1222 = vsel %vm230, %v1220, %v1217
        %v1223 = vmul.f32 %v1149, 0.75
        %v1224 = vmul.f32 %v1222, 0.25
        %v1225 = vadd.f32 %v1223, %v1224
        %1226 = vmatpush.msra.mxu0 %v209
        %1227 = vmatpush.msra.mxu0 %v208
        %1228 = vmatpush.msra.mxu0 %v207
        %1229 = vmatpush.msra.mxu0 %v206
        %1230 = vmatpush.msra.mxu0 %v205
        %1231 = vmatpush.msra.mxu0 %v204
        %1232 = vmatpush.msra.mxu0 %v203
        %1233 = vmatpush.msra.mxu0 %v202
        %1234 = vmatpush.msra.mxu0 %v201
        %1235 = vmatpush.msra.mxu0 %v200
        %1236 = vmatpush.msra.mxu0 %v199
        %1237 = vmatpush.msra.mxu0 %v198
        %1238 = vmatpush.msra.mxu0 %v197
        %1239 = vmatpush.msra.mxu0 %v196
        %1240 = vmatpush.msra.mxu0 %v195
        %1241 = vmatpush.msra.mxu0 %v194
        %1242 = vmatmul.f32.gmra.mxu0 %v1222
        %v1243 = vpop.f32.mrf.mxu0
        %v1244 = vadd.f32 0.0, %v1243
        %1245 = vdwg.mxu0
        %1246 = vmatpush.msra.mxu0 %v225
        %1247 = vmatpush.msra.mxu0 %v224
        %1248 = vmatpush.msra.mxu0 %v223
        %1249 = vmatpush.msra.mxu0 %v222
        %1250 = vmatpush.msra.mxu0 %v221
        %1251 = vmatpush.msra.mxu0 %v220
        %1252 = vmatpush.msra.mxu0 %v219
        %1253 = vmatpush.msra.mxu0 %v218
        %1254 = vmatpush.msra.mxu0 %v217
        %1255 = vmatpush.msra.mxu0 %v216
        %1256 = vmatpush.msra.mxu0 %v215
        %1257 = vmatpush.msra.mxu0 %v214
        %1258 = vmatpush.msra.mxu0 %v213
        %1259 = vmatpush.msra.mxu0 %v212
        %1260 = vmatpush.msra.mxu0 %v211
        %1261 = vmatpush.msra.mxu0 %v210
        %1262 = vmatmul.f32.gmra.mxu0 %v1222
        %v1263 = vpop.f32.mrf.mxu0
        %v1264 = vadd.f32 0.0, %v1263
        %1265 = vdwg.mxu0
        %1266 = vmatpush.msra.mxu0 0.0
        %1267 = vmatpush.msra.mxu0 0.0
        %1268 = vmatpush.msra.mxu0 0.0
        %1269 = vmatpush.msra.mxu0 0.0
        %1270 = vmatpush.msra.mxu0 0.0
        %1271 = vmatpush.msra.mxu0 0.0
        %1272 = vmatpush.msra.mxu0 0.0
        %1273 = vmatpush.msra.mxu0 0.0
        %1274 = vmatpush.msra.mxu0 0.0
        %1275 = vmatpush.msra.mxu0 0.0
        %1276 = vmatpush.msra.mxu0 0.0
        %1277 = vmatpush.msra.mxu0 0.0
        %1278 = vmatpush.msra.mxu0 0.0
        %1279 = vmatpush.msra.mxu0 %v1264
        %1280 = vmatpush.msra.mxu0 %v1222
        %1281 = vmatpush.msra.mxu0 %v1244
        %1282 = vmatmul.f32.gmra.mxu0 %v273
        %v1283 = vpop.f32.mrf.mxu0
        %v1284 = vadd.f32 0.0, %v1283
        %1285 = vdwg.mxu0
        %v1286 = vmul.f32 %v1284, 0.00025
        %v1287 = vadd.f32 %v1225, %v1286
        %1289 = vset.pattern.permute.xlu0 10
        %1290 = vperm.xlu0 %1289, %v1287
        %v1291 = vpop.permute.xlu0 %1290
        %v1293 = vsel %vm229, %v1291, %v1287
        %1294 = vset.pattern.permute.xlu0 117
        %1295 = vperm.xlu0 %1294, %v1287
        %v1296 = vpop.permute.xlu0 %1295
        %v1298 = vsel %vm230, %v1296, %v1293
        %v1299 = vmul.f32 %v1149, %v390
        %v1300 = vmul.f32 %v1298, 2.0
        %v1301 = vmul.f32 %v1300, %v390
        %v1302 = vadd.f32 %v1299, %v1301
        %1303 = vmatpush.msra.mxu0 %v209
        %1304 = vmatpush.msra.mxu0 %v208
        %1305 = vmatpush.msra.mxu0 %v207
        %1306 = vmatpush.msra.mxu0 %v206
        %1307 = vmatpush.msra.mxu0 %v205
        %1308 = vmatpush.msra.mxu0 %v204
        %1309 = vmatpush.msra.mxu0 %v203
        %1310 = vmatpush.msra.mxu0 %v202
        %1311 = vmatpush.msra.mxu0 %v201
        %1312 = vmatpush.msra.mxu0 %v200
        %1313 = vmatpush.msra.mxu0 %v199
        %1314 = vmatpush.msra.mxu0 %v198
        %1315 = vmatpush.msra.mxu0 %v197
        %1316 = vmatpush.msra.mxu0 %v196
        %1317 = vmatpush.msra.mxu0 %v195
        %1318 = vmatpush.msra.mxu0 %v194
        %1319 = vmatmul.f32.gmra.mxu0 %v1298
        %v1320 = vpop.f32.mrf.mxu0
        %v1321 = vadd.f32 0.0, %v1320
        %1322 = vdwg.mxu0
        %1323 = vmatpush.msra.mxu0 %v225
        %1324 = vmatpush.msra.mxu0 %v224
        %1325 = vmatpush.msra.mxu0 %v223
        %1326 = vmatpush.msra.mxu0 %v222
        %1327 = vmatpush.msra.mxu0 %v221
        %1328 = vmatpush.msra.mxu0 %v220
        %1329 = vmatpush.msra.mxu0 %v219
        %1330 = vmatpush.msra.mxu0 %v218
        %1331 = vmatpush.msra.mxu0 %v217
        %1332 = vmatpush.msra.mxu0 %v216
        %1333 = vmatpush.msra.mxu0 %v215
        %1334 = vmatpush.msra.mxu0 %v214
        %1335 = vmatpush.msra.mxu0 %v213
        %1336 = vmatpush.msra.mxu0 %v212
        %1337 = vmatpush.msra.mxu0 %v211
        %1338 = vmatpush.msra.mxu0 %v210
        %1339 = vmatmul.f32.gmra.mxu0 %v1298
        %v1340 = vpop.f32.mrf.mxu0
        %v1341 = vadd.f32 0.0, %v1340
        %1342 = vdwg.mxu0
        %1343 = vmatpush.msra.mxu0 0.0
        %1344 = vmatpush.msra.mxu0 0.0
        %1345 = vmatpush.msra.mxu0 0.0
        %1346 = vmatpush.msra.mxu0 0.0
        %1347 = vmatpush.msra.mxu0 0.0
        %1348 = vmatpush.msra.mxu0 0.0
        %1349 = vmatpush.msra.mxu0 0.0
        %1350 = vmatpush.msra.mxu0 0.0
        %1351 = vmatpush.msra.mxu0 0.0
        %1352 = vmatpush.msra.mxu0 0.0
        %1353 = vmatpush.msra.mxu0 0.0
        %1354 = vmatpush.msra.mxu0 0.0
        %1355 = vmatpush.msra.mxu0 0.0
        %1356 = vmatpush.msra.mxu0 %v1341
        %1357 = vmatpush.msra.mxu0 %v1298
        %1358 = vmatpush.msra.mxu0 %v1321
        %1359 = vmatmul.f32.gmra.mxu0 %v273
        %v1360 = vpop.f32.mrf.mxu0
        %v1361 = vadd.f32 0.0, %v1360
        %1362 = vdwg.mxu0
        %v1363 = vmul.f32 %v1361, 0.002
        %v1364 = vmul.f32 %v1363, %v390
        %v1365 = vadd.f32 %v1302, %v1364
        %1367 = vset.pattern.permute.xlu0 10
        %1368 = vperm.xlu0 %1367, %v1365
        %v1369 = vpop.permute.xlu0 %1368
        %v1371 = vsel %vm229, %v1369, %v1365
        %1372 = vset.pattern.permute.xlu0 117
        %1373 = vperm.xlu0 %1372, %v1365
        %v1374 = vpop.permute.xlu0 %1373
        %v1376 = vsel %vm230, %v1374, %v1371
        %1377 = vmatpush.msra.mxu0 %v209
        %1378 = vmatpush.msra.mxu0 %v208
        %1379 = vmatpush.msra.mxu0 %v207
        %1380 = vmatpush.msra.mxu0 %v206
        %1381 = vmatpush.msra.mxu0 %v205
        %1382 = vmatpush.msra.mxu0 %v204
        %1383 = vmatpush.msra.mxu0 %v203
        %1384 = vmatpush.msra.mxu0 %v202
        %1385 = vmatpush.msra.mxu0 %v201
        %1386 = vmatpush.msra.mxu0 %v200
        %1387 = vmatpush.msra.mxu0 %v199
        %1388 = vmatpush.msra.mxu0 %v198
        %1389 = vmatpush.msra.mxu0 %v197
        %1390 = vmatpush.msra.mxu0 %v196
        %1391 = vmatpush.msra.mxu0 %v195
        %1392 = vmatpush.msra.mxu0 %v194
        %1393 = vmatmul.f32.gmra.mxu0 %v1376
        %v1394 = vpop.f32.mrf.mxu0
        %v1395 = vadd.f32 0.0, %v1394
        %1396 = vdwg.mxu0
        %1397 = vmatpush.msra.mxu0 %v225
        %1398 = vmatpush.msra.mxu0 %v224
        %1399 = vmatpush.msra.mxu0 %v223
        %1400 = vmatpush.msra.mxu0 %v222
        %1401 = vmatpush.msra.mxu0 %v221
        %1402 = vmatpush.msra.mxu0 %v220
        %1403 = vmatpush.msra.mxu0 %v219
        %1404 = vmatpush.msra.mxu0 %v218
        %1405 = vmatpush.msra.mxu0 %v217
        %1406 = vmatpush.msra.mxu0 %v216
        %1407 = vmatpush.msra.mxu0 %v215
        %1408 = vmatpush.msra.mxu0 %v214
        %1409 = vmatpush.msra.mxu0 %v213
        %1410 = vmatpush.msra.mxu0 %v212
        %1411 = vmatpush.msra.mxu0 %v211
        %1412 = vmatpush.msra.mxu0 %v210
        %1413 = vmatmul.f32.gmra.mxu0 %v1376
        %v1414 = vpop.f32.mrf.mxu0
        %v1415 = vadd.f32 0.0, %v1414
        %1416 = vdwg.mxu0
        %1417 = vmatpush.msra.mxu0 0.0
        %1418 = vmatpush.msra.mxu0 0.0
        %1419 = vmatpush.msra.mxu0 0.0
        %1420 = vmatpush.msra.mxu0 0.0
        %1421 = vmatpush.msra.mxu0 0.0
        %1422 = vmatpush.msra.mxu0 0.0
        %1423 = vmatpush.msra.mxu0 0.0
        %1424 = vmatpush.msra.mxu0 0.0
        %1425 = vmatpush.msra.mxu0 0.0
        %1426 = vmatpush.msra.mxu0 0.0
        %1427 = vmatpush.msra.mxu0 0.0
        %1428 = vmatpush.msra.mxu0 0.0
        %1429 = vmatpush.msra.mxu0 0.0
        %1430 = vmatpush.msra.mxu0 %v1415
        %1431 = vmatpush.msra.mxu0 %v1376
        %1432 = vmatpush.msra.mxu0 %v1395
        %1433 = vmatmul.f32.gmra.mxu0 %v273
        %v1434 = vpop.f32.mrf.mxu0
        %v1435 = vadd.f32 0.0, %v1434
        %1436 = vdwg.mxu0
        %v1437 = vmul.f32 %v1435, 0.001
        %v1438 = vadd.f32 %v1376, %v1437
        %1440 = vset.pattern.permute.xlu0 10
        %1441 = vperm.xlu0 %1440, %v1438
        %v1442 = vpop.permute.xlu0 %1441
        %v1444 = vsel %vm229, %v1442, %v1438
        %1445 = vset.pattern.permute.xlu0 117
        %1446 = vperm.xlu0 %1445, %v1438
        %v1447 = vpop.permute.xlu0 %1446
        %v1449 = vsel %vm230, %v1447, %v1444
        %v1450 = vmul.f32 %v1376, 0.75
        %v1451 = vmul.f32 %v1449, 0.25
        %v1452 = vadd.f32 %v1450, %v1451
        %1453 = vmatpush.msra.mxu0 %v209
        %1454 = vmatpush.msra.mxu0 %v208
        %1455 = vmatpush.msra.mxu0 %v207
        %1456 = vmatpush.msra.mxu0 %v206
        %1457 = vmatpush.msra.mxu0 %v205
        %1458 = vmatpush.msra.mxu0 %v204
        %1459 = vmatpush.msra.mxu0 %v203
        %1460 = vmatpush.msra.mxu0 %v202
        %1461 = vmatpush.msra.mxu0 %v201
        %1462 = vmatpush.msra.mxu0 %v200
        %1463 = vmatpush.msra.mxu0 %v199
        %1464 = vmatpush.msra.mxu0 %v198
        %1465 = vmatpush.msra.mxu0 %v197
        %1466 = vmatpush.msra.mxu0 %v196
        %1467 = vmatpush.msra.mxu0 %v195
        %1468 = vmatpush.msra.mxu0 %v194
        %1469 = vmatmul.f32.gmra.mxu0 %v1449
        %v1470 = vpop.f32.mrf.mxu0
        %v1471 = vadd.f32 0.0, %v1470
        %1472 = vdwg.mxu0
        %1473 = vmatpush.msra.mxu0 %v225
        %1474 = vmatpush.msra.mxu0 %v224
        %1475 = vmatpush.msra.mxu0 %v223
        %1476 = vmatpush.msra.mxu0 %v222
        %1477 = vmatpush.msra.mxu0 %v221
        %1478 = vmatpush.msra.mxu0 %v220
        %1479 = vmatpush.msra.mxu0 %v219
        %1480 = vmatpush.msra.mxu0 %v218
        %1481 = vmatpush.msra.mxu0 %v217
        %1482 = vmatpush.msra.mxu0 %v216
        %1483 = vmatpush.msra.mxu0 %v215
        %1484 = vmatpush.msra.mxu0 %v214
        %1485 = vmatpush.msra.mxu0 %v213
        %1486 = vmatpush.msra.mxu0 %v212
        %1487 = vmatpush.msra.mxu0 %v211
        %1488 = vmatpush.msra.mxu0 %v210
        %1489 = vmatmul.f32.gmra.mxu0 %v1449
        %v1490 = vpop.f32.mrf.mxu0
        %v1491 = vadd.f32 0.0, %v1490
        %1492 = vdwg.mxu0
        %1493 = vmatpush.msra.mxu0 0.0
        %1494 = vmatpush.msra.mxu0 0.0
        %1495 = vmatpush.msra.mxu0 0.0
        %1496 = vmatpush.msra.mxu0 0.0
        %1497 = vmatpush.msra.mxu0 0.0
        %1498 = vmatpush.msra.mxu0 0.0
        %1499 = vmatpush.msra.mxu0 0.0
        %1500 = vmatpush.msra.mxu0 0.0
        %1501 = vmatpush.msra.mxu0 0.0
        %1502 = vmatpush.msra.mxu0 0.0
        %1503 = vmatpush.msra.mxu0 0.0
        %1504 = vmatpush.msra.mxu0 0.0
        %1505 = vmatpush.msra.mxu0 0.0
        %1506 = vmatpush.msra.mxu0 %v1491
        %1507 = vmatpush.msra.mxu0 %v1449
        %1508 = vmatpush.msra.mxu0 %v1471
        %1509 = vmatmul.f32.gmra.mxu0 %v273
        %v1510 = vpop.f32.mrf.mxu0
        %v1511 = vadd.f32 0.0, %v1510
        %1512 = vdwg.mxu0
        %v1513 = vmul.f32 %v1511, 0.00025
        %v1514 = vadd.f32 %v1452, %v1513
        %1516 = vset.pattern.permute.xlu0 10
        %1517 = vperm.xlu0 %1516, %v1514
        %v1518 = vpop.permute.xlu0 %1517
        %v1520 = vsel %vm229, %v1518, %v1514
        %1521 = vset.pattern.permute.xlu0 117
        %1522 = vperm.xlu0 %1521, %v1514
        %v1523 = vpop.permute.xlu0 %1522
        %v1525 = vsel %vm230, %v1523, %v1520
        %v1526 = vmul.f32 %v1376, %v390
        %v1527 = vmul.f32 %v1525, 2.0
        %v1528 = vmul.f32 %v1527, %v390
        %v1529 = vadd.f32 %v1526, %v1528
        %1530 = vmatpush.msra.mxu0 %v209
        %1531 = vmatpush.msra.mxu0 %v208
        %1532 = vmatpush.msra.mxu0 %v207
        %1533 = vmatpush.msra.mxu0 %v206
        %1534 = vmatpush.msra.mxu0 %v205
        %1535 = vmatpush.msra.mxu0 %v204
        %1536 = vmatpush.msra.mxu0 %v203
        %1537 = vmatpush.msra.mxu0 %v202
        %1538 = vmatpush.msra.mxu0 %v201
        %1539 = vmatpush.msra.mxu0 %v200
        %1540 = vmatpush.msra.mxu0 %v199
        %1541 = vmatpush.msra.mxu0 %v198
        %1542 = vmatpush.msra.mxu0 %v197
        %1543 = vmatpush.msra.mxu0 %v196
        %1544 = vmatpush.msra.mxu0 %v195
        %1545 = vmatpush.msra.mxu0 %v194
        %1546 = vmatmul.f32.gmra.mxu0 %v1525
        %v1547 = vpop.f32.mrf.mxu0
        %v1548 = vadd.f32 0.0, %v1547
        %1549 = vdwg.mxu0
        %1550 = vmatpush.msra.mxu0 %v225
        %1551 = vmatpush.msra.mxu0 %v224
        %1552 = vmatpush.msra.mxu0 %v223
        %1553 = vmatpush.msra.mxu0 %v222
        %1554 = vmatpush.msra.mxu0 %v221
        %1555 = vmatpush.msra.mxu0 %v220
        %1556 = vmatpush.msra.mxu0 %v219
        %1557 = vmatpush.msra.mxu0 %v218
        %1558 = vmatpush.msra.mxu0 %v217
        %1559 = vmatpush.msra.mxu0 %v216
        %1560 = vmatpush.msra.mxu0 %v215
        %1561 = vmatpush.msra.mxu0 %v214
        %1562 = vmatpush.msra.mxu0 %v213
        %1563 = vmatpush.msra.mxu0 %v212
        %1564 = vmatpush.msra.mxu0 %v211
        %1565 = vmatpush.msra.mxu0 %v210
        %1566 = vmatmul.f32.gmra.mxu0 %v1525
        %v1567 = vpop.f32.mrf.mxu0
        %v1568 = vadd.f32 0.0, %v1567
        %1569 = vdwg.mxu0
        %1570 = vmatpush.msra.mxu0 0.0
        %1571 = vmatpush.msra.mxu0 0.0
        %1572 = vmatpush.msra.mxu0 0.0
        %1573 = vmatpush.msra.mxu0 0.0
        %1574 = vmatpush.msra.mxu0 0.0
        %1575 = vmatpush.msra.mxu0 0.0
        %1576 = vmatpush.msra.mxu0 0.0
        %1577 = vmatpush.msra.mxu0 0.0
        %1578 = vmatpush.msra.mxu0 0.0
        %1579 = vmatpush.msra.mxu0 0.0
        %1580 = vmatpush.msra.mxu0 0.0
        %1581 = vmatpush.msra.mxu0 0.0
        %1582 = vmatpush.msra.mxu0 0.0
        %1583 = vmatpush.msra.mxu0 %v1568
        %1584 = vmatpush.msra.mxu0 %v1525
        %1585 = vmatpush.msra.mxu0 %v1548
        %1586 = vmatmul.f32.gmra.mxu0 %v273
        %v1587 = vpop.f32.mrf.mxu0
        %v1588 = vadd.f32 0.0, %v1587
        %1589 = vdwg.mxu0
        %v1590 = vmul.f32 %v1588, 0.002
        %v1591 = vmul.f32 %v1590, %v390
        %v1592 = vadd.f32 %v1529, %v1591
        %1594 = vset.pattern.permute.xlu0 10
        %1595 = vperm.xlu0 %1594, %v1592
        %v1596 = vpop.permute.xlu0 %1595
        %v1598 = vsel %vm229, %v1596, %v1592
        %1599 = vset.pattern.permute.xlu0 117
        %1600 = vperm.xlu0 %1599, %v1592
        %v1601 = vpop.permute.xlu0 %1600
        %v1603 = vsel %vm230, %v1601, %v1598
        %1604 = vmatpush.msra.mxu0 %v209
        %1605 = vmatpush.msra.mxu0 %v208
        %1606 = vmatpush.msra.mxu0 %v207
        %1607 = vmatpush.msra.mxu0 %v206
        %1608 = vmatpush.msra.mxu0 %v205
        %1609 = vmatpush.msra.mxu0 %v204
        %1610 = vmatpush.msra.mxu0 %v203
        %1611 = vmatpush.msra.mxu0 %v202
        %1612 = vmatpush.msra.mxu0 %v201
        %1613 = vmatpush.msra.mxu0 %v200
        %1614 = vmatpush.msra.mxu0 %v199
        %1615 = vmatpush.msra.mxu0 %v198
        %1616 = vmatpush.msra.mxu0 %v197
        %1617 = vmatpush.msra.mxu0 %v196
        %1618 = vmatpush.msra.mxu0 %v195
        %1619 = vmatpush.msra.mxu0 %v194
        %1620 = vmatmul.f32.gmra.mxu0 %v1603
        %v1621 = vpop.f32.mrf.mxu0
        %v1622 = vadd.f32 0.0, %v1621
        %1623 = vdwg.mxu0
        %1624 = vmatpush.msra.mxu0 %v225
        %1625 = vmatpush.msra.mxu0 %v224
        %1626 = vmatpush.msra.mxu0 %v223
        %1627 = vmatpush.msra.mxu0 %v222
        %1628 = vmatpush.msra.mxu0 %v221
        %1629 = vmatpush.msra.mxu0 %v220
        %1630 = vmatpush.msra.mxu0 %v219
        %1631 = vmatpush.msra.mxu0 %v218
        %1632 = vmatpush.msra.mxu0 %v217
        %1633 = vmatpush.msra.mxu0 %v216
        %1634 = vmatpush.msra.mxu0 %v215
        %1635 = vmatpush.msra.mxu0 %v214
        %1636 = vmatpush.msra.mxu0 %v213
        %1637 = vmatpush.msra.mxu0 %v212
        %1638 = vmatpush.msra.mxu0 %v211
        %1639 = vmatpush.msra.mxu0 %v210
        %1640 = vmatmul.f32.gmra.mxu0 %v1603
        %v1641 = vpop.f32.mrf.mxu0
        %v1642 = vadd.f32 0.0, %v1641
        %1643 = vdwg.mxu0
        %1644 = vmatpush.msra.mxu0 0.0
        %1645 = vmatpush.msra.mxu0 0.0
        %1646 = vmatpush.msra.mxu0 0.0
        %1647 = vmatpush.msra.mxu0 0.0
        %1648 = vmatpush.msra.mxu0 0.0
        %1649 = vmatpush.msra.mxu0 0.0
        %1650 = vmatpush.msra.mxu0 0.0
        %1651 = vmatpush.msra.mxu0 0.0
        %1652 = vmatpush.msra.mxu0 0.0
        %1653 = vmatpush.msra.mxu0 0.0
        %1654 = vmatpush.msra.mxu0 0.0
        %1655 = vmatpush.msra.mxu0 0.0
        %1656 = vmatpush.msra.mxu0 0.0
        %1657 = vmatpush.msra.mxu0 %v1642
        %1658 = vmatpush.msra.mxu0 %v1603
        %1659 = vmatpush.msra.mxu0 %v1622
        %1660 = vmatmul.f32.gmra.mxu0 %v273
        %v1661 = vpop.f32.mrf.mxu0
        %v1662 = vadd.f32 0.0, %v1661
        %1663 = vdwg.mxu0
        %v1664 = vmul.f32 %v1662, 0.001
        %v1665 = vadd.f32 %v1603, %v1664
        %1667 = vset.pattern.permute.xlu0 10
        %1668 = vperm.xlu0 %1667, %v1665
        %v1669 = vpop.permute.xlu0 %1668
        %v1671 = vsel %vm229, %v1669, %v1665
        %1672 = vset.pattern.permute.xlu0 117
        %1673 = vperm.xlu0 %1672, %v1665
        %v1674 = vpop.permute.xlu0 %1673
        %v1676 = vsel %vm230, %v1674, %v1671
        %v1677 = vmul.f32 %v1603, 0.75
        %v1678 = vmul.f32 %v1676, 0.25
        %v1679 = vadd.f32 %v1677, %v1678
        %1680 = vmatpush.msra.mxu0 %v209
        %1681 = vmatpush.msra.mxu0 %v208
        %1682 = vmatpush.msra.mxu0 %v207
        %1683 = vmatpush.msra.mxu0 %v206
        %1684 = vmatpush.msra.mxu0 %v205
        %1685 = vmatpush.msra.mxu0 %v204
        %1686 = vmatpush.msra.mxu0 %v203
        %1687 = vmatpush.msra.mxu0 %v202
        %1688 = vmatpush.msra.mxu0 %v201
        %1689 = vmatpush.msra.mxu0 %v200
        %1690 = vmatpush.msra.mxu0 %v199
        %1691 = vmatpush.msra.mxu0 %v198
        %1692 = vmatpush.msra.mxu0 %v197
        %1693 = vmatpush.msra.mxu0 %v196
        %1694 = vmatpush.msra.mxu0 %v195
        %1695 = vmatpush.msra.mxu0 %v194
        %1696 = vmatmul.f32.gmra.mxu0 %v1676
        %v1697 = vpop.f32.mrf.mxu0
        %v1698 = vadd.f32 0.0, %v1697
        %1699 = vdwg.mxu0
        %1700 = vmatpush.msra.mxu0 %v225
        %1701 = vmatpush.msra.mxu0 %v224
        %1702 = vmatpush.msra.mxu0 %v223
        %1703 = vmatpush.msra.mxu0 %v222
        %1704 = vmatpush.msra.mxu0 %v221
        %1705 = vmatpush.msra.mxu0 %v220
        %1706 = vmatpush.msra.mxu0 %v219
        %1707 = vmatpush.msra.mxu0 %v218
        %1708 = vmatpush.msra.mxu0 %v217
        %1709 = vmatpush.msra.mxu0 %v216
        %1710 = vmatpush.msra.mxu0 %v215
        %1711 = vmatpush.msra.mxu0 %v214
        %1712 = vmatpush.msra.mxu0 %v213
        %1713 = vmatpush.msra.mxu0 %v212
        %1714 = vmatpush.msra.mxu0 %v211
        %1715 = vmatpush.msra.mxu0 %v210
        %1716 = vmatmul.f32.gmra.mxu0 %v1676
        %v1717 = vpop.f32.mrf.mxu0
        %v1718 = vadd.f32 0.0, %v1717
        %1719 = vdwg.mxu0
        %1720 = vmatpush.msra.mxu0 0.0
        %1721 = vmatpush.msra.mxu0 0.0
        %1722 = vmatpush.msra.mxu0 0.0
        %1723 = vmatpush.msra.mxu0 0.0
        %1724 = vmatpush.msra.mxu0 0.0
        %1725 = vmatpush.msra.mxu0 0.0
        %1726 = vmatpush.msra.mxu0 0.0
        %1727 = vmatpush.msra.mxu0 0.0
        %1728 = vmatpush.msra.mxu0 0.0
        %1729 = vmatpush.msra.mxu0 0.0
        %1730 = vmatpush.msra.mxu0 0.0
        %1731 = vmatpush.msra.mxu0 0.0
        %1732 = vmatpush.msra.mxu0 0.0
        %1733 = vmatpush.msra.mxu0 %v1718
        %1734 = vmatpush.msra.mxu0 %v1676
        %1735 = vmatpush.msra.mxu0 %v1698
        %1736 = vmatmul.f32.gmra.mxu0 %v273
        %v1737 = vpop.f32.mrf.mxu0
        %v1738 = vadd.f32 0.0, %v1737
        %1739 = vdwg.mxu0
        %v1740 = vmul.f32 %v1738, 0.00025
        %v1741 = vadd.f32 %v1679, %v1740
        %1743 = vset.pattern.permute.xlu0 10
        %1744 = vperm.xlu0 %1743, %v1741
        %v1745 = vpop.permute.xlu0 %1744
        %v1747 = vsel %vm229, %v1745, %v1741
        %1748 = vset.pattern.permute.xlu0 117
        %1749 = vperm.xlu0 %1748, %v1741
        %v1750 = vpop.permute.xlu0 %1749
        %v1752 = vsel %vm230, %v1750, %v1747
        %v1753 = vmul.f32 %v1603, %v390
        %v1754 = vmul.f32 %v1752, 2.0
        %v1755 = vmul.f32 %v1754, %v390
        %v1756 = vadd.f32 %v1753, %v1755
        %1757 = vmatpush.msra.mxu0 %v209
        %1758 = vmatpush.msra.mxu0 %v208
        %1759 = vmatpush.msra.mxu0 %v207
        %1760 = vmatpush.msra.mxu0 %v206
        %1761 = vmatpush.msra.mxu0 %v205
        %1762 = vmatpush.msra.mxu0 %v204
        %1763 = vmatpush.msra.mxu0 %v203
        %1764 = vmatpush.msra.mxu0 %v202
        %1765 = vmatpush.msra.mxu0 %v201
        %1766 = vmatpush.msra.mxu0 %v200
        %1767 = vmatpush.msra.mxu0 %v199
        %1768 = vmatpush.msra.mxu0 %v198
        %1769 = vmatpush.msra.mxu0 %v197
        %1770 = vmatpush.msra.mxu0 %v196
        %1771 = vmatpush.msra.mxu0 %v195
        %1772 = vmatpush.msra.mxu0 %v194
        %1773 = vmatmul.f32.gmra.mxu0 %v1752
        %v1774 = vpop.f32.mrf.mxu0
        %v1775 = vadd.f32 0.0, %v1774
        %1776 = vdwg.mxu0
        %1777 = vmatpush.msra.mxu0 %v225
        %1778 = vmatpush.msra.mxu0 %v224
        %1779 = vmatpush.msra.mxu0 %v223
        %1780 = vmatpush.msra.mxu0 %v222
        %1781 = vmatpush.msra.mxu0 %v221
        %1782 = vmatpush.msra.mxu0 %v220
        %1783 = vmatpush.msra.mxu0 %v219
        %1784 = vmatpush.msra.mxu0 %v218
        %1785 = vmatpush.msra.mxu0 %v217
        %1786 = vmatpush.msra.mxu0 %v216
        %1787 = vmatpush.msra.mxu0 %v215
        %1788 = vmatpush.msra.mxu0 %v214
        %1789 = vmatpush.msra.mxu0 %v213
        %1790 = vmatpush.msra.mxu0 %v212
        %1791 = vmatpush.msra.mxu0 %v211
        %1792 = vmatpush.msra.mxu0 %v210
        %1793 = vmatmul.f32.gmra.mxu0 %v1752
        %v1794 = vpop.f32.mrf.mxu0
        %v1795 = vadd.f32 0.0, %v1794
        %1796 = vdwg.mxu0
        %1797 = vmatpush.msra.mxu0 0.0
        %1798 = vmatpush.msra.mxu0 0.0
        %1799 = vmatpush.msra.mxu0 0.0
        %1800 = vmatpush.msra.mxu0 0.0
        %1801 = vmatpush.msra.mxu0 0.0
        %1802 = vmatpush.msra.mxu0 0.0
        %1803 = vmatpush.msra.mxu0 0.0
        %1804 = vmatpush.msra.mxu0 0.0
        %1805 = vmatpush.msra.mxu0 0.0
        %1806 = vmatpush.msra.mxu0 0.0
        %1807 = vmatpush.msra.mxu0 0.0
        %1808 = vmatpush.msra.mxu0 0.0
        %1809 = vmatpush.msra.mxu0 0.0
        %1810 = vmatpush.msra.mxu0 %v1795
        %1811 = vmatpush.msra.mxu0 %v1752
        %1812 = vmatpush.msra.mxu0 %v1775
        %1813 = vmatmul.f32.gmra.mxu0 %v273
        %v1814 = vpop.f32.mrf.mxu0
        %v1815 = vadd.f32 0.0, %v1814
        %1816 = vdwg.mxu0
        %v1817 = vmul.f32 %v1815, 0.002
        %v1818 = vmul.f32 %v1817, %v390
        %v1819 = vadd.f32 %v1756, %v1818
        %1821 = vset.pattern.permute.xlu0 10
        %1822 = vperm.xlu0 %1821, %v1819
        %v1823 = vpop.permute.xlu0 %1822
        %v1825 = vsel %vm229, %v1823, %v1819
        %1826 = vset.pattern.permute.xlu0 117
        %1827 = vperm.xlu0 %1826, %v1819
        %v1828 = vpop.permute.xlu0 %1827
        %v1830 = vsel %vm230, %v1828, %v1825
        %1831 = vmatpush.msra.mxu0 %v209
        %1832 = vmatpush.msra.mxu0 %v208
        %1833 = vmatpush.msra.mxu0 %v207
        %1834 = vmatpush.msra.mxu0 %v206
        %1835 = vmatpush.msra.mxu0 %v205
        %1836 = vmatpush.msra.mxu0 %v204
        %1837 = vmatpush.msra.mxu0 %v203
        %1838 = vmatpush.msra.mxu0 %v202
        %1839 = vmatpush.msra.mxu0 %v201
        %1840 = vmatpush.msra.mxu0 %v200
        %1841 = vmatpush.msra.mxu0 %v199
        %1842 = vmatpush.msra.mxu0 %v198
        %1843 = vmatpush.msra.mxu0 %v197
        %1844 = vmatpush.msra.mxu0 %v196
        %1845 = vmatpush.msra.mxu0 %v195
        %1846 = vmatpush.msra.mxu0 %v194
        %1847 = vmatmul.f32.gmra.mxu0 %v1830
        %v1848 = vpop.f32.mrf.mxu0
        %v1849 = vadd.f32 0.0, %v1848
        %1850 = vdwg.mxu0
        %1851 = vmatpush.msra.mxu0 %v225
        %1852 = vmatpush.msra.mxu0 %v224
        %1853 = vmatpush.msra.mxu0 %v223
        %1854 = vmatpush.msra.mxu0 %v222
        %1855 = vmatpush.msra.mxu0 %v221
        %1856 = vmatpush.msra.mxu0 %v220
        %1857 = vmatpush.msra.mxu0 %v219
        %1858 = vmatpush.msra.mxu0 %v218
        %1859 = vmatpush.msra.mxu0 %v217
        %1860 = vmatpush.msra.mxu0 %v216
        %1861 = vmatpush.msra.mxu0 %v215
        %1862 = vmatpush.msra.mxu0 %v214
        %1863 = vmatpush.msra.mxu0 %v213
        %1864 = vmatpush.msra.mxu0 %v212
        %1865 = vmatpush.msra.mxu0 %v211
        %1866 = vmatpush.msra.mxu0 %v210
        %1867 = vmatmul.f32.gmra.mxu0 %v1830
        %v1868 = vpop.f32.mrf.mxu0
        %v1869 = vadd.f32 0.0, %v1868
        %1870 = vdwg.mxu0
        %1871 = vmatpush.msra.mxu0 0.0
        %1872 = vmatpush.msra.mxu0 0.0
        %1873 = vmatpush.msra.mxu0 0.0
        %1874 = vmatpush.msra.mxu0 0.0
        %1875 = vmatpush.msra.mxu0 0.0
        %1876 = vmatpush.msra.mxu0 0.0
        %1877 = vmatpush.msra.mxu0 0.0
        %1878 = vmatpush.msra.mxu0 0.0
        %1879 = vmatpush.msra.mxu0 0.0
        %1880 = vmatpush.msra.mxu0 0.0
        %1881 = vmatpush.msra.mxu0 0.0
        %1882 = vmatpush.msra.mxu0 0.0
        %1883 = vmatpush.msra.mxu0 0.0
        %1884 = vmatpush.msra.mxu0 %v1869
        %1885 = vmatpush.msra.mxu0 %v1830
        %1886 = vmatpush.msra.mxu0 %v1849
        %1887 = vmatmul.f32.gmra.mxu0 %v273
        %v1888 = vpop.f32.mrf.mxu0
        %v1889 = vadd.f32 0.0, %v1888
        %1890 = vdwg.mxu0
        %v1891 = vmul.f32 %v1889, 0.001
        %v1892 = vadd.f32 %v1830, %v1891
        %1894 = vset.pattern.permute.xlu0 10
        %1895 = vperm.xlu0 %1894, %v1892
        %v1896 = vpop.permute.xlu0 %1895
        %v1898 = vsel %vm229, %v1896, %v1892
        %1899 = vset.pattern.permute.xlu0 117
        %1900 = vperm.xlu0 %1899, %v1892
        %v1901 = vpop.permute.xlu0 %1900
        %v1903 = vsel %vm230, %v1901, %v1898
        %v1904 = vmul.f32 %v1830, 0.75
        %v1905 = vmul.f32 %v1903, 0.25
        %v1906 = vadd.f32 %v1904, %v1905
        %1907 = vmatpush.msra.mxu0 %v209
        %1908 = vmatpush.msra.mxu0 %v208
        %1909 = vmatpush.msra.mxu0 %v207
        %1910 = vmatpush.msra.mxu0 %v206
        %1911 = vmatpush.msra.mxu0 %v205
        %1912 = vmatpush.msra.mxu0 %v204
        %1913 = vmatpush.msra.mxu0 %v203
        %1914 = vmatpush.msra.mxu0 %v202
        %1915 = vmatpush.msra.mxu0 %v201
        %1916 = vmatpush.msra.mxu0 %v200
        %1917 = vmatpush.msra.mxu0 %v199
        %1918 = vmatpush.msra.mxu0 %v198
        %1919 = vmatpush.msra.mxu0 %v197
        %1920 = vmatpush.msra.mxu0 %v196
        %1921 = vmatpush.msra.mxu0 %v195
        %1922 = vmatpush.msra.mxu0 %v194
        %1923 = vmatmul.f32.gmra.mxu0 %v1903
        %v1924 = vpop.f32.mrf.mxu0
        %v1925 = vadd.f32 0.0, %v1924
        %1926 = vdwg.mxu0
        %1927 = vmatpush.msra.mxu0 %v225
        %1928 = vmatpush.msra.mxu0 %v224
        %1929 = vmatpush.msra.mxu0 %v223
        %1930 = vmatpush.msra.mxu0 %v222
        %1931 = vmatpush.msra.mxu0 %v221
        %1932 = vmatpush.msra.mxu0 %v220
        %1933 = vmatpush.msra.mxu0 %v219
        %1934 = vmatpush.msra.mxu0 %v218
        %1935 = vmatpush.msra.mxu0 %v217
        %1936 = vmatpush.msra.mxu0 %v216
        %1937 = vmatpush.msra.mxu0 %v215
        %1938 = vmatpush.msra.mxu0 %v214
        %1939 = vmatpush.msra.mxu0 %v213
        %1940 = vmatpush.msra.mxu0 %v212
        %1941 = vmatpush.msra.mxu0 %v211
        %1942 = vmatpush.msra.mxu0 %v210
        %1943 = vmatmul.f32.gmra.mxu0 %v1903
        %v1944 = vpop.f32.mrf.mxu0
        %v1945 = vadd.f32 0.0, %v1944
        %1946 = vdwg.mxu0
        %1947 = vmatpush.msra.mxu0 0.0
        %1948 = vmatpush.msra.mxu0 0.0
        %1949 = vmatpush.msra.mxu0 0.0
        %1950 = vmatpush.msra.mxu0 0.0
        %1951 = vmatpush.msra.mxu0 0.0
        %1952 = vmatpush.msra.mxu0 0.0
        %1953 = vmatpush.msra.mxu0 0.0
        %1954 = vmatpush.msra.mxu0 0.0
        %1955 = vmatpush.msra.mxu0 0.0
        %1956 = vmatpush.msra.mxu0 0.0
        %1957 = vmatpush.msra.mxu0 0.0
        %1958 = vmatpush.msra.mxu0 0.0
        %1959 = vmatpush.msra.mxu0 0.0
        %1960 = vmatpush.msra.mxu0 %v1945
        %1961 = vmatpush.msra.mxu0 %v1903
        %1962 = vmatpush.msra.mxu0 %v1925
        %1963 = vmatmul.f32.gmra.mxu0 %v273
        %v1964 = vpop.f32.mrf.mxu0
        %v1965 = vadd.f32 0.0, %v1964
        %1966 = vdwg.mxu0
        %v1967 = vmul.f32 %v1965, 0.00025
        %v1968 = vadd.f32 %v1906, %v1967
        %1970 = vset.pattern.permute.xlu0 10
        %1971 = vperm.xlu0 %1970, %v1968
        %v1972 = vpop.permute.xlu0 %1971
        %v1974 = vsel %vm229, %v1972, %v1968
        %1975 = vset.pattern.permute.xlu0 117
        %1976 = vperm.xlu0 %1975, %v1968
        %v1977 = vpop.permute.xlu0 %1976
        %v1979 = vsel %vm230, %v1977, %v1974
        %v1980 = vmul.f32 %v1830, %v390
        %v1981 = vmul.f32 %v1979, 2.0
        %v1982 = vmul.f32 %v1981, %v390
        %v1983 = vadd.f32 %v1980, %v1982
        %1984 = vmatpush.msra.mxu0 %v209
        %1985 = vmatpush.msra.mxu0 %v208
        %1986 = vmatpush.msra.mxu0 %v207
        %1987 = vmatpush.msra.mxu0 %v206
        %1988 = vmatpush.msra.mxu0 %v205
        %1989 = vmatpush.msra.mxu0 %v204
        %1990 = vmatpush.msra.mxu0 %v203
        %1991 = vmatpush.msra.mxu0 %v202
        %1992 = vmatpush.msra.mxu0 %v201
        %1993 = vmatpush.msra.mxu0 %v200
        %1994 = vmatpush.msra.mxu0 %v199
        %1995 = vmatpush.msra.mxu0 %v198
        %1996 = vmatpush.msra.mxu0 %v197
        %1997 = vmatpush.msra.mxu0 %v196
        %1998 = vmatpush.msra.mxu0 %v195
        %1999 = vmatpush.msra.mxu0 %v194
        %2000 = vmatmul.f32.gmra.mxu0 %v1979
        %v2001 = vpop.f32.mrf.mxu0
        %v2002 = vadd.f32 0.0, %v2001
        %2003 = vdwg.mxu0
        %2004 = vmatpush.msra.mxu0 %v225
        %2005 = vmatpush.msra.mxu0 %v224
        %2006 = vmatpush.msra.mxu0 %v223
        %2007 = vmatpush.msra.mxu0 %v222
        %2008 = vmatpush.msra.mxu0 %v221
        %2009 = vmatpush.msra.mxu0 %v220
        %2010 = vmatpush.msra.mxu0 %v219
        %2011 = vmatpush.msra.mxu0 %v218
        %2012 = vmatpush.msra.mxu0 %v217
        %2013 = vmatpush.msra.mxu0 %v216
        %2014 = vmatpush.msra.mxu0 %v215
        %2015 = vmatpush.msra.mxu0 %v214
        %2016 = vmatpush.msra.mxu0 %v213
        %2017 = vmatpush.msra.mxu0 %v212
        %2018 = vmatpush.msra.mxu0 %v211
        %2019 = vmatpush.msra.mxu0 %v210
        %2020 = vmatmul.f32.gmra.mxu0 %v1979
        %v2021 = vpop.f32.mrf.mxu0
        %v2022 = vadd.f32 0.0, %v2021
        %2023 = vdwg.mxu0
        %2024 = vmatpush.msra.mxu0 0.0
        %2025 = vmatpush.msra.mxu0 0.0
        %2026 = vmatpush.msra.mxu0 0.0
        %2027 = vmatpush.msra.mxu0 0.0
        %2028 = vmatpush.msra.mxu0 0.0
        %2029 = vmatpush.msra.mxu0 0.0
        %2030 = vmatpush.msra.mxu0 0.0
        %2031 = vmatpush.msra.mxu0 0.0
        %2032 = vmatpush.msra.mxu0 0.0
        %2033 = vmatpush.msra.mxu0 0.0
        %2034 = vmatpush.msra.mxu0 0.0
        %2035 = vmatpush.msra.mxu0 0.0
        %2036 = vmatpush.msra.mxu0 0.0
        %2037 = vmatpush.msra.mxu0 %v2022
        %2038 = vmatpush.msra.mxu0 %v1979
        %2039 = vmatpush.msra.mxu0 %v2002
        %2040 = vmatmul.f32.gmra.mxu0 %v273
        %v2041 = vpop.f32.mrf.mxu0
        %v2042 = vadd.f32 0.0, %v2041
        %2043 = vdwg.mxu0
        %v2044 = vmul.f32 %v2042, 0.002
        %v2045 = vmul.f32 %v2044, %v390
        %v2046 = vadd.f32 %v1983, %v2045
        %2048 = vset.pattern.permute.xlu0 10
        %2049 = vperm.xlu0 %2048, %v2046
        %v2050 = vpop.permute.xlu0 %2049
        %v2052 = vsel %vm229, %v2050, %v2046
        %2053 = vset.pattern.permute.xlu0 117
        %2054 = vperm.xlu0 %2053, %v2046
        %v2055 = vpop.permute.xlu0 %2054
        %v2057 = vsel %vm230, %v2055, %v2052
        %2058 = vmatpush.msra.mxu0 %v209
        %2059 = vmatpush.msra.mxu0 %v208
        %2060 = vmatpush.msra.mxu0 %v207
        %2061 = vmatpush.msra.mxu0 %v206
        %2062 = vmatpush.msra.mxu0 %v205
        %2063 = vmatpush.msra.mxu0 %v204
        %2064 = vmatpush.msra.mxu0 %v203
        %2065 = vmatpush.msra.mxu0 %v202
        %2066 = vmatpush.msra.mxu0 %v201
        %2067 = vmatpush.msra.mxu0 %v200
        %2068 = vmatpush.msra.mxu0 %v199
        %2069 = vmatpush.msra.mxu0 %v198
        %2070 = vmatpush.msra.mxu0 %v197
        %2071 = vmatpush.msra.mxu0 %v196
        %2072 = vmatpush.msra.mxu0 %v195
        %2073 = vmatpush.msra.mxu0 %v194
        %2074 = vmatmul.f32.gmra.mxu0 %v2057
        %v2075 = vpop.f32.mrf.mxu0
        %v2076 = vadd.f32 0.0, %v2075
        %2077 = vdwg.mxu0
        %2078 = vmatpush.msra.mxu0 %v225
        %2079 = vmatpush.msra.mxu0 %v224
        %2080 = vmatpush.msra.mxu0 %v223
        %2081 = vmatpush.msra.mxu0 %v222
        %2082 = vmatpush.msra.mxu0 %v221
        %2083 = vmatpush.msra.mxu0 %v220
        %2084 = vmatpush.msra.mxu0 %v219
        %2085 = vmatpush.msra.mxu0 %v218
        %2086 = vmatpush.msra.mxu0 %v217
        %2087 = vmatpush.msra.mxu0 %v216
        %2088 = vmatpush.msra.mxu0 %v215
        %2089 = vmatpush.msra.mxu0 %v214
        %2090 = vmatpush.msra.mxu0 %v213
        %2091 = vmatpush.msra.mxu0 %v212
        %2092 = vmatpush.msra.mxu0 %v211
        %2093 = vmatpush.msra.mxu0 %v210
        %2094 = vmatmul.f32.gmra.mxu0 %v2057
        %v2095 = vpop.f32.mrf.mxu0
        %v2096 = vadd.f32 0.0, %v2095
        %2097 = vdwg.mxu0
        %2098 = vmatpush.msra.mxu0 0.0
        %2099 = vmatpush.msra.mxu0 0.0
        %2100 = vmatpush.msra.mxu0 0.0
        %2101 = vmatpush.msra.mxu0 0.0
        %2102 = vmatpush.msra.mxu0 0.0
        %2103 = vmatpush.msra.mxu0 0.0
        %2104 = vmatpush.msra.mxu0 0.0
        %2105 = vmatpush.msra.mxu0 0.0
        %2106 = vmatpush.msra.mxu0 0.0
        %2107 = vmatpush.msra.mxu0 0.0
        %2108 = vmatpush.msra.mxu0 0.0
        %2109 = vmatpush.msra.mxu0 0.0
        %2110 = vmatpush.msra.mxu0 0.0
        %2111 = vmatpush.msra.mxu0 %v2096
        %2112 = vmatpush.msra.mxu0 %v2057
        %2113 = vmatpush.msra.mxu0 %v2076
        %2114 = vmatmul.f32.gmra.mxu0 %v273
        %v2115 = vpop.f32.mrf.mxu0
        %v2116 = vadd.f32 0.0, %v2115
        %2117 = vdwg.mxu0
        %v2118 = vmul.f32 %v2116, 0.001
        %v2119 = vadd.f32 %v2057, %v2118
        %2121 = vset.pattern.permute.xlu0 10
        %2122 = vperm.xlu0 %2121, %v2119
        %v2123 = vpop.permute.xlu0 %2122
        %v2125 = vsel %vm229, %v2123, %v2119
        %2126 = vset.pattern.permute.xlu0 117
        %2127 = vperm.xlu0 %2126, %v2119
        %v2128 = vpop.permute.xlu0 %2127
        %v2130 = vsel %vm230, %v2128, %v2125
        %v2131 = vmul.f32 %v2057, 0.75
        %v2132 = vmul.f32 %v2130, 0.25
        %v2133 = vadd.f32 %v2131, %v2132
        %2134 = vmatpush.msra.mxu0 %v209
        %2135 = vmatpush.msra.mxu0 %v208
        %2136 = vmatpush.msra.mxu0 %v207
        %2137 = vmatpush.msra.mxu0 %v206
        %2138 = vmatpush.msra.mxu0 %v205
        %2139 = vmatpush.msra.mxu0 %v204
        %2140 = vmatpush.msra.mxu0 %v203
        %2141 = vmatpush.msra.mxu0 %v202
        %2142 = vmatpush.msra.mxu0 %v201
        %2143 = vmatpush.msra.mxu0 %v200
        %2144 = vmatpush.msra.mxu0 %v199
        %2145 = vmatpush.msra.mxu0 %v198
        %2146 = vmatpush.msra.mxu0 %v197
        %2147 = vmatpush.msra.mxu0 %v196
        %2148 = vmatpush.msra.mxu0 %v195
        %2149 = vmatpush.msra.mxu0 %v194
        %2150 = vmatmul.f32.gmra.mxu0 %v2130
        %v2151 = vpop.f32.mrf.mxu0
        %v2152 = vadd.f32 0.0, %v2151
        %2153 = vdwg.mxu0
        %2154 = vmatpush.msra.mxu0 %v225
        %2155 = vmatpush.msra.mxu0 %v224
        %2156 = vmatpush.msra.mxu0 %v223
        %2157 = vmatpush.msra.mxu0 %v222
        %2158 = vmatpush.msra.mxu0 %v221
        %2159 = vmatpush.msra.mxu0 %v220
        %2160 = vmatpush.msra.mxu0 %v219
        %2161 = vmatpush.msra.mxu0 %v218
        %2162 = vmatpush.msra.mxu0 %v217
        %2163 = vmatpush.msra.mxu0 %v216
        %2164 = vmatpush.msra.mxu0 %v215
        %2165 = vmatpush.msra.mxu0 %v214
        %2166 = vmatpush.msra.mxu0 %v213
        %2167 = vmatpush.msra.mxu0 %v212
        %2168 = vmatpush.msra.mxu0 %v211
        %2169 = vmatpush.msra.mxu0 %v210
        %2170 = vmatmul.f32.gmra.mxu0 %v2130
        %v2171 = vpop.f32.mrf.mxu0
        %v2172 = vadd.f32 0.0, %v2171
        %2173 = vdwg.mxu0
        %2174 = vmatpush.msra.mxu0 0.0
        %2175 = vmatpush.msra.mxu0 0.0
        %2176 = vmatpush.msra.mxu0 0.0
        %2177 = vmatpush.msra.mxu0 0.0
        %2178 = vmatpush.msra.mxu0 0.0
        %2179 = vmatpush.msra.mxu0 0.0
        %2180 = vmatpush.msra.mxu0 0.0
        %2181 = vmatpush.msra.mxu0 0.0
        %2182 = vmatpush.msra.mxu0 0.0
        %2183 = vmatpush.msra.mxu0 0.0
        %2184 = vmatpush.msra.mxu0 0.0
        %2185 = vmatpush.msra.mxu0 0.0
        %2186 = vmatpush.msra.mxu0 0.0
        %2187 = vmatpush.msra.mxu0 %v2172
        %2188 = vmatpush.msra.mxu0 %v2130
        %2189 = vmatpush.msra.mxu0 %v2152
        %2190 = vmatmul.f32.gmra.mxu0 %v273
        %v2191 = vpop.f32.mrf.mxu0
        %v2192 = vadd.f32 0.0, %v2191
        %2193 = vdwg.mxu0
        %v2194 = vmul.f32 %v2192, 0.00025
        %v2195 = vadd.f32 %v2133, %v2194
        %2197 = vset.pattern.permute.xlu0 10
        %2198 = vperm.xlu0 %2197, %v2195
        %v2199 = vpop.permute.xlu0 %2198
        %v2201 = vsel %vm229, %v2199, %v2195
        %2202 = vset.pattern.permute.xlu0 117
        %2203 = vperm.xlu0 %2202, %v2195
        %v2204 = vpop.permute.xlu0 %2203
        %v2206 = vsel %vm230, %v2204, %v2201
        %v2207 = vmul.f32 %v2057, %v390
        %v2208 = vmul.f32 %v2206, 2.0
        %v2209 = vmul.f32 %v2208, %v390
        %v2210 = vadd.f32 %v2207, %v2209
        %2211 = vmatpush.msra.mxu0 %v209
        %2212 = vmatpush.msra.mxu0 %v208
        %2213 = vmatpush.msra.mxu0 %v207
        %2214 = vmatpush.msra.mxu0 %v206
        %2215 = vmatpush.msra.mxu0 %v205
        %2216 = vmatpush.msra.mxu0 %v204
        %2217 = vmatpush.msra.mxu0 %v203
        %2218 = vmatpush.msra.mxu0 %v202
        %2219 = vmatpush.msra.mxu0 %v201
        %2220 = vmatpush.msra.mxu0 %v200
        %2221 = vmatpush.msra.mxu0 %v199
        %2222 = vmatpush.msra.mxu0 %v198
        %2223 = vmatpush.msra.mxu0 %v197
        %2224 = vmatpush.msra.mxu0 %v196
        %2225 = vmatpush.msra.mxu0 %v195
        %2226 = vmatpush.msra.mxu0 %v194
        %2227 = vmatmul.f32.gmra.mxu0 %v2206
        %v2228 = vpop.f32.mrf.mxu0
        %v2229 = vadd.f32 0.0, %v2228
        %2230 = vdwg.mxu0
        %2231 = vmatpush.msra.mxu0 %v225
        %2232 = vmatpush.msra.mxu0 %v224
        %2233 = vmatpush.msra.mxu0 %v223
        %2234 = vmatpush.msra.mxu0 %v222
        %2235 = vmatpush.msra.mxu0 %v221
        %2236 = vmatpush.msra.mxu0 %v220
        %2237 = vmatpush.msra.mxu0 %v219
        %2238 = vmatpush.msra.mxu0 %v218
        %2239 = vmatpush.msra.mxu0 %v217
        %2240 = vmatpush.msra.mxu0 %v216
        %2241 = vmatpush.msra.mxu0 %v215
        %2242 = vmatpush.msra.mxu0 %v214
        %2243 = vmatpush.msra.mxu0 %v213
        %2244 = vmatpush.msra.mxu0 %v212
        %2245 = vmatpush.msra.mxu0 %v211
        %2246 = vmatpush.msra.mxu0 %v210
        %2247 = vmatmul.f32.gmra.mxu0 %v2206
        %v2248 = vpop.f32.mrf.mxu0
        %v2249 = vadd.f32 0.0, %v2248
        %2250 = vdwg.mxu0
        %2251 = vmatpush.msra.mxu0 0.0
        %2252 = vmatpush.msra.mxu0 0.0
        %2253 = vmatpush.msra.mxu0 0.0
        %2254 = vmatpush.msra.mxu0 0.0
        %2255 = vmatpush.msra.mxu0 0.0
        %2256 = vmatpush.msra.mxu0 0.0
        %2257 = vmatpush.msra.mxu0 0.0
        %2258 = vmatpush.msra.mxu0 0.0
        %2259 = vmatpush.msra.mxu0 0.0
        %2260 = vmatpush.msra.mxu0 0.0
        %2261 = vmatpush.msra.mxu0 0.0
        %2262 = vmatpush.msra.mxu0 0.0
        %2263 = vmatpush.msra.mxu0 0.0
        %2264 = vmatpush.msra.mxu0 %v2249
        %2265 = vmatpush.msra.mxu0 %v2206
        %2266 = vmatpush.msra.mxu0 %v2229
        %2267 = vmatmul.f32.gmra.mxu0 %v273
        %v2268 = vpop.f32.mrf.mxu0
        %v2269 = vadd.f32 0.0, %v2268
        %2270 = vdwg.mxu0
        %v2271 = vmul.f32 %v2269, 0.002
        %v2272 = vmul.f32 %v2271, %v390
        %v2273 = vadd.f32 %v2210, %v2272
        %2275 = vset.pattern.permute.xlu0 10
        %2276 = vperm.xlu0 %2275, %v2273
        %v2277 = vpop.permute.xlu0 %2276
        %v2279 = vsel %vm229, %v2277, %v2273
        %2280 = vset.pattern.permute.xlu0 117
        %2281 = vperm.xlu0 %2280, %v2273
        %v2282 = vpop.permute.xlu0 %2281
        %v2284 = vsel %vm230, %v2282, %v2279
        %2285 = vmatpush.msra.mxu0 %v209
        %2286 = vmatpush.msra.mxu0 %v208
        %2287 = vmatpush.msra.mxu0 %v207
        %2288 = vmatpush.msra.mxu0 %v206
        %2289 = vmatpush.msra.mxu0 %v205
        %2290 = vmatpush.msra.mxu0 %v204
        %2291 = vmatpush.msra.mxu0 %v203
        %2292 = vmatpush.msra.mxu0 %v202
        %2293 = vmatpush.msra.mxu0 %v201
        %2294 = vmatpush.msra.mxu0 %v200
        %2295 = vmatpush.msra.mxu0 %v199
        %2296 = vmatpush.msra.mxu0 %v198
        %2297 = vmatpush.msra.mxu0 %v197
        %2298 = vmatpush.msra.mxu0 %v196
        %2299 = vmatpush.msra.mxu0 %v195
        %2300 = vmatpush.msra.mxu0 %v194
        %2301 = vmatmul.f32.gmra.mxu0 %v2284
        %v2302 = vpop.f32.mrf.mxu0
        %v2303 = vadd.f32 0.0, %v2302
        %2304 = vdwg.mxu0
        %2305 = vmatpush.msra.mxu0 %v225
        %2306 = vmatpush.msra.mxu0 %v224
        %2307 = vmatpush.msra.mxu0 %v223
        %2308 = vmatpush.msra.mxu0 %v222
        %2309 = vmatpush.msra.mxu0 %v221
        %2310 = vmatpush.msra.mxu0 %v220
        %2311 = vmatpush.msra.mxu0 %v219
        %2312 = vmatpush.msra.mxu0 %v218
        %2313 = vmatpush.msra.mxu0 %v217
        %2314 = vmatpush.msra.mxu0 %v216
        %2315 = vmatpush.msra.mxu0 %v215
        %2316 = vmatpush.msra.mxu0 %v214
        %2317 = vmatpush.msra.mxu0 %v213
        %2318 = vmatpush.msra.mxu0 %v212
        %2319 = vmatpush.msra.mxu0 %v211
        %2320 = vmatpush.msra.mxu0 %v210
        %2321 = vmatmul.f32.gmra.mxu0 %v2284
        %v2322 = vpop.f32.mrf.mxu0
        %v2323 = vadd.f32 0.0, %v2322
        %2324 = vdwg.mxu0
        %2325 = vmatpush.msra.mxu0 0.0
        %2326 = vmatpush.msra.mxu0 0.0
        %2327 = vmatpush.msra.mxu0 0.0
        %2328 = vmatpush.msra.mxu0 0.0
        %2329 = vmatpush.msra.mxu0 0.0
        %2330 = vmatpush.msra.mxu0 0.0
        %2331 = vmatpush.msra.mxu0 0.0
        %2332 = vmatpush.msra.mxu0 0.0
        %2333 = vmatpush.msra.mxu0 0.0
        %2334 = vmatpush.msra.mxu0 0.0
        %2335 = vmatpush.msra.mxu0 0.0
        %2336 = vmatpush.msra.mxu0 0.0
        %2337 = vmatpush.msra.mxu0 0.0
        %2338 = vmatpush.msra.mxu0 %v2323
        %2339 = vmatpush.msra.mxu0 %v2284
        %2340 = vmatpush.msra.mxu0 %v2303
        %2341 = vmatmul.f32.gmra.mxu0 %v273
        %v2342 = vpop.f32.mrf.mxu0
        %v2343 = vadd.f32 0.0, %v2342
        %2344 = vdwg.mxu0
        %v2345 = vmul.f32 %v2343, 0.001
        %v2346 = vadd.f32 %v2284, %v2345
        %2348 = vset.pattern.permute.xlu0 10
        %2349 = vperm.xlu0 %2348, %v2346
        %v2350 = vpop.permute.xlu0 %2349
        %v2352 = vsel %vm229, %v2350, %v2346
        %2353 = vset.pattern.permute.xlu0 117
        %2354 = vperm.xlu0 %2353, %v2346
        %v2355 = vpop.permute.xlu0 %2354
        %v2357 = vsel %vm230, %v2355, %v2352
        %v2358 = vmul.f32 %v2284, 0.75
        %v2359 = vmul.f32 %v2357, 0.25
        %v2360 = vadd.f32 %v2358, %v2359
        %2361 = vmatpush.msra.mxu0 %v209
        %2362 = vmatpush.msra.mxu0 %v208
        %2363 = vmatpush.msra.mxu0 %v207
        %2364 = vmatpush.msra.mxu0 %v206
        %2365 = vmatpush.msra.mxu0 %v205
        %2366 = vmatpush.msra.mxu0 %v204
        %2367 = vmatpush.msra.mxu0 %v203
        %2368 = vmatpush.msra.mxu0 %v202
        %2369 = vmatpush.msra.mxu0 %v201
        %2370 = vmatpush.msra.mxu0 %v200
        %2371 = vmatpush.msra.mxu0 %v199
        %2372 = vmatpush.msra.mxu0 %v198
        %2373 = vmatpush.msra.mxu0 %v197
        %2374 = vmatpush.msra.mxu0 %v196
        %2375 = vmatpush.msra.mxu0 %v195
        %2376 = vmatpush.msra.mxu0 %v194
        %2377 = vmatmul.f32.gmra.mxu0 %v2357
        %v2378 = vpop.f32.mrf.mxu0
        %v2379 = vadd.f32 0.0, %v2378
        %2380 = vdwg.mxu0
        %2381 = vmatpush.msra.mxu0 %v225
        %2382 = vmatpush.msra.mxu0 %v224
        %2383 = vmatpush.msra.mxu0 %v223
        %2384 = vmatpush.msra.mxu0 %v222
        %2385 = vmatpush.msra.mxu0 %v221
        %2386 = vmatpush.msra.mxu0 %v220
        %2387 = vmatpush.msra.mxu0 %v219
        %2388 = vmatpush.msra.mxu0 %v218
        %2389 = vmatpush.msra.mxu0 %v217
        %2390 = vmatpush.msra.mxu0 %v216
        %2391 = vmatpush.msra.mxu0 %v215
        %2392 = vmatpush.msra.mxu0 %v214
        %2393 = vmatpush.msra.mxu0 %v213
        %2394 = vmatpush.msra.mxu0 %v212
        %2395 = vmatpush.msra.mxu0 %v211
        %2396 = vmatpush.msra.mxu0 %v210
        %2397 = vmatmul.f32.gmra.mxu0 %v2357
        %v2398 = vpop.f32.mrf.mxu0
        %v2399 = vadd.f32 0.0, %v2398
        %2400 = vdwg.mxu0
        %2401 = vmatpush.msra.mxu0 0.0
        %2402 = vmatpush.msra.mxu0 0.0
        %2403 = vmatpush.msra.mxu0 0.0
        %2404 = vmatpush.msra.mxu0 0.0
        %2405 = vmatpush.msra.mxu0 0.0
        %2406 = vmatpush.msra.mxu0 0.0
        %2407 = vmatpush.msra.mxu0 0.0
        %2408 = vmatpush.msra.mxu0 0.0
        %2409 = vmatpush.msra.mxu0 0.0
        %2410 = vmatpush.msra.mxu0 0.0
        %2411 = vmatpush.msra.mxu0 0.0
        %2412 = vmatpush.msra.mxu0 0.0
        %2413 = vmatpush.msra.mxu0 0.0
        %2414 = vmatpush.msra.mxu0 %v2399
        %2415 = vmatpush.msra.mxu0 %v2357
        %2416 = vmatpush.msra.mxu0 %v2379
        %2417 = vmatmul.f32.gmra.mxu0 %v273
        %v2418 = vpop.f32.mrf.mxu0
        %v2419 = vadd.f32 0.0, %v2418
        %2420 = vdwg.mxu0
        %v2421 = vmul.f32 %v2419, 0.00025
        %v2422 = vadd.f32 %v2360, %v2421
        %2424 = vset.pattern.permute.xlu0 10
        %2425 = vperm.xlu0 %2424, %v2422
        %v2426 = vpop.permute.xlu0 %2425
        %v2428 = vsel %vm229, %v2426, %v2422
        %2429 = vset.pattern.permute.xlu0 117
        %2430 = vperm.xlu0 %2429, %v2422
        %v2431 = vpop.permute.xlu0 %2430
        %v2433 = vsel %vm230, %v2431, %v2428
        %v2434 = vmul.f32 %v2284, %v390
        %v2435 = vmul.f32 %v2433, 2.0
        %v2436 = vmul.f32 %v2435, %v390
        %v2437 = vadd.f32 %v2434, %v2436
        %2438 = vmatpush.msra.mxu0 %v209
        %2439 = vmatpush.msra.mxu0 %v208
        %2440 = vmatpush.msra.mxu0 %v207
        %2441 = vmatpush.msra.mxu0 %v206
        %2442 = vmatpush.msra.mxu0 %v205
        %2443 = vmatpush.msra.mxu0 %v204
        %2444 = vmatpush.msra.mxu0 %v203
        %2445 = vmatpush.msra.mxu0 %v202
        %2446 = vmatpush.msra.mxu0 %v201
        %2447 = vmatpush.msra.mxu0 %v200
        %2448 = vmatpush.msra.mxu0 %v199
        %2449 = vmatpush.msra.mxu0 %v198
        %2450 = vmatpush.msra.mxu0 %v197
        %2451 = vmatpush.msra.mxu0 %v196
        %2452 = vmatpush.msra.mxu0 %v195
        %2453 = vmatpush.msra.mxu0 %v194
        %2454 = vmatmul.f32.gmra.mxu0 %v2433
        %v2455 = vpop.f32.mrf.mxu0
        %v2456 = vadd.f32 0.0, %v2455
        %2457 = vdwg.mxu0
        %2458 = vmatpush.msra.mxu0 %v225
        %2459 = vmatpush.msra.mxu0 %v224
        %2460 = vmatpush.msra.mxu0 %v223
        %2461 = vmatpush.msra.mxu0 %v222
        %2462 = vmatpush.msra.mxu0 %v221
        %2463 = vmatpush.msra.mxu0 %v220
        %2464 = vmatpush.msra.mxu0 %v219
        %2465 = vmatpush.msra.mxu0 %v218
        %2466 = vmatpush.msra.mxu0 %v217
        %2467 = vmatpush.msra.mxu0 %v216
        %2468 = vmatpush.msra.mxu0 %v215
        %2469 = vmatpush.msra.mxu0 %v214
        %2470 = vmatpush.msra.mxu0 %v213
        %2471 = vmatpush.msra.mxu0 %v212
        %2472 = vmatpush.msra.mxu0 %v211
        %2473 = vmatpush.msra.mxu0 %v210
        %2474 = vmatmul.f32.gmra.mxu0 %v2433
        %v2475 = vpop.f32.mrf.mxu0
        %v2476 = vadd.f32 0.0, %v2475
        %2477 = vdwg.mxu0
        %2478 = vmatpush.msra.mxu0 0.0
        %2479 = vmatpush.msra.mxu0 0.0
        %2480 = vmatpush.msra.mxu0 0.0
        %2481 = vmatpush.msra.mxu0 0.0
        %2482 = vmatpush.msra.mxu0 0.0
        %2483 = vmatpush.msra.mxu0 0.0
        %2484 = vmatpush.msra.mxu0 0.0
        %2485 = vmatpush.msra.mxu0 0.0
        %2486 = vmatpush.msra.mxu0 0.0
        %2487 = vmatpush.msra.mxu0 0.0
        %2488 = vmatpush.msra.mxu0 0.0
        %2489 = vmatpush.msra.mxu0 0.0
        %2490 = vmatpush.msra.mxu0 0.0
        %2491 = vmatpush.msra.mxu0 %v2476
        %2492 = vmatpush.msra.mxu0 %v2433
        %2493 = vmatpush.msra.mxu0 %v2456
        %2494 = vmatmul.f32.gmra.mxu0 %v273
        %v2495 = vpop.f32.mrf.mxu0
        %v2496 = vadd.f32 0.0, %v2495
        %2497 = vdwg.mxu0
        %v2498 = vmul.f32 %v2496, 0.002
        %v2499 = vmul.f32 %v2498, %v390
        %v2500 = vadd.f32 %v2437, %v2499
        %2502 = vset.pattern.permute.xlu0 10
        %2503 = vperm.xlu0 %2502, %v2500
        %v2504 = vpop.permute.xlu0 %2503
        %v2506 = vsel %vm229, %v2504, %v2500
        %2507 = vset.pattern.permute.xlu0 117
        %2508 = vperm.xlu0 %2507, %v2500
        %v2509 = vpop.permute.xlu0 %2508
        %v2511 = vsel %vm230, %v2509, %v2506
        %2512 = vst [vmem:[%s188] sm:$0xff] %v2511
        %s2513 = sand.u32 %s115, 1
        %s2514 = scalar_lea.sflag [#allocation3], %s2513
        %s2515 = sand.u32 %s115, 1
        %s2516 = smul.addr %s2515, 8
        %s2517 = scalar_lea.vmem [#allocation2], %s2516
        // Predicated region
        $region37: #{neural_ode_forward.1} parent=35 // pred_check
          %p2518 = pneg %p125
        $region38: #{neural_ode_forward.1} parent=35 // pred_check_branch
          %2520 = sbr.rel (%p2518) target = $region40
        $region39: #{neural_ode_forward.1} parent=35 // pred_region
          %2522 = vsyncadd %s2514, 0
          %s2523 = smul.addr %s18, 8
          %s2524 = scalar_lea.hbm %s4, %s2523
          %s2526 = sshll.u32 %s2517, 4
          %s2527 = int_to_ptr.vmem [resolvable:$true] %s2526
          %s2528 = sshll.u32 %s2524, 4
          %s2529 = int_to_ptr.hbm [resolvable:$true] %s2528
          %2531 = dma.vmem_to_hbm [thread:$0]  %s2527, 128, %s2529, %s2514
        $region40: #{neural_ode_forward.1} parent=35 // pred_fallthru
          _
      $region36: #{neural_ode_forward.1} parent=5 // pred_fallthru
        _
      %p2532 = scmp.le.s32.totalorder 2, %s13
      // Predicated region
      $region41: #{neural_ode_forward.1} parent=5 // pred_check
        %p2533 = pneg %p2532
      $region42: #{neural_ode_forward.1} parent=5 // pred_check_branch
        %2535 = sbr.rel (%p2533) target = $region44
      $region43: #{neural_ode_forward.1} parent=5 // pred_region
        %s2536 = ssub.s32 %s13, 2
        // Predicated region
        $region45: #{neural_ode_forward.1} parent=43 // pred_check
          %p2537 = pneg %p131
        $region46: #{neural_ode_forward.1} parent=43 // pred_check_branch
          %2539 = sbr.rel (%p2537) target = $region48
        $region47: #{neural_ode_forward.1} parent=43 // pred_region
          %s2540 = sand.u32 %s116, 1
          %s2541 = scalar_lea.sflag [#allocation3], %s2540
          %s2542 = sand.u32 %s116, 1
          %s2543 = smul.addr %s2542, 8
          %s2544 = scalar_lea.vmem [#allocation2], %s2543
          %2546 = dma.done %s2541, 128
        $region48: #{neural_ode_forward.1} parent=43 // pred_fallthru
          _
      $region44: #{neural_ode_forward.1} parent=5 // pred_fallthru
        _
    $region6: #{neural_ode_forward.1} parent=1 // loop_footer
      %s17 = sadd.s32 1, %s13
    $region7: #{neural_ode_forward.1} parent=1 // loop_footer_branch
      %12 = sbr.rel target = $region3
    $region8: #{neural_ode_forward.1} parent=1 // loop_exit
      _
    %2547 = vsyncpa [#allocation3], 1
    %s2548 = scalar_lea.sflag [#allocation3], 1
    %2549 = vsyncpa %s2548, 1

</llo_original>
